<compile_context>
chip_gen: v5e
topology: v5e:2x2
jax: 0.10.0
libtpu: 0.0.40
codegen_flags: <defaults>
</compile_context>

<pallas_src>
import functools
import math

import jax
import jax.numpy as jnp
from jax.experimental import pallas as pl
from jax.experimental.pallas import tpu as pltpu


# ----------------------------------------------------------------------------
# helpers
# ----------------------------------------------------------------------------
def _tile(full, pref, align):
    """Largest `align`-aligned tile <= pref that divides `full`, else `full`."""
    if full <= pref:
        return full
    t = (pref // align) * align
    while t >= align:
        if full % t == 0:
            return t
        t -= align
    return full


def _gelu(x):
    # tanh-approximate GELU (pure jnp: usable inside kernels and references)
    c = math.sqrt(2.0 / math.pi)
    return 0.5 * x * (1.0 + jnp.tanh(c * (x + 0.044715 * x * x * x)))


# ----------------------------------------------------------------------------
# 1. patch embedding kernel
# ----------------------------------------------------------------------------
def _patch_embed_kernel(x_ref, w_ref, add_ref, o_ref):
    # x_ref: (tt, K) bf16 patch rows (token 0 is a zero row for the cls token)
    # w_ref: (K, tn) bf16 flattened conv weight tile
    # add_ref: (tt, tn) f32 additive table (cls/pos/bias folded)
    acc = jnp.dot(x_ref[...], w_ref[...], preferred_element_type=jnp.float32)
    o_ref[...] = (acc + add_ref[...]).astype(o_ref.dtype)


def patch_embed(x, conv_w, conv_b, cls_token, positions, patch_size):
    """x: (B,C,H,W) NCHW  ->  (B, N+1, E) f32 with cls token + positions added."""
    B, C, H, W = x.shape
    P = patch_size
    E = conv_w.shape[0]
    Hp, Wp = H // P, W // P
    N = Hp * Wp
    K = C * P * P
    T = N + 1

    patches = x.reshape(B, C, Hp, P, Wp, P).transpose(0, 2, 4, 1, 3, 5)
    patches = patches.reshape(B, N, K).astype(jnp.bfloat16)
    patches_full = jnp.pad(patches, ((0, 0), (1, 0), (0, 0)))          # cls row = 0

    w_mat = conv_w.reshape(E, K).T.astype(jnp.bfloat16)                # (K, E)
    add_full = jnp.concatenate(
        [cls_token.reshape(1, E) + positions[0:1],
         positions[1:] + conv_b[None, :]], axis=0).astype(jnp.float32)  # (T, E)

    tt = _tile(T, 256, 8)
    tn = _tile(E, 512, 128)
    grid = (B, pl.cdiv(T, tt), pl.cdiv(E, tn))

    return pl.pallas_call(
        _patch_embed_kernel,
        out_shape=jax.ShapeDtypeStruct((B, T, E), jnp.float32),
        grid_spec=pltpu.PrefetchScalarGridSpec(
            num_scalar_prefetch=0,
            grid=grid,
            in_specs=[
                pl.BlockSpec((None, tt, K), lambda b, t, e: (b, t, 0)),
                pl.BlockSpec((K, tn), lambda b, t, e: (0, e)),
                pl.BlockSpec((tt, tn), lambda b, t, e: (t, e)),
            ],
            out_specs=pl.BlockSpec((None, tt, tn), lambda b, t, e: (b, t, e)),
        ),
        compiler_params=pltpu.CompilerParams(
            dimension_semantics=("parallel", "parallel", "parallel"),
            allow_input_fusion=[True, False, False],
        ),
    )(patches_full, w_mat, add_full)


# ----------------------------------------------------------------------------
# 2. layernorm kernel
# ----------------------------------------------------------------------------
def _layernorm_kernel(x_ref, g_ref, b_ref, o_ref):
    x = x_ref[...].astype(jnp.float32)
    mean = jnp.mean(x, axis=-1, keepdims=True)
    var = jnp.mean(jnp.square(x - mean), axis=-1, keepdims=True)
    y = (x - mean) * jax.lax.rsqrt(var + 1e-5)
    o_ref[...] = (y * g_ref[...] + b_ref[...]).astype(o_ref.dtype)


def layernorm(x, gamma, beta):
    R, E = x.shape
    tm = _tile(R, 256, 8)
    g2 = gamma.reshape(1, E).astype(jnp.float32)
    b2 = beta.reshape(1, E).astype(jnp.float32)
    return pl.pallas_call(
        _layernorm_kernel,
        out_shape=jax.ShapeDtypeStruct((R, E), jnp.float32),
        grid_spec=pltpu.PrefetchScalarGridSpec(
            num_scalar_prefetch=0,
            grid=(pl.cdiv(R, tm),),
            in_specs=[
                pl.BlockSpec((tm, E), lambda i: (i, 0)),
                pl.BlockSpec((1, E), lambda i: (0, 0)),
                pl.BlockSpec((1, E), lambda i: (0, 0)),
            ],
            out_specs=pl.BlockSpec((tm, E), lambda i: (i, 0)),
        ),
        compiler_params=pltpu.CompilerParams(dimension_semantics=("parallel",)),
    )(x.astype(jnp.float32), g2, b2)


# ----------------------------------------------------------------------------
# 3. linear kernel: y = act(x @ W + b) [+ residual]
# ----------------------------------------------------------------------------
def _linear_kernel(x_ref, w_ref, b_ref, o_ref, acc_ref, *, activation):
    @pl.when(pl.program_id(2) == 0)
    def _():
        acc_ref[...] = jnp.zeros_like(acc_ref)

    acc_ref[...] += jnp.dot(x_ref[...], w_ref[...],
                            preferred_element_type=jnp.float32)

    @pl.when(pl.program_id(2) == pl.num_programs(2) - 1)
    def _():
        y = acc_ref[...] + b_ref[...]
        if activation == "gelu":
            y = _gelu(y)
        o_ref[...] = y.astype(o_ref.dtype)


def _linear_res_kernel(x_ref, w_ref, b_ref, r_ref, o_ref, acc_ref, *, activation):
    @pl.when(pl.program_id(2) == 0)
    def _():
        acc_ref[...] = jnp.zeros_like(acc_ref)

    acc_ref[...] += jnp.dot(x_ref[...], w_ref[...],
                            preferred_element_type=jnp.float32)

    @pl.when(pl.program_id(2) == pl.num_programs(2) - 1)
    def _():
        y = acc_ref[...] + b_ref[...]
        if activation == "gelu":
            y = _gelu(y)
        o_ref[...] = (y + r_ref[...]).astype(o_ref.dtype)


def linear(x, w, b, *, activation=None, residual=None):
    """x: (M,K) f32, w: (K,N) f32, b: (N,) f32 -> (M,N) f32."""
    M, K = x.shape
    _, N = w.shape
    tm = _tile(M, 256, 8)
    tn = _tile(N, 512, 128)
    tk = _tile(K, 512, 128)
    grid = (pl.cdiv(M, tm), pl.cdiv(N, tn), pl.cdiv(K, tk))

    in_specs = [
        pl.BlockSpec((tm, tk), lambda i, j, k: (i, k)),
        pl.BlockSpec((tk, tn), lambda i, j, k: (k, j)),
        pl.BlockSpec((1, tn), lambda i, j, k: (0, j)),
    ]
    operands = [x.astype(jnp.bfloat16), w.astype(jnp.bfloat16),
                b.reshape(1, N).astype(jnp.float32)]
    if residual is None:
        kernel = functools.partial(_linear_kernel, activation=activation)
    else:
        kernel = functools.partial(_linear_res_kernel, activation=activation)
        in_specs.append(pl.BlockSpec((tm, tn), lambda i, j, k: (i, j)))
        operands.append(residual.astype(jnp.float32))

    return pl.pallas_call(
        kernel,
        out_shape=jax.ShapeDtypeStruct((M, N), jnp.float32),
        grid_spec=pltpu.PrefetchScalarGridSpec(
            num_scalar_prefetch=0,
            grid=grid,
            in_specs=in_specs,
            out_specs=pl.BlockSpec((tm, tn), lambda i, j, k: (i, j)),
            scratch_shapes=[pltpu.VMEM((tm, tn), jnp.float32)],
        ),
        compiler_params=pltpu.CompilerParams(
            dimension_semantics=("parallel", "parallel", "arbitrary")),
    )(*operands)


# ----------------------------------------------------------------------------
# 4. attention kernel: softmax(q k^T * scale) v, per (batch, head)
# ----------------------------------------------------------------------------
def _attention_kernel(q_ref, kt_ref, v_ref, o_ref, *, scale):
    s = jnp.dot(q_ref[...], kt_ref[...],
                preferred_element_type=jnp.float32) * scale          # (T, T)
    m = jnp.max(s, axis=-1, keepdims=True)
    p = jnp.exp(s - m)
    p = p / jnp.sum(p, axis=-1, keepdims=True)
    o = jnp.dot(p.astype(v_ref.dtype), v_ref[...],
                preferred_element_type=jnp.float32)
    o_ref[...] = o.astype(o_ref.dtype)


def attention(q, k_t, v):
    """q, v: (B,H,T,D); k_t: (B,H,D,T) (K pre-transposed in glue)."""
    B, H, T, D = q.shape
    scale = 1.0 / math.sqrt(D)
    kern = functools.partial(_attention_kernel, scale=scale)
    return pl.pallas_call(
        kern,
        out_shape=jax.ShapeDtypeStruct((B, H, T, D), jnp.float32),
        grid_spec=pltpu.PrefetchScalarGridSpec(
            num_scalar_prefetch=0,
            grid=(B, H),
            in_specs=[
                pl.BlockSpec((None, None, T, D), lambda b, h: (b, h, 0, 0)),
                pl.BlockSpec((None, None, D, T), lambda b, h: (b, h, 0, 0)),
                pl.BlockSpec((None, None, T, D), lambda b, h: (b, h, 0, 0)),
            ],
            out_specs=pl.BlockSpec((None, None, T, D), lambda b, h: (b, h, 0, 0)),
        ),
        compiler_params=pltpu.CompilerParams(
            dimension_semantics=("parallel", "parallel")),
    )(q.astype(jnp.bfloat16), k_t.astype(jnp.bfloat16), v.astype(jnp.bfloat16))


# ----------------------------------------------------------------------------
# full ViT forward (kernels + layout glue)
# ----------------------------------------------------------------------------
def _split_heads(qkv, B, T, num_heads):
    E3 = qkv.shape[-1]
    E = E3 // 3
    Dh = E // num_heads
    q, k, v = jnp.split(qkv.reshape(B, T, E3), 3, axis=-1)

    def heads(t):
        return t.reshape(B, T, num_heads, Dh).transpose(0, 2, 1, 3)

    return heads(q), heads(k), heads(v)


def vit_forward(x, params, *, patch_size, num_heads):
    h = patch_embed(x, params["conv_w"], params["conv_b"],
                    params["cls_token"], params["positions"], patch_size)
    B, T, E = h.shape
    hf = h.reshape(B * T, E)
    for lp in params["layers"]:
        # --- multi-head self-attention block (pre-LN) + residual ---
        y = layernorm(hf, lp["ln1_g"], lp["ln1_b"])      # att dropout = identity (eval)
        qkv = linear(y, lp["w_qkv"], lp["b_qkv"])
        q, k, v = _split_heads(qkv, B, T, num_heads)
        a = attention(q, k.transpose(0, 1, 3, 2), v)
        a = a.transpose(0, 2, 1, 3).reshape(B * T, E)
        hf = linear(a, lp["w_out"], lp["b_out"], residual=hf)
        # --- MLP block (pre-LN) + residual (dropouts = identity) ---
        y = layernorm(hf, lp["ln2_g"], lp["ln2_b"])
        y = linear(y, lp["w1"], lp["b1"], activation="gelu")
        hf = linear(y, lp["w2"], lp["b2"], residual=hf)
    cls = hf.reshape(B, T, E)[:, 0]                       # cls token
    cls = layernorm(cls, params["head_ln_g"], params["head_ln_b"])
    return linear(cls, params["head_w"], params["head_b"])


# ----------------------------------------------------------------------------
# pure-JAX references
# ----------------------------------------------------------------------------
def vit_reference(x, params, *, patch_size, num_heads, mirror_bf16):
    """mirror_bf16=True replicates the kernel's bf16 matmul operands (tight
    check); False keeps everything f32 (module semantics, loose check)."""
    cast = (lambda a: a.astype(jnp.bfloat16)) if mirror_bf16 else (lambda a: a)

    def mm(a, b):
        return jnp.dot(cast(a), cast(b), preferred_element_type=jnp.float32)

    def ln(z, g, b):
        mu = z.mean(-1, keepdims=True)
        var = jnp.square(z - mu).mean(-1, keepdims=True)
        return (z - mu) * jax.lax.rsqrt(var + 1e-5) * g + b

    B, C, H, W = x.shape
    P = patch_size
    E = params["conv_w"].shape[0]
    Hp, Wp = H // P, W // P
    N = Hp * Wp
    K = C * P * P
    patches = x.reshape(B, C, Hp, P, Wp, P).transpose(0, 2, 4, 1, 3, 5)
    patches = patches.reshape(B, N, K)
    w_mat = params["conv_w"].reshape(E, K).T
    y = mm(patches, w_mat) + params["conv_b"]
    cls = jnp.broadcast_to(params["cls_token"].reshape(1, 1, E), (B, 1, E))
    h = jnp.concatenate([cls, y], axis=1) + params["positions"][None]

    Dh = E // num_heads
    scale = 1.0 / math.sqrt(Dh)
    for lp in params["layers"]:
        z = ln(h, lp["ln1_g"], lp["ln1_b"])
        qkv = mm(z, lp["w_qkv"]) + lp["b_qkv"]
        q, k, v = jnp.split(qkv, 3, axis=-1)

        def heads(t):
            return t.reshape(B, -1, num_heads, Dh).transpose(0, 2, 1, 3)

        q, k, v = heads(q), heads(k), heads(v)
        s = jnp.einsum("bhqd,bhkd->bhqk", cast(q), cast(k),
                       preferred_element_type=jnp.float32) * scale
        s = s - s.max(-1, keepdims=True)
        p = jnp.exp(s)
        p = p / p.sum(-1, keepdims=True)
        a = jnp.einsum("bhqk,bhkd->bhqd", cast(p), cast(v),
                       preferred_element_type=jnp.float32)
        a = a.transpose(0, 2, 1, 3).reshape(B, -1, E)
        h = mm(a, lp["w_out"]) + lp["b_out"] + h

        z = ln(h, lp["ln2_g"], lp["ln2_b"])
        z = _gelu(mm(z, lp["w1"]) + lp["b1"])
        h = mm(z, lp["w2"]) + lp["b2"] + h

    cls_tok = ln(h[:, 0], params["head_ln_g"], params["head_ln_b"])
    return mm(cls_tok, params["head_w"]) + params["head_b"]


# ----------------------------------------------------------------------------
# demo
# ----------------------------------------------------------------------------
def init_params(key, *, in_channels, patch_size, emb_size, num_heads,
                num_layers, mlp_size, num_classes, img_size):
    E = emb_size
    N = (img_size // patch_size) ** 2
    K = in_channels * patch_size * patch_size
    counter = [0]

    def nrm(shape, scale):
        counter[0] += 1
        k = jax.random.fold_in(key, counter[0])
        return scale * jax.random.normal(k, shape, jnp.float32)

    def ln_pair():
        return 1.0 + nrm((E,), 0.1), nrm((E,), 0.1)

    layers = []
    for _ in range(num_layers):
        g1, bb1 = ln_pair()
        g2, bb2 = ln_pair()
        layers.append({
            "ln1_g": g1, "ln1_b": bb1,
            "w_qkv": nrm((E, 3 * E), 1.0 / math.sqrt(E)),
            "b_qkv": nrm((3 * E,), 0.02),
            "w_out": nrm((E, E), 1.0 / math.sqrt(E)),
            "b_out": nrm((E,), 0.02),
            "ln2_g": g2, "ln2_b": bb2,
            "w1": nrm((E, mlp_size), 1.0 / math.sqrt(E)),
            "b1": nrm((mlp_size,), 0.02),
            "w2": nrm((mlp_size, E), 1.0 / math.sqrt(mlp_size)),
            "b2": nrm((E,), 0.02),
        })
    head_g, head_b = ln_pair()
    return {
        "conv_w": nrm((E, in_channels, patch_size, patch_size), 1.0 / math.sqrt(K)),
        "conv_b": nrm((E,), 0.1),
        "cls_token": nrm((1, 1, E), 1.0),
        "positions": nrm((N + 1, E), 0.5),
        "layers": layers,
        "head_ln_g": head_g, "head_ln_b": head_b,
        "head_w": nrm((E, num_classes), 1.0 / math.sqrt(E)),
        "head_b": nrm((num_classes,), 0.02),
    }


if __name__ == "__main__":
    # Small ViT config: batch=2, channels=3, img=16, patch=4 -> 16 patches (+cls)
    B, C, IMG, P = 2, 3, 16, 4
    E, HEADS, LAYERS, MLP, NCLS = 128, 4, 2, 256, 8

    key = jax.random.PRNGKey(0)
    x = jax.random.normal(jax.random.fold_in(key, 12345), (B, C, IMG, IMG), jnp.float32)
    params = init_params(key, in_channels=C, patch_size=P, emb_size=E,
                         num_heads=HEADS, num_layers=LAYERS, mlp_size=MLP,
                         num_classes=NCLS, img_size=IMG)

    fwd = jax.jit(functools.partial(vit_forward, patch_size=P, num_heads=HEADS))
    logits = jax.block_until_ready(fwd(x, params))
    assert logits.shape == (B, NCLS), logits.shape

    # Tight check vs a pure-JAX mirror of the kernel math (same bf16 casts).
    ref_mirror = vit_reference(x, params, patch_size=P, num_heads=HEADS,
                               mirror_bf16=True)
    err_m = float(jnp.max(jnp.abs(logits - ref_mirror)))
    assert jnp.allclose(logits, ref_mirror, atol=2e-2, rtol=2e-2), \
        f"mismatch vs bf16-mirror reference (max abs err {err_m})"

    # Loose sanity check vs the f32 module-semantics reference.
    ref_f32 = vit_reference(x, params, patch_size=P, num_heads=HEADS,
                            mirror_bf16=False)
    err_f = float(jnp.max(jnp.abs(logits - ref_f32)))
    assert jnp.allclose(logits, ref_f32, atol=2e-1, rtol=2e-1), \
        f"mismatch vs f32 reference (max abs err {err_f})"

    print("KERNEL_OK")
</pallas_src>

<mosaic_0001>
module attributes {stable_mosaic.version = 11 : i64} {
  func.func @_linear_kernel(%arg0: i32, %arg1: i32, %arg2: i32, %arg3: memref<34x128xbf16, #tpu.memory_space<vmem>>, %arg4: memref<128x384xbf16, #tpu.memory_space<vmem>>, %arg5: memref<1x384xf32, #tpu.memory_space<vmem>>, %arg6: memref<34x384xf32, #tpu.memory_space<vmem>>, %arg7: memref<34x384xf32, #tpu.memory_space<vmem>>) attributes {dimension_semantics = [#tpu.dimension_semantics<parallel>, #tpu.dimension_semantics<parallel>, #tpu.dimension_semantics<arbitrary>], iteration_bounds = array<i64: 1, 1, 1>, scalar_prefetch = 0 : i64, scratch_operands = 1 : i64, tpu.core_type = #tpu.core_type<tc>, window_params = [{transform_indices = @transform_0, window_bounds = array<i64: 34, 128>}, {transform_indices = @transform_1, window_bounds = array<i64: 128, 384>}, {transform_indices = @transform_2, window_bounds = array<i64: 1, 384>}, {transform_indices = @transform_3, window_bounds = array<i64: 34, 384>}]} {
    %c0_i32 = arith.constant 0 : i32
    %0 = arith.cmpi eq, %arg2, %c0_i32 : i32
    %1 = arith.extui %0 : i1 to i32
    %c0_i32_0 = arith.constant 0 : i32
    %2 = arith.cmpi ne, %1, %c0_i32_0 : i32
    scf.if %2 {
      %cst_10 = arith.constant 0.000000e+00 : f32
      %12 = vector.broadcast %cst_10 : f32 to vector<34x384xf32>
      %c0_11 = arith.constant 0 : index
      %c0_12 = arith.constant 0 : index
      %13 = vector.load %arg7[%c0_11, %c0_12] : memref<34x384xf32, #tpu.memory_space<vmem>>, vector<34x384xf32>
      tpu.vector_store %arg7[%c0_11, %c0_12], %12 {strides = array<i32>} : memref<34x384xf32, #tpu.memory_space<vmem>>, vector<34x384xf32>,
    } else {
    }
    %c0 = arith.constant 0 : index
    %c0_1 = arith.constant 0 : index
    %3 = vector.load %arg7[%c0, %c0_1] : memref<34x384xf32, #tpu.memory_space<vmem>>, vector<34x384xf32>
    %c0_2 = arith.constant 0 : index
    %c0_3 = arith.constant 0 : index
    %4 = vector.load %arg3[%c0_2, %c0_3] : memref<34x128xbf16, #tpu.memory_space<vmem>>, vector<34x128xbf16>
    %c0_4 = arith.constant 0 : index
    %c0_5 = arith.constant 0 : index
    %5 = vector.load %arg4[%c0_4, %c0_5] : memref<128x384xbf16, #tpu.memory_space<vmem>>, vector<128x384xbf16>
    %cst = arith.constant dense<0.000000e+00> : vector<34x384xf32>
    %6 = tpu.matmul %4, %5, %cst {dimension_numbers = #tpu.dot_dimension_numbers<[1], [0], [0], [1], [0, 0, 1, 1], [], []>} : vector<34x128xbf16>, vector<128x384xbf16>, vector<34x384xf32> -> vector<34x384xf32>
    %7 = arith.addf %3, %6 : vector<34x384xf32>
    %c0_6 = arith.constant 0 : index
    %c0_7 = arith.constant 0 : index
    %8 = vector.load %arg7[%c0_6, %c0_7] : memref<34x384xf32, #tpu.memory_space<vmem>>, vector<34x384xf32>
    tpu.vector_store %arg7[%c0_6, %c0_7], %7 {strides = array<i32>} : memref<34x384xf32, #tpu.memory_space<vmem>>, vector<34x384xf32>,
    %c0_i32_8 = arith.constant 0 : i32
    %9 = arith.cmpi eq, %arg2, %c0_i32_8 : i32
    %10 = arith.extui %9 : i1 to i32
    %c0_i32_9 = arith.constant 0 : i32
    %11 = arith.cmpi ne, %10, %c0_i32_9 : i32
    scf.if %11 {
      %c0_10 = arith.constant 0 : index
      %c0_11 = arith.constant 0 : index
      %12 = vector.load %arg7[%c0_10, %c0_11] : memref<34x384xf32, #tpu.memory_space<vmem>>, vector<34x384xf32>
      %c0_12 = arith.constant 0 : index
      %c0_13 = arith.constant 0 : index
      %13 = vector.load %arg5[%c0_12, %c0_13] : memref<1x384xf32, #tpu.memory_space<vmem>>, vector<1x384xf32>
      %14 = vector.broadcast %13 : vector<1x384xf32> to vector<34x384xf32>
      %15 = arith.addf %12, %14 : vector<34x384xf32>
      %c0_14 = arith.constant 0 : index
      %c0_15 = arith.constant 0 : index
      %16 = vector.load %arg6[%c0_14, %c0_15] : memref<34x384xf32, #tpu.memory_space<vmem>>, vector<34x384xf32>
      tpu.vector_store %arg6[%c0_14, %c0_15], %15 {strides = array<i32>} : memref<34x384xf32, #tpu.memory_space<vmem>>, vector<34x384xf32>,
    } else {
    }
    return
  }
  func.func @transform_0(%arg0: i32, %arg1: i32, %arg2: i32) -> (i32, i32) {
    %c0_i32 = arith.constant 0 : i32
    return %arg0, %arg2 : i32, i32
  }
  func.func @transform_1(%arg0: i32, %arg1: i32, %arg2: i32) -> (i32, i32) {
    %c0_i32 = arith.constant 0 : i32
    return %arg2, %arg1 : i32, i32
  }
  func.func @transform_2(%arg0: i32, %arg1: i32, %arg2: i32) -> (i32, i32) {
    %c0_i32 = arith.constant 0 : i32
    %c0_i32_0 = arith.constant 0 : i32
    return %c0_i32, %arg1 : i32, i32
  }
  func.func @transform_3(%arg0: i32, %arg1: i32, %arg2: i32) -> (i32, i32) {
    %c0_i32 = arith.constant 0 : i32
    return %arg0, %arg1 : i32, i32
  }
}

module attributes {stable_mosaic.version = 11 : i64} {
  func.func @_patch_embed_kernel(%arg0: i32, %arg1: i32, %arg2: i32, %arg3: memref<1x17x48xbf16, #tpu.memory_space<vmem>>, %arg4: memref<48x128xbf16, #tpu.memory_space<vmem>>, %arg5: memref<17x128xf32, #tpu.memory_space<vmem>>, %arg6: memref<1x17x128xf32, #tpu.memory_space<vmem>>) attributes {dimension_semantics = [#tpu.dimension_semantics<parallel>, #tpu.dimension_semantics<parallel>, #tpu.dimension_semantics<parallel>], iteration_bounds = array<i64: 2, 1, 1>, scalar_prefetch = 0 : i64, scratch_operands = 0 : i64, tpu.core_type = #tpu.core_type<tc>, window_params = [{transform_indices = @transform_0, window_bounds = array<i64: 1, 17, 48>}, {transform_indices = @transform_1, window_bounds = array<i64: 48, 128>}, {transform_indices = @transform_2, window_bounds = array<i64: 17, 128>}, {transform_indices = @transform_3, window_bounds = array<i64: 1, 17, 128>}]} {
    %c0 = arith.constant 0 : index
    %c0_0 = arith.constant 0 : index
    %c0_1 = arith.constant 0 : index
    %0 = vector.load %arg3[%c0, %c0_0, %c0_1] : memref<1x17x48xbf16, #tpu.memory_space<vmem>>, vector<1x17x48xbf16>
    %1 = vector.shape_cast %0 : vector<1x17x48xbf16> to vector<17x48xbf16>
    %c0_2 = arith.constant 0 : index
    %c0_3 = arith.constant 0 : index
    %2 = vector.load %arg4[%c0_2, %c0_3] : memref<48x128xbf16, #tpu.memory_space<vmem>>, vector<48x128xbf16>
    %cst = arith.constant dense<0.000000e+00> : vector<17x128xf32>
    %3 = tpu.matmul %1, %2, %cst {dimension_numbers = #tpu.dot_dimension_numbers<[1], [0], [0], [1], [0, 0, 1, 1], [], []>} : vector<17x48xbf16>, vector<48x128xbf16>, vector<17x128xf32> -> vector<17x128xf32>
    %c0_4 = arith.constant 0 : index
    %c0_5 = arith.constant 0 : index
    %4 = vector.load %arg5[%c0_4, %c0_5] : memref<17x128xf32, #tpu.memory_space<vmem>>, vector<17x128xf32>
    %5 = arith.addf %3, %4 : vector<17x128xf32>
    %c0_6 = arith.constant 0 : index
    %c0_7 = arith.constant 0 : index
    %c0_8 = arith.constant 0 : index
    %6 = vector.load %arg6[%c0_6, %c0_7, %c0_8] : memref<1x17x128xf32, #tpu.memory_space<vmem>>, vector<1x17x128xf32>
    %7 = vector.shape_cast %6 : vector<1x17x128xf32> to vector<17x128xf32>
    %8 = vector.shape_cast %5 : vector<17x128xf32> to vector<1x17x128xf32>
    tpu.vector_store %arg6[%c0_6, %c0_7, %c0_8], %8 {strides = array<i32>} : memref<1x17x128xf32, #tpu.memory_space<vmem>>, vector<1x17x128xf32>,
    return
  }
  func.func @transform_0(%arg0: i32, %arg1: i32, %arg2: i32) -> (i32, i32, i32) {
    %c0_i32 = arith.constant 0 : i32
    %c0_i32_0 = arith.constant 0 : i32
    return %arg0, %arg1, %c0_i32 : i32, i32, i32
  }
  func.func @transform_1(%arg0: i32, %arg1: i32, %arg2: i32) -> (i32, i32) {
    %c0_i32 = arith.constant 0 : i32
    %c0_i32_0 = arith.constant 0 : i32
    return %c0_i32, %arg2 : i32, i32
  }
  func.func @transform_2(%arg0: i32, %arg1: i32, %arg2: i32) -> (i32, i32) {
    %c0_i32 = arith.constant 0 : i32
    return %arg1, %arg2 : i32, i32
  }
  func.func @transform_3(%arg0: i32, %arg1: i32, %arg2: i32) -> (i32, i32, i32) {
    %c0_i32 = arith.constant 0 : i32
    return %arg0, %arg1, %arg2 : i32, i32, i32
  }
}

module attributes {stable_mosaic.version = 11 : i64} {
  func.func @_layernorm_kernel(%arg0: i32, %arg1: memref<34x128xf32, #tpu.memory_space<vmem>>, %arg2: memref<1x128xf32, #tpu.memory_space<vmem>>, %arg3: memref<1x128xf32, #tpu.memory_space<vmem>>, %arg4: memref<34x128xf32, #tpu.memory_space<vmem>>) attributes {dimension_semantics = [#tpu.dimension_semantics<parallel>], iteration_bounds = array<i64: 1>, scalar_prefetch = 0 : i64, scratch_operands = 0 : i64, tpu.core_type = #tpu.core_type<tc>, window_params = [{transform_indices = @transform_0, window_bounds = array<i64: 34, 128>}, {pipeline_mode = #tpu.pipeline_mode<synchronous>, transform_indices = @transform_1, window_bounds = array<i64: 1, 128>}, {pipeline_mode = #tpu.pipeline_mode<synchronous>, transform_indices = @transform_2, window_bounds = array<i64: 1, 128>}, {transform_indices = @transform_3, window_bounds = array<i64: 34, 128>}]} {
    %c0 = arith.constant 0 : index
    %c0_0 = arith.constant 0 : index
    %0 = vector.load %arg1[%c0, %c0_0] : memref<34x128xf32, #tpu.memory_space<vmem>>, vector<34x128xf32>
    %cst = arith.constant dense<0.000000e+00> : vector<34xf32>
    %1 = vector.multi_reduction <add>, %0, %cst [1] : vector<34x128xf32> to vector<34xf32>
    %2 = vector.shape_cast %1 : vector<34xf32> to vector<34x1xf32>
    %cst_1 = arith.constant 1.280000e+02 : f32
    %3 = vector.broadcast %cst_1 : f32 to vector<34x1xf32>
    %4 = arith.divf %2, %3 : vector<34x1xf32>
    %5 = vector.broadcast %4 : vector<34x1xf32> to vector<34x128xf32>
    %6 = arith.subf %0, %5 : vector<34x128xf32>
    %7 = arith.mulf %6, %6 : vector<34x128xf32>
    %cst_2 = arith.constant dense<0.000000e+00> : vector<34xf32>
    %8 = vector.multi_reduction <add>, %7, %cst_2 [1] : vector<34x128xf32> to vector<34xf32>
    %9 = vector.shape_cast %8 : vector<34xf32> to vector<34x1xf32>
    %cst_3 = arith.constant 1.280000e+02 : f32
    %10 = vector.broadcast %cst_3 : f32 to vector<34x1xf32>
    %11 = arith.divf %9, %10 : vector<34x1xf32>
    %12 = vector.broadcast %4 : vector<34x1xf32> to vector<34x128xf32>
    %13 = arith.subf %0, %12 : vector<34x128xf32>
    %cst_4 = arith.constant 9.99999974E-6 : f32
    %14 = vector.broadcast %cst_4 : f32 to vector<34x1xf32>
    %15 = arith.addf %11, %14 : vector<34x1xf32>
    %16 = math.rsqrt %15 : vector<34x1xf32>
    %17 = vector.broadcast %16 : vector<34x1xf32> to vector<34x128xf32>
    %18 = arith.mulf %13, %17 : vector<34x128xf32>
    %c0_5 = arith.constant 0 : index
    %c0_6 = arith.constant 0 : index
    %19 = vector.load %arg2[%c0_5, %c0_6] : memref<1x128xf32, #tpu.memory_space<vmem>>, vector<1x128xf32>
    %20 = vector.broadcast %19 : vector<1x128xf32> to vector<34x128xf32>
    %21 = arith.mulf %18, %20 : vector<34x128xf32>
    %c0_7 = arith.constant 0 : index
    %c0_8 = arith.constant 0 : index
    %22 = vector.load %arg3[%c0_7, %c0_8] : memref<1x128xf32, #tpu.memory_space<vmem>>, vector<1x128xf32>
    %23 = vector.broadcast %22 : vector<1x128xf32> to vector<34x128xf32>
    %24 = arith.addf %21, %23 : vector<34x128xf32>
    %c0_9 = arith.constant 0 : index
    %c0_10 = arith.constant 0 : index
    %25 = vector.load %arg4[%c0_9, %c0_10] : memref<34x128xf32, #tpu.memory_space<vmem>>, vector<34x128xf32>
    tpu.vector_store %arg4[%c0_9, %c0_10], %24 {strides = array<i32>} : memref<34x128xf32, #tpu.memory_space<vmem>>, vector<34x128xf32>,
    return
  }
  func.func @transform_0(%arg0: i32) -> (i32, i32) {
    %c0_i32 = arith.constant 0 : i32
    %c0_i32_0 = arith.constant 0 : i32
    return %arg0, %c0_i32 : i32, i32
  }
  func.func @transform_1(%arg0: i32) -> (i32, i32) {
    %c0_i32 = arith.constant 0 : i32
    %c0_i32_0 = arith.constant 0 : i32
    %c0_i32_1 = arith.constant 0 : i32
    return %c0_i32, %c0_i32_0 : i32, i32
  }
  func.func @transform_2(%arg0: i32) -> (i32, i32) {
    %c0_i32 = arith.constant 0 : i32
    %c0_i32_0 = arith.constant 0 : i32
    %c0_i32_1 = arith.constant 0 : i32
    return %c0_i32, %c0_i32_0 : i32, i32
  }
  func.func @transform_3(%arg0: i32) -> (i32, i32) {
    %c0_i32 = arith.constant 0 : i32
    %c0_i32_0 = arith.constant 0 : i32
    return %arg0, %c0_i32 : i32, i32
  }
}

module attributes {stable_mosaic.version = 11 : i64} {
  func.func @_attention_kernel(%arg0: i32, %arg1: i32, %arg2: memref<1x1x17x32xbf16, #tpu.memory_space<vmem>>, %arg3: memref<1x1x32x17xbf16, #tpu.memory_space<vmem>>, %arg4: memref<1x1x17x32xbf16, #tpu.memory_space<vmem>>, %arg5: memref<1x1x17x32xf32, #tpu.memory_space<vmem>>) attributes {dimension_semantics = [#tpu.dimension_semantics<parallel>, #tpu.dimension_semantics<parallel>], iteration_bounds = array<i64: 2, 4>, scalar_prefetch = 0 : i64, scratch_operands = 0 : i64, tpu.core_type = #tpu.core_type<tc>, window_params = [{transform_indices = @transform_0, window_bounds = array<i64: 1, 1, 17, 32>}, {transform_indices = @transform_1, window_bounds = array<i64: 1, 1, 32, 17>}, {transform_indices = @transform_2, window_bounds = array<i64: 1, 1, 17, 32>}, {transform_indices = @transform_3, window_bounds = array<i64: 1, 1, 17, 32>}]} {
    %c0 = arith.constant 0 : index
    %c0_0 = arith.constant 0 : index
    %c0_1 = arith.constant 0 : index
    %c0_2 = arith.constant 0 : index
    %0 = vector.load %arg2[%c0, %c0_0, %c0_1, %c0_2] : memref<1x1x17x32xbf16, #tpu.memory_space<vmem>>, vector<1x1x17x32xbf16>
    %1 = vector.shape_cast %0 : vector<1x1x17x32xbf16> to vector<17x32xbf16>
    %c0_3 = arith.constant 0 : index
    %c0_4 = arith.constant 0 : index
    %c0_5 = arith.constant 0 : index
    %c0_6 = arith.constant 0 : index
    %2 = vector.load %arg3[%c0_3, %c0_4, %c0_5, %c0_6] : memref<1x1x32x17xbf16, #tpu.memory_space<vmem>>, vector<1x1x32x17xbf16>
    %3 = vector.shape_cast %2 : vector<1x1x32x17xbf16> to vector<32x17xbf16>
    %cst = arith.constant dense<0.000000e+00> : vector<17x17xf32>
    %4 = tpu.matmul %1, %3, %cst {dimension_numbers = #tpu.dot_dimension_numbers<[1], [0], [0], [1], [0, 0, 1, 1], [], []>} : vector<17x32xbf16>, vector<32x17xbf16>, vector<17x17xf32> -> vector<17x17xf32>
    %cst_7 = arith.constant 0.176776692 : f32
    %5 = vector.broadcast %cst_7 : f32 to vector<17x17xf32>
    %6 = arith.mulf %4, %5 : vector<17x17xf32>
    %cst_8 = arith.constant dense<0xFF800000> : vector<17xf32>
    %7 = vector.multi_reduction <maximumf>, %6, %cst_8 [1] : vector<17x17xf32> to vector<17xf32>
    %8 = vector.shape_cast %7 : vector<17xf32> to vector<17x1xf32>
    %9 = vector.broadcast %8 : vector<17x1xf32> to vector<17x17xf32>
    %10 = arith.subf %6, %9 : vector<17x17xf32>
    %11 = math.exp %10 : vector<17x17xf32>
    %cst_9 = arith.constant dense<0.000000e+00> : vector<17xf32>
    %12 = vector.multi_reduction <add>, %11, %cst_9 [1] : vector<17x17xf32> to vector<17xf32>
    %13 = vector.shape_cast %12 : vector<17xf32> to vector<17x1xf32>
    %14 = vector.broadcast %13 : vector<17x1xf32> to vector<17x17xf32>
    %15 = arith.divf %11, %14 : vector<17x17xf32>
    %16 = arith.truncf %15 : vector<17x17xf32> to vector<17x17xbf16>
    %c0_10 = arith.constant 0 : index
    %c0_11 = arith.constant 0 : index
    %c0_12 = arith.constant 0 : index
    %c0_13 = arith.constant 0 : index
    %17 = vector.load %arg4[%c0_10, %c0_11, %c0_12, %c0_13] : memref<1x1x17x32xbf16, #tpu.memory_space<vmem>>, vector<1x1x17x32xbf16>
    %18 = vector.shape_cast %17 : vector<1x1x17x32xbf16> to vector<17x32xbf16>
    %cst_14 = arith.constant dense<0.000000e+00> : vector<17x32xf32>
    %19 = tpu.matmul %16, %18, %cst_14 {dimension_numbers = #tpu.dot_dimension_numbers<[1], [0], [0], [1], [0, 0, 1, 1], [], []>} : vector<17x17xbf16>, vector<17x32xbf16>, vector<17x32xf32> -> vector<17x32xf32>
    %c0_15 = arith.constant 0 : index
    %c0_16 = arith.constant 0 : index
    %c0_17 = arith.constant 0 : index
    %c0_18 = arith.constant 0 : index
    %20 = vector.load %arg5[%c0_15, %c0_16, %c0_17, %c0_18] : memref<1x1x17x32xf32, #tpu.memory_space<vmem>>, vector<1x1x17x32xf32>
    %21 = vector.shape_cast %20 : vector<1x1x17x32xf32> to vector<17x32xf32>
    %22 = vector.shape_cast %19 : vector<17x32xf32> to vector<1x1x17x32xf32>
    tpu.vector_store %arg5[%c0_15, %c0_16, %c0_17, %c0_18], %22 {strides = array<i32>} : memref<1x1x17x32xf32, #tpu.memory_space<vmem>>, vector<1x1x17x32xf32>,
    return
  }
  func.func @transform_0(%arg0: i32, %arg1: i32) -> (i32, i32, i32, i32) {
    %c0_i32 = arith.constant 0 : i32
    %c0_i32_0 = arith.constant 0 : i32
    %c0_i32_1 = arith.constant 0 : i32
    return %arg0, %arg1, %c0_i32, %c0_i32_0 : i32, i32, i32, i32
  }
  func.func @transform_1(%arg0: i32, %arg1: i32) -> (i32, i32, i32, i32) {
    %c0_i32 = arith.constant 0 : i32
    %c0_i32_0 = arith.constant 0 : i32
    %c0_i32_1 = arith.constant 0 : i32
    return %arg0, %arg1, %c0_i32, %c0_i32_0 : i32, i32, i32, i32
  }
  func.func @transform_2(%arg0: i32, %arg1: i32) -> (i32, i32, i32, i32) {
    %c0_i32 = arith.constant 0 : i32
    %c0_i32_0 = arith.constant 0 : i32
    %c0_i32_1 = arith.constant 0 : i32
    return %arg0, %arg1, %c0_i32, %c0_i32_0 : i32, i32, i32, i32
  }
  func.func @transform_3(%arg0: i32, %arg1: i32) -> (i32, i32, i32, i32) {
    %c0_i32 = arith.constant 0 : i32
    %c0_i32_0 = arith.constant 0 : i32
    %c0_i32_1 = arith.constant 0 : i32
    return %arg0, %arg1, %c0_i32, %c0_i32_0 : i32, i32, i32, i32
  }
}

module attributes {stable_mosaic.version = 11 : i64} {
  func.func @_linear_res_kernel(%arg0: i32, %arg1: i32, %arg2: i32, %arg3: memref<34x128xbf16, #tpu.memory_space<vmem>>, %arg4: memref<128x128xbf16, #tpu.memory_space<vmem>>, %arg5: memref<1x128xf32, #tpu.memory_space<vmem>>, %arg6: memref<34x128xf32, #tpu.memory_space<vmem>>, %arg7: memref<34x128xf32, #tpu.memory_space<vmem>>, %arg8: memref<34x128xf32, #tpu.memory_space<vmem>>) attributes {dimension_semantics = [#tpu.dimension_semantics<parallel>, #tpu.dimension_semantics<parallel>, #tpu.dimension_semantics<arbitrary>], iteration_bounds = array<i64: 1, 1, 1>, scalar_prefetch = 0 : i64, scratch_operands = 1 : i64, tpu.core_type = #tpu.core_type<tc>, window_params = [{transform_indices = @transform_0, window_bounds = array<i64: 34, 128>}, {transform_indices = @transform_1, window_bounds = array<i64: 128, 128>}, {transform_indices = @transform_2, window_bounds = array<i64: 1, 128>}, {transform_indices = @transform_3, window_bounds = array<i64: 34, 128>}, {transform_indices = @transform_4, window_bounds = array<i64: 34, 128>}]} {
    %c0_i32 = arith.constant 0 : i32
    %0 = arith.cmpi eq, %arg2, %c0_i32 : i32
    %1 = arith.extui %0 : i1 to i32
    %c0_i32_0 = arith.constant 0 : i32
    %2 = arith.cmpi ne, %1, %c0_i32_0 : i32
    scf.if %2 {
      %cst_10 = arith.constant 0.000000e+00 : f32
      %12 = vector.broadcast %cst_10 : f32 to vector<34x128xf32>
      %c0_11 = arith.constant 0 : index
      %c0_12 = arith.constant 0 : index
      %13 = vector.load %arg8[%c0_11, %c0_12] : memref<34x128xf32, #tpu.memory_space<vmem>>, vector<34x128xf32>
      tpu.vector_store %arg8[%c0_11, %c0_12], %12 {strides = array<i32>} : memref<34x128xf32, #tpu.memory_space<vmem>>, vector<34x128xf32>,
    } else {
    }
    %c0 = arith.constant 0 : index
    %c0_1 = arith.constant 0 : index
    %3 = vector.load %arg8[%c0, %c0_1] : memref<34x128xf32, #tpu.memory_space<vmem>>, vector<34x128xf32>
    %c0_2 = arith.constant 0 : index
    %c0_3 = arith.constant 0 : index
    %4 = vector.load %arg3[%c0_2, %c0_3] : memref<34x128xbf16, #tpu.memory_space<vmem>>, vector<34x128xbf16>
    %c0_4 = arith.constant 0 : index
    %c0_5 = arith.constant 0 : index
    %5 = vector.load %arg4[%c0_4, %c0_5] : memref<128x128xbf16, #tpu.memory_space<vmem>>, vector<128x128xbf16>
    %cst = arith.constant dense<0.000000e+00> : vector<34x128xf32>
    %6 = tpu.matmul %4, %5, %cst {dimension_numbers = #tpu.dot_dimension_numbers<[1], [0], [0], [1], [0, 0, 1, 1], [], []>} : vector<34x128xbf16>, vector<128x128xbf16>, vector<34x128xf32> -> vector<34x128xf32>
    %7 = arith.addf %3, %6 : vector<34x128xf32>
    %c0_6 = arith.constant 0 : index
    %c0_7 = arith.constant 0 : index
    %8 = vector.load %arg8[%c0_6, %c0_7] : memref<34x128xf32, #tpu.memory_space<vmem>>, vector<34x128xf32>
    tpu.vector_store %arg8[%c0_6, %c0_7], %7 {strides = array<i32>} : memref<34x128xf32, #tpu.memory_space<vmem>>, vector<34x128xf32>,
    %c0_i32_8 = arith.constant 0 : i32
    %9 = arith.cmpi eq, %arg2, %c0_i32_8 : i32
    %10 = arith.extui %9 : i1 to i32
    %c0_i32_9 = arith.constant 0 : i32
    %11 = arith.cmpi ne, %10, %c0_i32_9 : i32
    scf.if %11 {
      %c0_10 = arith.constant 0 : index
      %c0_11 = arith.constant 0 : index
      %12 = vector.load %arg8[%c0_10, %c0_11] : memref<34x128xf32, #tpu.memory_space<vmem>>, vector<34x128xf32>
      %c0_12 = arith.constant 0 : index
      %c0_13 = arith.constant 0 : index
      %13 = vector.load %arg5[%c0_12, %c0_13] : memref<1x128xf32, #tpu.memory_space<vmem>>, vector<1x128xf32>
      %14 = vector.broadcast %13 : vector<1x128xf32> to vector<34x128xf32>
      %15 = arith.addf %12, %14 : vector<34x128xf32>
      %c0_14 = arith.constant 0 : index
      %c0_15 = arith.constant 0 : index
      %16 = vector.load %arg6[%c0_14, %c0_15] : memref<34x128xf32, #tpu.memory_space<vmem>>, vector<34x128xf32>
      %17 = arith.addf %15, %16 : vector<34x128xf32>
      %c0_16 = arith.constant 0 : index
      %c0_17 = arith.constant 0 : index
      %18 = vector.load %arg7[%c0_16, %c0_17] : memref<34x128xf32, #tpu.memory_space<vmem>>, vector<34x128xf32>
      tpu.vector_store %arg7[%c0_16, %c0_17], %17 {strides = array<i32>} : memref<34x128xf32, #tpu.memory_space<vmem>>, vector<34x128xf32>,
    } else {
    }
    return
  }
  func.func @transform_0(%arg0: i32, %arg1: i32, %arg2: i32) -> (i32, i32) {
    %c0_i32 = arith.constant 0 : i32
    return %arg0, %arg2 : i32, i32
  }
  func.func @transform_1(%arg0: i32, %arg1: i32, %arg2: i32) -> (i32, i32) {
    %c0_i32 = arith.constant 0 : i32
    return %arg2, %arg1 : i32, i32
  }
  func.func @transform_2(%arg0: i32, %arg1: i32, %arg2: i32) -> (i32, i32) {
    %c0_i32 = arith.constant 0 : i32
    %c0_i32_0 = arith.constant 0 : i32
    return %c0_i32, %arg1 : i32, i32
  }
  func.func @transform_3(%arg0: i32, %arg1: i32, %arg2: i32) -> (i32, i32) {
    %c0_i32 = arith.constant 0 : i32
    return %arg0, %arg1 : i32, i32
  }
  func.func @transform_4(%arg0: i32, %arg1: i32, %arg2: i32) -> (i32, i32) {
    %c0_i32 = arith.constant 0 : i32
    return %arg0, %arg1 : i32, i32
  }
}

module attributes {stable_mosaic.version = 11 : i64} {
  func.func @_linear_kernel(%arg0: i32, %arg1: i32, %arg2: i32, %arg3: memref<34x128xbf16, #tpu.memory_space<vmem>>, %arg4: memref<128x256xbf16, #tpu.memory_space<vmem>>, %arg5: memref<1x256xf32, #tpu.memory_space<vmem>>, %arg6: memref<34x256xf32, #tpu.memory_space<vmem>>, %arg7: memref<34x256xf32, #tpu.memory_space<vmem>>) attributes {dimension_semantics = [#tpu.dimension_semantics<parallel>, #tpu.dimension_semantics<parallel>, #tpu.dimension_semantics<arbitrary>], iteration_bounds = array<i64: 1, 1, 1>, scalar_prefetch = 0 : i64, scratch_operands = 1 : i64, tpu.core_type = #tpu.core_type<tc>, window_params = [{transform_indices = @transform_0, window_bounds = array<i64: 34, 128>}, {transform_indices = @transform_1, window_bounds = array<i64: 128, 256>}, {transform_indices = @transform_2, window_bounds = array<i64: 1, 256>}, {transform_indices = @transform_3, window_bounds = array<i64: 34, 256>}]} {
    %c0_i32 = arith.constant 0 : i32
    %0 = arith.cmpi eq, %arg2, %c0_i32 : i32
    %1 = arith.extui %0 : i1 to i32
    %c0_i32_0 = arith.constant 0 : i32
    %2 = arith.cmpi ne, %1, %c0_i32_0 : i32
    scf.if %2 {
      %cst_10 = arith.constant 0.000000e+00 : f32
      %12 = vector.broadcast %cst_10 : f32 to vector<34x256xf32>
      %c0_11 = arith.constant 0 : index
      %c0_12 = arith.constant 0 : index
      %13 = vector.load %arg7[%c0_11, %c0_12] : memref<34x256xf32, #tpu.memory_space<vmem>>, vector<34x256xf32>
      tpu.vector_store %arg7[%c0_11, %c0_12], %12 {strides = array<i32>} : memref<34x256xf32, #tpu.memory_space<vmem>>, vector<34x256xf32>,
    } else {
    }
    %c0 = arith.constant 0 : index
    %c0_1 = arith.constant 0 : index
    %3 = vector.load %arg7[%c0, %c0_1] : memref<34x256xf32, #tpu.memory_space<vmem>>, vector<34x256xf32>
    %c0_2 = arith.constant 0 : index
    %c0_3 = arith.constant 0 : index
    %4 = vector.load %arg3[%c0_2, %c0_3] : memref<34x128xbf16, #tpu.memory_space<vmem>>, vector<34x128xbf16>
    %c0_4 = arith.constant 0 : index
    %c0_5 = arith.constant 0 : index
    %5 = vector.load %arg4[%c0_4, %c0_5] : memref<128x256xbf16, #tpu.memory_space<vmem>>, vector<128x256xbf16>
    %cst = arith.constant dense<0.000000e+00> : vector<34x256xf32>
    %6 = tpu.matmul %4, %5, %cst {dimension_numbers = #tpu.dot_dimension_numbers<[1], [0], [0], [1], [0, 0, 1, 1], [], []>} : vector<34x128xbf16>, vector<128x256xbf16>, vector<34x256xf32> -> vector<34x256xf32>
    %7 = arith.addf %3, %6 : vector<34x256xf32>
    %c0_6 = arith.constant 0 : index
    %c0_7 = arith.constant 0 : index
    %8 = vector.load %arg7[%c0_6, %c0_7] : memref<34x256xf32, #tpu.memory_space<vmem>>, vector<34x256xf32>
    tpu.vector_store %arg7[%c0_6, %c0_7], %7 {strides = array<i32>} : memref<34x256xf32, #tpu.memory_space<vmem>>, vector<34x256xf32>,
    %c0_i32_8 = arith.constant 0 : i32
    %9 = arith.cmpi eq, %arg2, %c0_i32_8 : i32
    %10 = arith.extui %9 : i1 to i32
    %c0_i32_9 = arith.constant 0 : i32
    %11 = arith.cmpi ne, %10, %c0_i32_9 : i32
    scf.if %11 {
      %c0_10 = arith.constant 0 : index
      %c0_11 = arith.constant 0 : index
      %12 = vector.load %arg7[%c0_10, %c0_11] : memref<34x256xf32, #tpu.memory_space<vmem>>, vector<34x256xf32>
      %c0_12 = arith.constant 0 : index
      %c0_13 = arith.constant 0 : index
      %13 = vector.load %arg5[%c0_12, %c0_13] : memref<1x256xf32, #tpu.memory_space<vmem>>, vector<1x256xf32>
      %14 = vector.broadcast %13 : vector<1x256xf32> to vector<34x256xf32>
      %15 = arith.addf %12, %14 : vector<34x256xf32>
      %cst_14 = arith.constant 5.000000e-01 : f32
      %16 = vector.broadcast %cst_14 : f32 to vector<34x256xf32>
      %17 = arith.mulf %16, %15 : vector<34x256xf32>
      %cst_15 = arith.constant 4.471500e-02 : f32
      %18 = vector.broadcast %cst_15 : f32 to vector<34x256xf32>
      %19 = arith.mulf %18, %15 : vector<34x256xf32>
      %20 = arith.mulf %19, %15 : vector<34x256xf32>
      %21 = arith.mulf %20, %15 : vector<34x256xf32>
      %22 = arith.addf %15, %21 : vector<34x256xf32>
      %cst_16 = arith.constant 0.797884583 : f32
      %23 = vector.broadcast %cst_16 : f32 to vector<34x256xf32>
      %24 = arith.mulf %23, %22 : vector<34x256xf32>
      %25 = math.tanh %24 : vector<34x256xf32>
      %cst_17 = arith.constant 1.000000e+00 : f32
      %26 = vector.broadcast %cst_17 : f32 to vector<34x256xf32>
      %27 = arith.addf %26, %25 : vector<34x256xf32>
      %28 = arith.mulf %17, %27 : vector<34x256xf32>
      %c0_18 = arith.constant 0 : index
      %c0_19 = arith.constant 0 : index
      %29 = vector.load %arg6[%c0_18, %c0_19] : memref<34x256xf32, #tpu.memory_space<vmem>>, vector<34x256xf32>
      tpu.vector_store %arg6[%c0_18, %c0_19], %28 {strides = array<i32>} : memref<34x256xf32, #tpu.memory_space<vmem>>, vector<34x256xf32>,
    } else {
    }
    return
  }
  func.func @transform_0(%arg0: i32, %arg1: i32, %arg2: i32) -> (i32, i32) {
    %c0_i32 = arith.constant 0 : i32
    return %arg0, %arg2 : i32, i32
  }
  func.func @transform_1(%arg0: i32, %arg1: i32, %arg2: i32) -> (i32, i32) {
    %c0_i32 = arith.constant 0 : i32
    return %arg2, %arg1 : i32, i32
  }
  func.func @transform_2(%arg0: i32, %arg1: i32, %arg2: i32) -> (i32, i32) {
    %c0_i32 = arith.constant 0 : i32
    %c0_i32_0 = arith.constant 0 : i32
    return %c0_i32, %arg1 : i32, i32
  }
  func.func @transform_3(%arg0: i32, %arg1: i32, %arg2: i32) -> (i32, i32) {
    %c0_i32 = arith.constant 0 : i32
    return %arg0, %arg1 : i32, i32
  }
}

module attributes {stable_mosaic.version = 11 : i64} {
  func.func @_layernorm_kernel(%arg0: i32, %arg1: memref<2x128xf32, #tpu.memory_space<vmem>>, %arg2: memref<1x128xf32, #tpu.memory_space<vmem>>, %arg3: memref<1x128xf32, #tpu.memory_space<vmem>>, %arg4: memref<2x128xf32, #tpu.memory_space<vmem>>) attributes {dimension_semantics = [#tpu.dimension_semantics<parallel>], iteration_bounds = array<i64: 1>, scalar_prefetch = 0 : i64, scratch_operands = 0 : i64, tpu.core_type = #tpu.core_type<tc>, window_params = [{transform_indices = @transform_0, window_bounds = array<i64: 2, 128>}, {pipeline_mode = #tpu.pipeline_mode<synchronous>, transform_indices = @transform_1, window_bounds = array<i64: 1, 128>}, {pipeline_mode = #tpu.pipeline_mode<synchronous>, transform_indices = @transform_2, window_bounds = array<i64: 1, 128>}, {transform_indices = @transform_3, window_bounds = array<i64: 2, 128>}]} {
    %c0 = arith.constant 0 : index
    %c0_0 = arith.constant 0 : index
    %0 = vector.load %arg1[%c0, %c0_0] : memref<2x128xf32, #tpu.memory_space<vmem>>, vector<2x128xf32>
    %cst = arith.constant dense<0.000000e+00> : vector<2xf32>
    %1 = vector.multi_reduction <add>, %0, %cst [1] : vector<2x128xf32> to vector<2xf32>
    %2 = vector.shape_cast %1 : vector<2xf32> to vector<2x1xf32>
    %cst_1 = arith.constant 1.280000e+02 : f32
    %3 = vector.broadcast %cst_1 : f32 to vector<2x1xf32>
    %4 = arith.divf %2, %3 : vector<2x1xf32>
    %5 = vector.broadcast %4 : vector<2x1xf32> to vector<2x128xf32>
    %6 = arith.subf %0, %5 : vector<2x128xf32>
    %7 = arith.mulf %6, %6 : vector<2x128xf32>
    %cst_2 = arith.constant dense<0.000000e+00> : vector<2xf32>
    %8 = vector.multi_reduction <add>, %7, %cst_2 [1] : vector<2x128xf32> to vector<2xf32>
    %9 = vector.shape_cast %8 : vector<2xf32> to vector<2x1xf32>
    %cst_3 = arith.constant 1.280000e+02 : f32
    %10 = vector.broadcast %cst_3 : f32 to vector<2x1xf32>
    %11 = arith.divf %9, %10 : vector<2x1xf32>
    %12 = vector.broadcast %4 : vector<2x1xf32> to vector<2x128xf32>
    %13 = arith.subf %0, %12 : vector<2x128xf32>
    %cst_4 = arith.constant 9.99999974E-6 : f32
    %14 = vector.broadcast %cst_4 : f32 to vector<2x1xf32>
    %15 = arith.addf %11, %14 : vector<2x1xf32>
    %16 = math.rsqrt %15 : vector<2x1xf32>
    %17 = vector.broadcast %16 : vector<2x1xf32> to vector<2x128xf32>
    %18 = arith.mulf %13, %17 : vector<2x128xf32>
    %c0_5 = arith.constant 0 : index
    %c0_6 = arith.constant 0 : index
    %19 = vector.load %arg2[%c0_5, %c0_6] : memref<1x128xf32, #tpu.memory_space<vmem>>, vector<1x128xf32>
    %20 = vector.broadcast %19 : vector<1x128xf32> to vector<2x128xf32>
    %21 = arith.mulf %18, %20 : vector<2x128xf32>
    %c0_7 = arith.constant 0 : index
    %c0_8 = arith.constant 0 : index
    %22 = vector.load %arg3[%c0_7, %c0_8] : memref<1x128xf32, #tpu.memory_space<vmem>>, vector<1x128xf32>
    %23 = vector.broadcast %22 : vector<1x128xf32> to vector<2x128xf32>
    %24 = arith.addf %21, %23 : vector<2x128xf32>
    %c0_9 = arith.constant 0 : index
    %c0_10 = arith.constant 0 : index
    %25 = vector.load %arg4[%c0_9, %c0_10] : memref<2x128xf32, #tpu.memory_space<vmem>>, vector<2x128xf32>
    tpu.vector_store %arg4[%c0_9, %c0_10], %24 {strides = array<i32>} : memref<2x128xf32, #tpu.memory_space<vmem>>, vector<2x128xf32>,
    return
  }
  func.func @transform_0(%arg0: i32) -> (i32, i32) {
    %c0_i32 = arith.constant 0 : i32
    %c0_i32_0 = arith.constant 0 : i32
    return %arg0, %c0_i32 : i32, i32
  }
  func.func @transform_1(%arg0: i32) -> (i32, i32) {
    %c0_i32 = arith.constant 0 : i32
    %c0_i32_0 = arith.constant 0 : i32
    %c0_i32_1 = arith.constant 0 : i32
    return %c0_i32, %c0_i32_0 : i32, i32
  }
  func.func @transform_2(%arg0: i32) -> (i32, i32) {
    %c0_i32 = arith.constant 0 : i32
    %c0_i32_0 = arith.constant 0 : i32
    %c0_i32_1 = arith.constant 0 : i32
    return %c0_i32, %c0_i32_0 : i32, i32
  }
  func.func @transform_3(%arg0: i32) -> (i32, i32) {
    %c0_i32 = arith.constant 0 : i32
    %c0_i32_0 = arith.constant 0 : i32
    return %arg0, %c0_i32 : i32, i32
  }
}

module attributes {stable_mosaic.version = 11 : i64} {
  func.func @_linear_res_kernel(%arg0: i32, %arg1: i32, %arg2: i32, %arg3: memref<34x256xbf16, #tpu.memory_space<vmem>>, %arg4: memref<256x128xbf16, #tpu.memory_space<vmem>>, %arg5: memref<1x128xf32, #tpu.memory_space<vmem>>, %arg6: memref<34x128xf32, #tpu.memory_space<vmem>>, %arg7: memref<34x128xf32, #tpu.memory_space<vmem>>, %arg8: memref<34x128xf32, #tpu.memory_space<vmem>>) attributes {dimension_semantics = [#tpu.dimension_semantics<parallel>, #tpu.dimension_semantics<parallel>, #tpu.dimension_semantics<arbitrary>], iteration_bounds = array<i64: 1, 1, 1>, scalar_prefetch = 0 : i64, scratch_operands = 1 : i64, tpu.core_type = #tpu.core_type<tc>, window_params = [{transform_indices = @transform_0, window_bounds = array<i64: 34, 256>}, {transform_indices = @transform_1, window_bounds = array<i64: 256, 128>}, {transform_indices = @transform_2, window_bounds = array<i64: 1, 128>}, {transform_indices = @transform_3, window_bounds = array<i64: 34, 128>}, {transform_indices = @transform_4, window_bounds = array<i64: 34, 128>}]} {
    %c0_i32 = arith.constant 0 : i32
    %0 = arith.cmpi eq, %arg2, %c0_i32 : i32
    %1 = arith.extui %0 : i1 to i32
    %c0_i32_0 = arith.constant 0 : i32
    %2 = arith.cmpi ne, %1, %c0_i32_0 : i32
    scf.if %2 {
      %cst_10 = arith.constant 0.000000e+00 : f32
      %12 = vector.broadcast %cst_10 : f32 to vector<34x128xf32>
      %c0_11 = arith.constant 0 : index
      %c0_12 = arith.constant 0 : index
      %13 = vector.load %arg8[%c0_11, %c0_12] : memref<34x128xf32, #tpu.memory_space<vmem>>, vector<34x128xf32>
      tpu.vector_store %arg8[%c0_11, %c0_12], %12 {strides = array<i32>} : memref<34x128xf32, #tpu.memory_space<vmem>>, vector<34x128xf32>,
    } else {
    }
    %c0 = arith.constant 0 : index
    %c0_1 = arith.constant 0 : index
    %3 = vector.load %arg8[%c0, %c0_1] : memref<34x128xf32, #tpu.memory_space<vmem>>, vector<34x128xf32>
    %c0_2 = arith.constant 0 : index
    %c0_3 = arith.constant 0 : index
    %4 = vector.load %arg3[%c0_2, %c0_3] : memref<34x256xbf16, #tpu.memory_space<vmem>>, vector<34x256xbf16>
    %c0_4 = arith.constant 0 : index
    %c0_5 = arith.constant 0 : index
    %5 = vector.load %arg4[%c0_4, %c0_5] : memref<256x128xbf16, #tpu.memory_space<vmem>>, vector<256x128xbf16>
    %cst = arith.constant dense<0.000000e+00> : vector<34x128xf32>
    %6 = tpu.matmul %4, %5, %cst {dimension_numbers = #tpu.dot_dimension_numbers<[1], [0], [0], [1], [0, 0, 1, 1], [], []>} : vector<34x256xbf16>, vector<256x128xbf16>, vector<34x128xf32> -> vector<34x128xf32>
    %7 = arith.addf %3, %6 : vector<34x128xf32>
    %c0_6 = arith.constant 0 : index
    %c0_7 = arith.constant 0 : index
    %8 = vector.load %arg8[%c0_6, %c0_7] : memref<34x128xf32, #tpu.memory_space<vmem>>, vector<34x128xf32>
    tpu.vector_store %arg8[%c0_6, %c0_7], %7 {strides = array<i32>} : memref<34x128xf32, #tpu.memory_space<vmem>>, vector<34x128xf32>,
    %c0_i32_8 = arith.constant 0 : i32
    %9 = arith.cmpi eq, %arg2, %c0_i32_8 : i32
    %10 = arith.extui %9 : i1 to i32
    %c0_i32_9 = arith.constant 0 : i32
    %11 = arith.cmpi ne, %10, %c0_i32_9 : i32
    scf.if %11 {
      %c0_10 = arith.constant 0 : index
      %c0_11 = arith.constant 0 : index
      %12 = vector.load %arg8[%c0_10, %c0_11] : memref<34x128xf32, #tpu.memory_space<vmem>>, vector<34x128xf32>
      %c0_12 = arith.constant 0 : index
      %c0_13 = arith.constant 0 : index
      %13 = vector.load %arg5[%c0_12, %c0_13] : memref<1x128xf32, #tpu.memory_space<vmem>>, vector<1x128xf32>
      %14 = vector.broadcast %13 : vector<1x128xf32> to vector<34x128xf32>
      %15 = arith.addf %12, %14 : vector<34x128xf32>
      %c0_14 = arith.constant 0 : index
      %c0_15 = arith.constant 0 : index
      %16 = vector.load %arg6[%c0_14, %c0_15] : memref<34x128xf32, #tpu.memory_space<vmem>>, vector<34x128xf32>
      %17 = arith.addf %15, %16 : vector<34x128xf32>
      %c0_16 = arith.constant 0 : index
      %c0_17 = arith.constant 0 : index
      %18 = vector.load %arg7[%c0_16, %c0_17] : memref<34x128xf32, #tpu.memory_space<vmem>>, vector<34x128xf32>
      tpu.vector_store %arg7[%c0_16, %c0_17], %17 {strides = array<i32>} : memref<34x128xf32, #tpu.memory_space<vmem>>, vector<34x128xf32>,
    } else {
    }
    return
  }
  func.func @transform_0(%arg0: i32, %arg1: i32, %arg2: i32) -> (i32, i32) {
    %c0_i32 = arith.constant 0 : i32
    return %arg0, %arg2 : i32, i32
  }
  func.func @transform_1(%arg0: i32, %arg1: i32, %arg2: i32) -> (i32, i32) {
    %c0_i32 = arith.constant 0 : i32
    return %arg2, %arg1 : i32, i32
  }
  func.func @transform_2(%arg0: i32, %arg1: i32, %arg2: i32) -> (i32, i32) {
    %c0_i32 = arith.constant 0 : i32
    %c0_i32_0 = arith.constant 0 : i32
    return %c0_i32, %arg1 : i32, i32
  }
  func.func @transform_3(%arg0: i32, %arg1: i32, %arg2: i32) -> (i32, i32) {
    %c0_i32 = arith.constant 0 : i32
    return %arg0, %arg1 : i32, i32
  }
  func.func @transform_4(%arg0: i32, %arg1: i32, %arg2: i32) -> (i32, i32) {
    %c0_i32 = arith.constant 0 : i32
    return %arg0, %arg1 : i32, i32
  }
}

module attributes {stable_mosaic.version = 11 : i64} {
  func.func @_linear_kernel(%arg0: i32, %arg1: i32, %arg2: i32, %arg3: memref<2x128xbf16, #tpu.memory_space<vmem>>, %arg4: memref<128x8xbf16, #tpu.memory_space<vmem>>, %arg5: memref<1x8xf32, #tpu.memory_space<vmem>>, %arg6: memref<2x8xf32, #tpu.memory_space<vmem>>, %arg7: memref<2x8xf32, #tpu.memory_space<vmem>>) attributes {dimension_semantics = [#tpu.dimension_semantics<parallel>, #tpu.dimension_semantics<parallel>, #tpu.dimension_semantics<arbitrary>], iteration_bounds = array<i64: 1, 1, 1>, scalar_prefetch = 0 : i64, scratch_operands = 1 : i64, tpu.core_type = #tpu.core_type<tc>, window_params = [{transform_indices = @transform_0, window_bounds = array<i64: 2, 128>}, {transform_indices = @transform_1, window_bounds = array<i64: 128, 8>}, {transform_indices = @transform_2, window_bounds = array<i64: 1, 8>}, {transform_indices = @transform_3, window_bounds = array<i64: 2, 8>}]} {
    %c0_i32 = arith.constant 0 : i32
    %0 = arith.cmpi eq, %arg2, %c0_i32 : i32
    %1 = arith.extui %0 : i1 to i32
    %c0_i32_0 = arith.constant 0 : i32
    %2 = arith.cmpi ne, %1, %c0_i32_0 : i32
    scf.if %2 {
      %cst_10 = arith.constant 0.000000e+00 : f32
      %12 = vector.broadcast %cst_10 : f32 to vector<2x8xf32>
      %c0_11 = arith.constant 0 : index
      %c0_12 = arith.constant 0 : index
      %13 = vector.load %arg7[%c0_11, %c0_12] : memref<2x8xf32, #tpu.memory_space<vmem>>, vector<2x8xf32>
      tpu.vector_store %arg7[%c0_11, %c0_12], %12 {strides = array<i32>} : memref<2x8xf32, #tpu.memory_space<vmem>>, vector<2x8xf32>,
    } else {
    }
    %c0 = arith.constant 0 : index
    %c0_1 = arith.constant 0 : index
    %3 = vector.load %arg7[%c0, %c0_1] : memref<2x8xf32, #tpu.memory_space<vmem>>, vector<2x8xf32>
    %c0_2 = arith.constant 0 : index
    %c0_3 = arith.constant 0 : index
    %4 = vector.load %arg3[%c0_2, %c0_3] : memref<2x128xbf16, #tpu.memory_space<vmem>>, vector<2x128xbf16>
    %c0_4 = arith.constant 0 : index
    %c0_5 = arith.constant 0 : index
    %5 = vector.load %arg4[%c0_4, %c0_5] : memref<128x8xbf16, #tpu.memory_space<vmem>>, vector<128x8xbf16>
    %cst = arith.constant dense<0.000000e+00> : vector<2x8xf32>
    %6 = tpu.matmul %4, %5, %cst {dimension_numbers = #tpu.dot_dimension_numbers<[1], [0], [0], [1], [0, 0, 1, 1], [], []>} : vector<2x128xbf16>, vector<128x8xbf16>, vector<2x8xf32> -> vector<2x8xf32>
    %7 = arith.addf %3, %6 : vector<2x8xf32>
    %c0_6 = arith.constant 0 : index
    %c0_7 = arith.constant 0 : index
    %8 = vector.load %arg7[%c0_6, %c0_7] : memref<2x8xf32, #tpu.memory_space<vmem>>, vector<2x8xf32>
    tpu.vector_store %arg7[%c0_6, %c0_7], %7 {strides = array<i32>} : memref<2x8xf32, #tpu.memory_space<vmem>>, vector<2x8xf32>,
    %c0_i32_8 = arith.constant 0 : i32
    %9 = arith.cmpi eq, %arg2, %c0_i32_8 : i32
    %10 = arith.extui %9 : i1 to i32
    %c0_i32_9 = arith.constant 0 : i32
    %11 = arith.cmpi ne, %10, %c0_i32_9 : i32
    scf.if %11 {
      %c0_10 = arith.constant 0 : index
      %c0_11 = arith.constant 0 : index
      %12 = vector.load %arg7[%c0_10, %c0_11] : memref<2x8xf32, #tpu.memory_space<vmem>>, vector<2x8xf32>
      %c0_12 = arith.constant 0 : index
      %c0_13 = arith.constant 0 : index
      %13 = vector.load %arg5[%c0_12, %c0_13] : memref<1x8xf32, #tpu.memory_space<vmem>>, vector<1x8xf32>
      %14 = vector.broadcast %13 : vector<1x8xf32> to vector<2x8xf32>
      %15 = arith.addf %12, %14 : vector<2x8xf32>
      %c0_14 = arith.constant 0 : index
      %c0_15 = arith.constant 0 : index
      %16 = vector.load %arg6[%c0_14, %c0_15] : memref<2x8xf32, #tpu.memory_space<vmem>>, vector<2x8xf32>
      tpu.vector_store %arg6[%c0_14, %c0_15], %15 {strides = array<i32>} : memref<2x8xf32, #tpu.memory_space<vmem>>, vector<2x8xf32>,
    } else {
    }
    return
  }
  func.func @transform_0(%arg0: i32, %arg1: i32, %arg2: i32) -> (i32, i32) {
    %c0_i32 = arith.constant 0 : i32
    return %arg0, %arg2 : i32, i32
  }
  func.func @transform_1(%arg0: i32, %arg1: i32, %arg2: i32) -> (i32, i32) {
    %c0_i32 = arith.constant 0 : i32
    return %arg2, %arg1 : i32, i32
  }
  func.func @transform_2(%arg0: i32, %arg1: i32, %arg2: i32) -> (i32, i32) {
    %c0_i32 = arith.constant 0 : i32
    %c0_i32_0 = arith.constant 0 : i32
    return %c0_i32, %arg1 : i32, i32
  }
  func.func @transform_3(%arg0: i32, %arg1: i32, %arg2: i32) -> (i32, i32) {
    %c0_i32 = arith.constant 0 : i32
    return %arg0, %arg1 : i32, i32
  }
}

</mosaic_0001>

<llo_original>
// kernel: vit_forward.34
$region0: #{vit_forward.34}
  #allocation0 [shape = 'u32[]', space=smem, size = 0x4, offset = 0x4, fixed_abs, tag = 'smem constant byte address 0x4 - core index']
  #allocation1 [shape = 'u32[72,128]{1,0:T(1,128)}', space=vmem, size = 0x9000, scoped, tag = 'internal scratch']
  #allocation2 [shape = 'u32[2048]{0}', space=vmem, size = 0x2000, scoped, tag = 'scoped memory for vit_forward.34']
  #allocation3 [shape = 'u32[2048]{0}', space=vmem, size = 0x2000, scoped, tag = 'scoped memory for vit_forward.34']
  #allocation4 [shape = 'u32[2048]{0}', space=vmem, size = 0x2000, scoped, tag = 'scoped memory for vit_forward.34']
  #allocation5 [shape = 'u32[2048]{0}', space=vmem, size = 0x2000, scoped, tag = 'scoped memory for vit_forward.34']
  #allocation6 [shape = 'u32[2048]{0}', space=vmem, size = 0x2000, scoped, tag = 'scoped memory for vit_forward.34']
  %s0 = inlined_call_operand.vmem [shape: bf16[48,128], index: 0, kind: input, shape index: {}]
  %s1 = inlined_call_operand.vmem [shape: f32[17,128], index: 1, kind: input, shape index: {}]
  %s2 = inlined_call_operand.vmem [shape: bf16[2,16,48], index: 2, kind: input, shape index: {}]
  %s3 = inlined_call_operand.<no memory space> [shape: bf16[], index: 3, kind: input, shape index: {}]
  %s4 = inlined_call_operand.vmem [shape: f32[2,17,128], index: 4, kind: output, shape index: {}]
  %s5 = sld [smem:[#allocation0]]
  $region45: #{vit_forward.34} parent=0
    _
  %s7 = ssub.s32 1, %s5
  %s8 = scalar_select 0, %s7, %s5
  %v9 = vstv %s3
  %v10 = vunpack.i.l.bf16 %v9
  %v12 = vunpack.i.h.bf16 %v9
  loop: start=0, step=1, limit=4
  $region2: #{vit_forward.34} parent=0 // loop_pre_header
    _
  $region3: #{vit_forward.34} parent=0 // loop_header
    %s15 = sphi 0, %s19
    %p16 = scmp.ge.s32.totalorder %s15, 4
    %s22 = sphi 0, %s41
    %s23 = sphi 0, %s37
    %s24 = sphi 0, %s33
    %s25 = sphi 0, %s22
    %s26 = sphi 0, %s23
    %s27 = sphi 0, %s24
    %s28 = sphi 0, %s25
    %s29 = sphi 0, %s26
    %s30 = sphi 0, %s27
    %s46 = sphi 0, %s48
    %s49 = sphi 0, %s46
    %s50 = sphi 0, %s49
    %s66 = sphi 0, %s50
    %s72 = sphi 0, %s74
    %s75 = sphi 0, %s72
    %s76 = sphi 0, %s75
    %s92 = sphi 0, %s76
    %s100 = sphi 0, %s102
    %s103 = sphi 0, %s100
    %s104 = sphi 0, %s103
    %s120 = sphi 0, %s104
    %s130 = sphi 0, %s132
    %s133 = sphi 0, %s130
    %s134 = sphi 0, %s133
    %s150 = sphi 0, %s134
  $region4: #{vit_forward.34} parent=0 // loop_header_branch
    %18 = sbr.rel (%p16) target = $region8
  $region5: #{vit_forward.34} parent=0 // loop_body
    %s20 = ssub.s32 %s15, 1
    %s21 = ssub.s32 %s15, 2
    %s31 = sadd.s32 1, %s24
    %p32 = scmp.ge.s32.totalorder %s31, 1
    %s33 = scalar_select %p32, 0, %s31
    %s34 = sadd.s32 1, %s23
    %s35 = scalar_select %p32, %s34, %s23
    %p36 = scmp.ge.s32.totalorder %s35, 1
    %s37 = scalar_select %p36, 0, %s35
    %s38 = sadd.s32 1, %s22
    %s39 = scalar_select %p36, %s38, %s22
    %p40 = scmp.ge.s32.totalorder %s39, 2
    %s41 = scalar_select %p40, 0, %s39
    %s42 = ssub.s32 %s22, %s41
    %s43 = ssub.s32 %s23, %s37
    %s44 = sor.u32 %s42, %s43
    %p45 = scmp.eq.s32.totalorder %s44, 0
    %s47 = sadd.s32 %s46, 1
    %s48 = scalar_select %p45, %s46, %s47
    %p51 = pneg %p45
    %p52 = scmp.eq.s32.totalorder %s15, 1
    %p53 = por %p51, %p52
    %p54 = scmp.ne.s32.totalorder %s46, %s49
    %p55 = scmp.eq.s32.totalorder %s15, 0
    %p56 = por %p54, %p55
    %p57 = scmp.ne.s32.totalorder %s46, %s49
    %p58 = scmp.eq.s32.totalorder %s20, 1
    %p59 = por %p57, %p58
    %p60 = scmp.ne.s32.totalorder %s49, %s50
    %p61 = scmp.eq.s32.totalorder %s20, 0
    %p62 = por %p60, %p61
    %p63 = scmp.ne.s32.totalorder %s49, %s50
    %p64 = scmp.eq.s32.totalorder %s21, 1
    %p65 = por %p63, %p64
    %p67 = scmp.ne.s32.totalorder %s50, %s66
    %p68 = scmp.eq.s32.totalorder %s21, 0
    %p69 = por %p67, %p68
    %s70 = ssub.s32 %s24, %s33
    %p71 = scmp.eq.s32.totalorder %s70, 0
    %s73 = sadd.s32 %s72, 1
    %s74 = scalar_select %p71, %s72, %s73
    %p77 = pneg %p71
    %p78 = scmp.eq.s32.totalorder %s15, 1
    %p79 = por %p77, %p78
    %p80 = scmp.ne.s32.totalorder %s72, %s75
    %p81 = scmp.eq.s32.totalorder %s15, 0
    %p82 = por %p80, %p81
    %p83 = scmp.ne.s32.totalorder %s72, %s75
    %p84 = scmp.eq.s32.totalorder %s20, 1
    %p85 = por %p83, %p84
    %p86 = scmp.ne.s32.totalorder %s75, %s76
    %p87 = scmp.eq.s32.totalorder %s20, 0
    %p88 = por %p86, %p87
    %p89 = scmp.ne.s32.totalorder %s75, %s76
    %p90 = scmp.eq.s32.totalorder %s21, 1
    %p91 = por %p89, %p90
    %p93 = scmp.ne.s32.totalorder %s76, %s92
    %p94 = scmp.eq.s32.totalorder %s21, 0
    %p95 = por %p93, %p94
    %s96 = ssub.s32 %s23, %s37
    %s97 = ssub.s32 %s24, %s33
    %s98 = sor.u32 %s96, %s97
    %p99 = scmp.eq.s32.totalorder %s98, 0
    %s101 = sadd.s32 %s100, 1
    %s102 = scalar_select %p99, %s100, %s101
    %p105 = pneg %p99
    %p106 = scmp.eq.s32.totalorder %s15, 1
    %p107 = por %p105, %p106
    %p108 = scmp.ne.s32.totalorder %s100, %s103
    %p109 = scmp.eq.s32.totalorder %s15, 0
    %p110 = por %p108, %p109
    %p111 = scmp.ne.s32.totalorder %s100, %s103
    %p112 = scmp.eq.s32.totalorder %s20, 1
    %p113 = por %p111, %p112
    %p114 = scmp.ne.s32.totalorder %s103, %s104
    %p115 = scmp.eq.s32.totalorder %s20, 0
    %p116 = por %p114, %p115
    %p117 = scmp.ne.s32.totalorder %s103, %s104
    %p118 = scmp.eq.s32.totalorder %s21, 1
    %p119 = por %p117, %p118
    %p121 = scmp.ne.s32.totalorder %s104, %s120
    %p122 = scmp.eq.s32.totalorder %s21, 0
    %p123 = por %p121, %p122
    %s124 = ssub.s32 %s22, %s41
    %s125 = ssub.s32 %s23, %s37
    %s126 = sor.u32 %s124, %s125
    %s127 = ssub.s32 %s24, %s33
    %s128 = sor.u32 %s126, %s127
    %p129 = scmp.eq.s32.totalorder %s128, 0
    %s131 = sadd.s32 %s130, 1
    %s132 = scalar_select %p129, %s130, %s131
    %p135 = pneg %p129
    %p136 = scmp.eq.s32.totalorder %s15, 1
    %p137 = por %p135, %p136
    %p138 = scmp.ne.s32.totalorder %s130, %s133
    %p139 = scmp.eq.s32.totalorder %s15, 0
    %p140 = por %p138, %p139
    %p141 = scmp.ne.s32.totalorder %s130, %s133
    %p142 = scmp.eq.s32.totalorder %s20, 1
    %p143 = por %p141, %p142
    %p144 = scmp.ne.s32.totalorder %s133, %s134
    %p145 = scmp.eq.s32.totalorder %s20, 0
    %p146 = por %p144, %p145
    %p147 = scmp.ne.s32.totalorder %s133, %s134
    %p148 = scmp.eq.s32.totalorder %s21, 1
    %p149 = por %p147, %p148
    %p151 = scmp.ne.s32.totalorder %s134, %s150
    %p152 = scmp.eq.s32.totalorder %s21, 0
    %p153 = por %p151, %p152
    %p154 = scmp.le.s32.totalorder 1, %s15
    %p155 = scmp.lt.s32.totalorder %s15, 3
    %p156 = pnand %p154, %p155
    %p157 = pneg %p156
    // Predicated region
    $region9: #{vit_forward.34} parent=5 // pred_check
      _
    $region10: #{vit_forward.34} parent=5 // pred_check_branch
      %159 = sbr.rel (%p156) target = $region12
    $region11: #{vit_forward.34} parent=5 // pred_region
      %s160 = ssub.s32 %s15, 1
      // Predicated region
      $region13: #{vit_forward.34} parent=11 // pred_check
        %p161 = pneg %p88
      $region14: #{vit_forward.34} parent=11 // pred_check_branch
        %163 = sbr.rel (%p161) target = $region16
      $region15: #{vit_forward.34} parent=11 // pred_region
        %p164 = scmp.lt.s32.totalorder %s27, 0
        %s165 = scalar_select %p164, %s27, 0
        %s166 = smul.addr %s165, 4
        %s167 = scalar_lea.vmem %s0, %s166
      $region16: #{vit_forward.34} parent=11 // pred_fallthru
        _
      // Predicated region
      $region17: #{vit_forward.34} parent=11 // pred_check
        %p168 = pneg %p116
      $region18: #{vit_forward.34} parent=11 // pred_check_branch
        %170 = sbr.rel (%p168) target = $region20
      $region19: #{vit_forward.34} parent=11 // pred_region
        %s171 = smul.u32 3, %s26
        %p172 = scmp.lt.s32.totalorder %s171, 2
        %s173 = scalar_select %p172, %s171, 2
        %p174 = scmp.lt.s32.totalorder %s27, 0
        %s175 = scalar_select %p174, %s27, 0
        %s176 = sadd.s32 %s175, %s173
        %s177 = smul.addr %s176, 8
        %s178 = scalar_lea.vmem %s1, %s177
        %s179 = smul.u32 3, %s26
      $region20: #{vit_forward.34} parent=11 // pred_fallthru
        _
    $region12: #{vit_forward.34} parent=5 // pred_fallthru
      _
    %p180 = scmp.lt.s32.totalorder %s15, 2
    // Predicated region
    $region21: #{vit_forward.34} parent=5 // pred_check
      %p181 = pneg %p180
    $region22: #{vit_forward.34} parent=5 // pred_check_branch
      %183 = sbr.rel (%p181) target = $region24
    $region23: #{vit_forward.34} parent=5 // pred_region
      // Predicated region
      $region25: #{vit_forward.34} parent=23 // pred_check
        %p184 = pneg %p56
      $region26: #{vit_forward.34} parent=23 // pred_check_branch
        %186 = sbr.rel (%p184) target = $region28
      $region27: #{vit_forward.34} parent=23 // pred_region
        %s187 = smul.u32 3, %s23
        %s188 = ssub.s32 1, %s187
        %s189 = ssub.s32 3, %s188
        %s190 = smul.u32 4, %s189
        %p191 = scmp.lt.s32.totalorder %s22, 1
        %s192 = scalar_select %p191, %s22, 1
        %s193 = ssub.s32 %s187, 1
        %p194 = scmp.lt.s32.totalorder %s193, 1
        %s195 = scalar_select %p194, %s193, 1
        %s196 = smul.addr %s192, 2
        %s197 = sadd.s32 %s195, %s196
        %s198 = smul.addr %s197, 4
        %s199 = scalar_lea.vmem %s2, %s198
        %s200 = smul.u32 3, %s23
        %s201 = ssub.s32 1, %s200
        %s202 = ssub.s32 3, %s201
        %s203 = smul.u32 4, %s202
      $region28: #{vit_forward.34} parent=23 // pred_fallthru
        _
    $region24: #{vit_forward.34} parent=5 // pred_fallthru
      _
    %p204 = scmp.le.s32.totalorder 1, %s15
    %p205 = scmp.lt.s32.totalorder %s15, 3
    %p206 = pnand %p204, %p205
    %p207 = pneg %p206
    // Predicated region
    $region29: #{vit_forward.34} parent=5 // pred_check
      _
    $region30: #{vit_forward.34} parent=5 // pred_check_branch
      %209 = sbr.rel (%p206) target = $region32
    $region31: #{vit_forward.34} parent=5 // pred_region
      #allocation7 [shape = 'u8[6144]{0}', space=vmem, size = 0x1800, dematerialized = true, scoped, tag = 'FusionAdapter Buffer %fusion.1 = bf16[2,17,48]{2,1,0:T(8,128)(2,1)} fusion(%param_2.3, %param_3), kind=kLoop, calls=%fused_computation.9.clone, metadata={op_name="jit(vit_forward)/jit(_pad)/pad" stack_frame_id=11}']
      %s210 = ssub.s32 %s15, 1
      %s211 = smul.u32 3, %s26
      %s212 = ssub.s32 1, %s211
      %s213 = ssub.s32 3, %s212
      %s214 = smul.u32 4, %s213
      %p215 = scmp.lt.s32.totalorder %s25, 1
      %s216 = scalar_select %p215, %s25, 1
      %s217 = ssub.s32 %s211, 1
      %p218 = scmp.lt.s32.totalorder %s217, 1
      %s219 = scalar_select %p218, %s217, 1
      %s220 = smul.addr %s216, 2
      %s221 = sadd.s32 %s219, %s220
      %s222 = smul.addr %s221, 4
      %s223 = scalar_lea.vmem %s2, %s222
      %p224 = pneg %p62
      %p225 = pneg %p59
      %p226 = scmp.lt.s32.totalorder %s27, 0
      %s227 = scalar_select %p226, %s27, 0
      %s228 = smul.addr %s227, 4
      %s229 = scalar_lea.vmem %s0, %s228
      %p230 = pneg %p88
      %p231 = pneg %p85
      %s232 = smul.u32 3, %s26
      %p233 = scmp.lt.s32.totalorder %s232, 2
      %s234 = scalar_select %p233, %s232, 2
      %p235 = scmp.lt.s32.totalorder %s27, 0
      %s236 = scalar_select %p235, %s27, 0
      %s237 = sadd.s32 %s236, %s234
      %s238 = smul.addr %s237, 8
      %s239 = scalar_lea.vmem %s1, %s238
      %p240 = pneg %p116
      %p241 = pneg %p113
      %p242 = pneg %p146
      %p243 = pneg %p143
      %s244 = smul.u32 3, %s26
      %p245 = scmp.lt.s32.totalorder %s25, 1
      %s246 = scalar_select %p245, %s25, 1
      %p247 = scmp.lt.s32.totalorder %s244, 2
      %s248 = scalar_select %p247, %s244, 2
      %p249 = scmp.lt.s32.totalorder %s27, 0
      %s250 = scalar_select %p249, %s27, 0
      %s251 = sadd.s32 %s250, %s248
      %s252 = smul.addr %s246, 3
      %s253 = sadd.s32 %s251, %s252
      %s254 = smul.addr %s253, 8
      %s255 = scalar_lea.vmem %s4, %s254
      %s256 = smul.u32 3, %s26
      %s257 = ssub.s32 1, %s256
      %s258 = ssub.s32 3, %s257
      %s259 = smul.u32 4, %s258
      %p260 = scmp.lt.s32.totalorder %s25, 1
      %s261 = scalar_select %p260, %s25, 1
      %s262 = ssub.s32 %s256, 1
      %p263 = scmp.lt.s32.totalorder %s262, 1
      %s264 = scalar_select %p263, %s262, 1
      %s265 = smul.addr %s261, 2
      %s266 = sadd.s32 %s264, %s265
      %s267 = smul.addr %s266, 4
      %s268 = scalar_lea.vmem %s2, %s267
      %s269 = smul.u32 3, %s26
      %s270 = ssub.s32 1, %s269
      %s271 = ssub.s32 3, %s270
      %s272 = smul.u32 4, %s271
      %p273 = scmp.lt.s32.totalorder %s27, 0
      %s274 = scalar_select %p273, %s27, 0
      %s275 = smul.addr %s274, 4
      %s276 = scalar_lea.vmem %s0, %s275
      %s277 = smul.u32 3, %s26
      %p278 = scmp.lt.s32.totalorder %s277, 2
      %s279 = scalar_select %p278, %s277, 2
      %p280 = scmp.lt.s32.totalorder %s27, 0
      %s281 = scalar_select %p280, %s27, 0
      %s282 = sadd.s32 %s281, %s279
      %s283 = smul.addr %s282, 8
      %s284 = scalar_lea.vmem %s1, %s283
      %s285 = smul.u32 3, %s26
      %s286 = smul.u32 3, %s26
      %p287 = scmp.lt.s32.totalorder %s25, 1
      %s288 = scalar_select %p287, %s25, 1
      %p289 = scmp.lt.s32.totalorder %s286, 2
      %s290 = scalar_select %p289, %s286, 2
      %p291 = scmp.lt.s32.totalorder %s27, 0
      %s292 = scalar_select %p291, %s27, 0
      %s293 = sadd.s32 %s292, %s290
      %s294 = smul.addr %s288, 3
      %s295 = sadd.s32 %s293, %s294
      %s296 = smul.addr %s295, 8
      %s297 = scalar_lea.vmem %s4, %s296
      %s298 = smul.u32 3, %s26
      %s299 = ssub.s32 %s269, 1
      %p300 = scmp.lt.s32.totalorder %s299, 0
      %s301 = scalar_select %p300, 0, 255
      %s302 = sshrl.u32 %s301, 1
      %s303 = sor.u32 %s301, %s302
      %s304 = sand.u32 %s303, 85
      %s305 = sshrl.u32 %s304, 1
      %s306 = sor.u32 %s304, %s305
      %s307 = sand.u32 51, %s306
      %s308 = sshrl.u32 %s307, 2
      %s309 = sor.u32 %s307, %s308
      %s310 = sand.u32 15, %s309
      %v311 = vld [vmem:[%s268] sm:%s310]
      %v312 = vunpack.c.l.bf16 %v311
      %v313 = vunpack.c.h.bf16 %v311
      %s314 = ssub.s32 %s269, 1
      %v315 = vstv %s314
      %vm316 = vcmp.lt.s32.totalorder %v315, 0
      %v317 = vsel %vm316, %v10, %v312
      %v318 = vlaneseq
      %v319 = vand.u32 %v318, 127
      %vm321 = vcmp.lt.s32.totalorder %v319, 48
      %v322 = vsel %vm321, %v317, %v10
      %s323 = scalar_lea.vmem %s268, 4
      %v324 = vld [vmem:[%s323] sm:$0xf]
      %v325 = vunpack.c.l.bf16 %v324
      %v326 = vunpack.c.h.bf16 %v324
      %v327 = vlaneseq
      %v328 = vand.u32 %v327, 127
      %vm330 = vcmp.lt.s32.totalorder %v328, 48
      %v331 = vsel %vm330, %v325, %v10
      %vm332 = vcmask 1046528
      %v333 = vsel %vm332, %v331, %v322
      %v334 = vrot.slane %v333, 7
      %v335 = vpack.c.bf16 0.0, %v334
      %s337 = ssub.s32 16, 1
      %338 = vst [vmem:[#allocation7] sm:%s337] %v335
      %s339 = scalar_lea.vmem %s268, 8
      %v340 = vld [vmem:[%s339] sm:$0xf]
      %v341 = vunpack.c.l.bf16 %v340
      %v342 = vunpack.c.h.bf16 %v340
      %v343 = vlaneseq
      %v344 = vand.u32 %v343, 127
      %vm346 = vcmp.lt.s32.totalorder %v344, 48
      %v347 = vsel %vm346, %v341, %v10
      %vm348 = vcmask 1046528
      %v349 = vsel %vm348, %v347, %v331
      %v350 = vrot.slane %v349, 7
      %s351 = scalar_lea.vmem [#allocation7], 4
      %v352 = vpack.c.bf16 0.0, %v350
      %s354 = ssub.s32 16, 1
      %355 = vst [vmem:[%s351] sm:%s354] %v352
      %vm356 = vcmask 1046528
      %v357 = vsel %vm356, %v10, %v347
      %v358 = vrot.slane %v357, 7
      %s359 = scalar_lea.vmem [#allocation7], 8
      %v360 = vpack.c.bf16 0.0, %v358
      %s362 = ssub.s32 16, 1
      %363 = vst [vmem:[%s359] sm:%s362] %v360
      %v365 = vld [vmem:[#allocation7] sm:$0xf]
      %v366 = vld [vmem:[#allocation7 + $0x4] sm:$0xf]
      %v367 = vld [vmem:[#allocation7 + $0x8] sm:$0x1]
      %v368 = vld [vmem:[%s276] sm:$0xf]
      %v369 = vld [vmem:[%s276 + $0x4] sm:$0xf]
      %v370 = vld [vmem:[%s276 + $0x8] sm:$0xf]
      %v371 = vld [vmem:[%s276 + $0xc] sm:$0xf]
      %v372 = vld [vmem:[%s276 + $0x10] sm:$0xf]
      %v373 = vld [vmem:[%s276 + $0x14] sm:$0xf]
      %v374 = vld [vmem:[%s284] sm:$0xff]
      %v375 = vld [vmem:[%s284 + $0x8] sm:$0xff]
      %v376 = vld [vmem:[%s284 + $0x10] sm:$0x1]
      %v380 = vunpack.c.l.b16 %v365
      %v381 = vunpack.c.l.b16 %v366
      %v382 = vunpack.c.l.b16 %v367
      %v383 = vpack.c.b16 %v381, %v380
      %v384 = vpack.c.b16 %v382, %v382
      %v391 = vunpack.c.l.b16 %v368
      %v392 = vunpack.c.l.b16 %v369
      %v393 = vunpack.c.l.b16 %v370
      %v394 = vunpack.c.l.b16 %v371
      %v395 = vunpack.c.l.b16 %v372
      %v396 = vunpack.c.l.b16 %v373
      %v397 = vpack.c.b16 %v392, %v391
      %v398 = vpack.c.b16 %v394, %v393
      %v399 = vpack.c.b16 %v396, %v395
      %vm403 = vcmask 392192
      %v405 = vsel %vm403, %v383, 0
      %v408 = vsel %vm403, %v384, 0
      %410 = vmatpush.bf16.msra.mxu0 0
      %411 = vmatpush.bf16.msra.mxu0 0
      %412 = vmatpush.bf16.msra.mxu0 0
      %413 = vmatpush.bf16.msra.mxu0 0
      %414 = vmatpush.bf16.msra.mxu0 0
      %415 = vmatpush.bf16.msra.mxu0 %v399
      %416 = vmatpush.bf16.msra.mxu0 %v398
      %417 = vmatpush.bf16.msra.mxu0 %v397
      %418 = vmatmul.bf16.gmra.mxu0 %v405
      %v419 = vpop.f32.mrf.mxu0
      %v420 = vadd.f32 %v374, %v419
      %v421 = vpop.f32.mrf.mxu0
      %v422 = vadd.f32 %v375, %v421
      %423 = vmatmul.bf16.gmra.mxu0 %v408
      %v424 = vpop.f32.mrf.mxu0
      %v425 = vadd.f32 %v376, %v424
      %v426 = vpop.f32.mrf.mxu0
      %427 = vdwg.mxu0
      %428 = vst [vmem:[%s297] sm:$0xff] %v420
      %429 = vst [vmem:[%s297 + $0x8] sm:$0xff] %v422
      %430 = vst [vmem:[%s297 + $0x10] sm:$0x1] %v425
      %s431 = smul.u32 3, %s26
      %p432 = scmp.lt.s32.totalorder %s25, 1
      %s433 = scalar_select %p432, %s25, 1
      %p434 = scmp.lt.s32.totalorder %s431, 2
      %s435 = scalar_select %p434, %s431, 2
      %p436 = scmp.lt.s32.totalorder %s27, 0
      %s437 = scalar_select %p436, %s27, 0
      %s438 = sadd.s32 %s437, %s435
      %s439 = smul.addr %s433, 3
      %s440 = sadd.s32 %s438, %s439
      %s441 = smul.addr %s440, 8
      %s442 = scalar_lea.vmem %s4, %s441
      // Predicated region
      $region33: #{vit_forward.34} parent=31 // pred_check
        %p443 = pneg %p143
      $region34: #{vit_forward.34} parent=31 // pred_check_branch
        %445 = sbr.rel (%p443) target = $region36
      $region35: #{vit_forward.34} parent=31 // pred_region
        %s446 = smul.u32 3, %s26
      $region36: #{vit_forward.34} parent=31 // pred_fallthru
        _
    $region32: #{vit_forward.34} parent=5 // pred_fallthru
      _
    %p447 = scmp.le.s32.totalorder 2, %s15
    // Predicated region
    $region37: #{vit_forward.34} parent=5 // pred_check
      %p448 = pneg %p447
    $region38: #{vit_forward.34} parent=5 // pred_check_branch
      %450 = sbr.rel (%p448) target = $region40
    $region39: #{vit_forward.34} parent=5 // pred_region
      %s451 = ssub.s32 %s15, 2
      // Predicated region
      $region41: #{vit_forward.34} parent=39 // pred_check
        %p452 = pneg %p149
      $region42: #{vit_forward.34} parent=39 // pred_check_branch
        %454 = sbr.rel (%p452) target = $region44
      $region43: #{vit_forward.34} parent=39 // pred_region
        %s455 = smul.u32 3, %s29
        %p456 = scmp.lt.s32.totalorder %s28, 1
        %s457 = scalar_select %p456, %s28, 1
        %p458 = scmp.lt.s32.totalorder %s455, 2
        %s459 = scalar_select %p458, %s455, 2
        %p460 = scmp.lt.s32.totalorder %s30, 0
        %s461 = scalar_select %p460, %s30, 0
        %s462 = sadd.s32 %s461, %s459
        %s463 = smul.addr %s457, 3
        %s464 = sadd.s32 %s462, %s463
        %s465 = smul.addr %s464, 8
        %s466 = scalar_lea.vmem %s4, %s465
      $region44: #{vit_forward.34} parent=39 // pred_fallthru
        _
    $region40: #{vit_forward.34} parent=5 // pred_fallthru
      _
  $region6: #{vit_forward.34} parent=0 // loop_footer
    %s19 = sadd.s32 1, %s15
  $region7: #{vit_forward.34} parent=0 // loop_footer_branch
    %14 = sbr.rel target = $region3
  $region8: #{vit_forward.34} parent=0 // loop_exit
    _

// kernel: vit_forward.18
$region0: #{vit_forward.18}
  #allocation0 [shape = 'u32[]', space=smem, size = 0x4, offset = 0x4, fixed_abs, tag = 'smem constant byte address 0x4 - core index']
  #allocation1 [shape = 'u32[72,128]{1,0:T(1,128)}', space=vmem, size = 0x9000, scoped, tag = 'internal scratch']
  %s0 = inlined_call_operand.vmem [shape: f32[34,128], index: 0, kind: input, shape index: {}]
  %s1 = inlined_call_operand.vmem [shape: f32[1,128], index: 1, kind: input, shape index: {}]
  %s2 = inlined_call_operand.vmem [shape: f32[1,128], index: 2, kind: input, shape index: {}]
  %s3 = inlined_call_operand.vmem [shape: f32[34,128], index: 3, kind: output, shape index: {}]
  %s4 = sld [smem:[#allocation0]]
  $region22: #{vit_forward.18} parent=0
    _
  %s6 = ssub.s32 1, %s4
  %s7 = scalar_select 0, %s6, %s4
  // Predicated region
  $region2: #{vit_forward.18} parent=0 // pred_check
    _
  $region3: #{vit_forward.18} parent=0 // pred_check_branch
    %9 = sbr.rel (0) target = $region5
  $region4: #{vit_forward.18} parent=0 // pred_region
    _
  $region5: #{vit_forward.18} parent=0 // pred_fallthru
    _
  // Predicated region
  $region6: #{vit_forward.18} parent=0 // pred_check
    _
  $region7: #{vit_forward.18} parent=0 // pred_check_branch
    %11 = sbr.rel (0) target = $region9
  $region8: #{vit_forward.18} parent=0 // pred_region
    _
  $region9: #{vit_forward.18} parent=0 // pred_fallthru
    _
  // Predicated region
  $region10: #{vit_forward.18} parent=0 // pred_check
    _
  $region11: #{vit_forward.18} parent=0 // pred_check_branch
    %13 = sbr.rel (0) target = $region13
  $region12: #{vit_forward.18} parent=0 // pred_region
    _
  $region13: #{vit_forward.18} parent=0 // pred_fallthru
    _
  %v14 = vld [vmem:[%s0] sm:$0xff]
  %v15 = vld [vmem:[%s0 + $0x8] sm:$0xff]
  %v16 = vld [vmem:[%s0 + $0x10] sm:$0xff]
  %v17 = vld [vmem:[%s0 + $0x18] sm:$0xff]
  %v18 = vld [vmem:[%s0 + $0x20] sm:$0x3]
  %19 = vadd.xlane.f32.xlu0 %v14
  %v20 = vpop.xlane.xlu0 %19
  %21 = vadd.xlane.f32.xlu0 %v15
  %v22 = vpop.xlane.xlu0 %21
  %23 = vadd.xlane.f32.xlu0 %v16
  %v24 = vpop.xlane.xlu0 %23
  %25 = vadd.xlane.f32.xlu0 %v17
  %v26 = vpop.xlane.xlu0 %25
  %vm27 = vcmask 1041408
  %v28 = vsel %vm27, %v18, 0.0
  %29 = vadd.xlane.f32.xlu0 %v28
  %v30 = vpop.xlane.xlu0 %29
  %v31 = vrcp.pop 128.0
  %v32 = vmul.f32 128.0, %v31
  %v33 = vsub.f32 1.0, %v32
  %v34 = vmul.f32 %v31, %v33
  %v35 = vadd.f32 %v31, %v34
  %vm36 = vweird.f32 %v31
  %v37 = vsel %vm36, %v31, %v35
  %v38 = vmul.f32 %v20, %v37
  %v39 = vmul.f32 %v22, %v37
  %v40 = vmul.f32 %v24, %v37
  %v41 = vmul.f32 %v26, %v37
  %v42 = vmul.f32 %v30, %v37
  %v43 = vsub.f32 %v14, %v38
  %v44 = vsub.f32 %v15, %v39
  %v45 = vsub.f32 %v16, %v40
  %v46 = vsub.f32 %v17, %v41
  %v47 = vsub.f32 %v18, %v42
  %v48 = vmul.f32 %v43, %v43
  %v49 = vmul.f32 %v44, %v44
  %v50 = vmul.f32 %v45, %v45
  %v51 = vmul.f32 %v46, %v46
  %v52 = vmul.f32 %v47, %v47
  %53 = vadd.xlane.f32.xlu0 %v48
  %v54 = vpop.xlane.xlu0 %53
  %55 = vadd.xlane.f32.xlu0 %v49
  %v56 = vpop.xlane.xlu0 %55
  %57 = vadd.xlane.f32.xlu0 %v50
  %v58 = vpop.xlane.xlu0 %57
  %59 = vadd.xlane.f32.xlu0 %v51
  %v60 = vpop.xlane.xlu0 %59
  %v61 = vsel %vm27, %v52, 0.0
  %62 = vadd.xlane.f32.xlu0 %v61
  %v63 = vpop.xlane.xlu0 %62
  %v64 = vmul.f32 %v54, %v37
  %v65 = vmul.f32 %v56, %v37
  %v66 = vmul.f32 %v58, %v37
  %v67 = vmul.f32 %v60, %v37
  %v68 = vmul.f32 %v63, %v37
  %v69 = vadd.f32 %v64, 1e-05
  %v70 = vadd.f32 %v65, 1e-05
  %v71 = vadd.f32 %v66, 1e-05
  %v72 = vadd.f32 %v67, 1e-05
  %v73 = vadd.f32 %v68, 1e-05
  %v74 = vrsqrt.pop %v69
  %v75 = vmul.f32 %v74, %v69
  %v76 = vmul.f32 %v75, %v74
  %v77 = vmul.f32 0.5, %v76
  %v78 = vsub.f32 1.5, %v77
  %v79 = vmul.f32 %v74, %v78
  %vm80 = vweird.f32 %v69
  %vm81 = vweird.f32 %v74
  %vm82 = vmor %vm80, %vm81
  %v83 = vsel %vm82, %v74, %v79
  %v84 = vrsqrt.pop %v70
  %v85 = vmul.f32 %v84, %v70
  %v86 = vmul.f32 %v85, %v84
  %v87 = vmul.f32 0.5, %v86
  %v88 = vsub.f32 1.5, %v87
  %v89 = vmul.f32 %v84, %v88
  %vm90 = vweird.f32 %v70
  %vm91 = vweird.f32 %v84
  %vm92 = vmor %vm90, %vm91
  %v93 = vsel %vm92, %v84, %v89
  %v94 = vrsqrt.pop %v71
  %v95 = vmul.f32 %v94, %v71
  %v96 = vmul.f32 %v95, %v94
  %v97 = vmul.f32 0.5, %v96
  %v98 = vsub.f32 1.5, %v97
  %v99 = vmul.f32 %v94, %v98
  %vm100 = vweird.f32 %v71
  %vm101 = vweird.f32 %v94
  %vm102 = vmor %vm100, %vm101
  %v103 = vsel %vm102, %v94, %v99
  %v104 = vrsqrt.pop %v72
  %v105 = vmul.f32 %v104, %v72
  %v106 = vmul.f32 %v105, %v104
  %v107 = vmul.f32 0.5, %v106
  %v108 = vsub.f32 1.5, %v107
  %v109 = vmul.f32 %v104, %v108
  %vm110 = vweird.f32 %v72
  %vm111 = vweird.f32 %v104
  %vm112 = vmor %vm110, %vm111
  %v113 = vsel %vm112, %v104, %v109
  %v114 = vrsqrt.pop %v73
  %v115 = vmul.f32 %v114, %v73
  %v116 = vmul.f32 %v115, %v114
  %v117 = vmul.f32 0.5, %v116
  %v118 = vsub.f32 1.5, %v117
  %v119 = vmul.f32 %v114, %v118
  %vm120 = vweird.f32 %v73
  %vm121 = vweird.f32 %v114
  %vm122 = vmor %vm120, %vm121
  %v123 = vsel %vm122, %v114, %v119
  %v124 = vmul.f32 %v43, %v83
  %v125 = vmul.f32 %v44, %v93
  %v126 = vmul.f32 %v45, %v103
  %v127 = vmul.f32 %v46, %v113
  %v128 = vmul.f32 %v47, %v123
  %v129 = vld [vmem:[%s1] sm:$0x1]
  %v131 = vperm.slane %v129, 0
  %v133 = vmul.f32 %v124, %v131
  %v134 = vmul.f32 %v125, %v131
  %v135 = vmul.f32 %v126, %v131
  %v136 = vmul.f32 %v127, %v131
  %v137 = vmul.f32 %v128, %v131
  %v138 = vld [vmem:[%s2] sm:$0x1]
  %v140 = vperm.slane %v138, 0
  %v142 = vadd.f32 %v133, %v140
  %v143 = vadd.f32 %v134, %v140
  %v144 = vadd.f32 %v135, %v140
  %v145 = vadd.f32 %v136, %v140
  %v146 = vadd.f32 %v137, %v140
  %147 = vst [vmem:[%s3] sm:$0xff] %v142
  %148 = vst [vmem:[%s3 + $0x8] sm:$0xff] %v143
  %149 = vst [vmem:[%s3 + $0x10] sm:$0xff] %v144
  %150 = vst [vmem:[%s3 + $0x18] sm:$0xff] %v145
  %151 = vst [vmem:[%s3 + $0x20] sm:$0x3] %v146
  // Predicated region
  $region14: #{vit_forward.18} parent=0 // pred_check
    _
  $region15: #{vit_forward.18} parent=0 // pred_check_branch
    %153 = sbr.rel (0) target = $region17
  $region16: #{vit_forward.18} parent=0 // pred_region
    _
  $region17: #{vit_forward.18} parent=0 // pred_fallthru
    _
  // Predicated region
  $region18: #{vit_forward.18} parent=0 // pred_check
    _
  $region19: #{vit_forward.18} parent=0 // pred_check_branch
    %155 = sbr.rel (0) target = $region21
  $region20: #{vit_forward.18} parent=0 // pred_region
    _
  $region21: #{vit_forward.18} parent=0 // pred_fallthru
    _

// kernel: vit_forward.19
$region0: #{vit_forward.19}
  #allocation0 [shape = 'u32[]', space=smem, size = 0x4, offset = 0x4, fixed_abs, tag = 'smem constant byte address 0x4 - core index']
  #allocation1 [shape = 'u32[72,128]{1,0:T(1,128)}', space=vmem, size = 0x9000, scoped, tag = 'internal scratch']
  #allocation2 [shape = 'f32[34,384]{1,0:T(8,128)}', space=vmem, size = 0xf000, scoped, tag = 'scratch operand']
  %s0 = inlined_call_operand.vmem [shape: bf16[34,128], index: 0, kind: input, shape index: {}]
  %s1 = inlined_call_operand.vmem [shape: bf16[128,384], index: 1, kind: input, shape index: {}]
  %s2 = inlined_call_operand.vmem [shape: f32[1,384], index: 2, kind: input, shape index: {}]
  %s3 = inlined_call_operand.vmem [shape: f32[34,384], index: 3, kind: output, shape index: {}]
  %s4 = sld [smem:[#allocation0]]
  $region30: #{vit_forward.19} parent=0
    _
  %s6 = ssub.s32 1, %s4
  %s7 = scalar_select 0, %s6, %s4
  // Predicated region
  $region2: #{vit_forward.19} parent=0 // pred_check
    _
  $region3: #{vit_forward.19} parent=0 // pred_check_branch
    %9 = sbr.rel (0) target = $region5
  $region4: #{vit_forward.19} parent=0 // pred_region
    _
  $region5: #{vit_forward.19} parent=0 // pred_fallthru
    _
  // Predicated region
  $region6: #{vit_forward.19} parent=0 // pred_check
    _
  $region7: #{vit_forward.19} parent=0 // pred_check_branch
    %11 = sbr.rel (0) target = $region9
  $region8: #{vit_forward.19} parent=0 // pred_region
    _
  $region9: #{vit_forward.19} parent=0 // pred_fallthru
    _
  // Predicated region
  $region10: #{vit_forward.19} parent=0 // pred_check
    _
  $region11: #{vit_forward.19} parent=0 // pred_check_branch
    %13 = sbr.rel (0) target = $region13
  $region12: #{vit_forward.19} parent=0 // pred_region
    _
  $region13: #{vit_forward.19} parent=0 // pred_fallthru
    _
  %p14 = scmp.eq.s32.totalorder 0, 0
  // Predicated region
  $region14: #{vit_forward.19} parent=0 // pred_check
    %p15 = pneg %p14
  $region15: #{vit_forward.19} parent=0 // pred_check_branch
    %17 = sbr.rel (%p15) target = $region17
  $region16: #{vit_forward.19} parent=0 // pred_region
    %18 = vst [vmem:[#allocation2] sm:$0xff] 0.0
    %19 = vst [vmem:[#allocation2 + $0x8] sm:$0xff] 0.0
    %20 = vst [vmem:[#allocation2 + $0x10] sm:$0xff] 0.0
    %21 = vst [vmem:[#allocation2 + $0x18] sm:$0xff] 0.0
    %22 = vst [vmem:[#allocation2 + $0x20] sm:$0xff] 0.0
    %23 = vst [vmem:[#allocation2 + $0x28] sm:$0xff] 0.0
    %24 = vst [vmem:[#allocation2 + $0x30] sm:$0xff] 0.0
    %25 = vst [vmem:[#allocation2 + $0x38] sm:$0xff] 0.0
    %26 = vst [vmem:[#allocation2 + $0x40] sm:$0xff] 0.0
    %27 = vst [vmem:[#allocation2 + $0x48] sm:$0xff] 0.0
    %28 = vst [vmem:[#allocation2 + $0x50] sm:$0xff] 0.0
    %29 = vst [vmem:[#allocation2 + $0x58] sm:$0xff] 0.0
    %30 = vst [vmem:[#allocation2 + $0x60] sm:$0x3] 0.0
    %31 = vst [vmem:[#allocation2 + $0x68] sm:$0x3] 0.0
    %32 = vst [vmem:[#allocation2 + $0x70] sm:$0x3] 0.0
  $region17: #{vit_forward.19} parent=0 // pred_fallthru
    _
  %v33 = vld [vmem:[#allocation2] sm:$0xff]
  %v34 = vld [vmem:[#allocation2 + $0x8] sm:$0xff]
  %v35 = vld [vmem:[#allocation2 + $0x10] sm:$0xff]
  %v36 = vld [vmem:[#allocation2 + $0x18] sm:$0xff]
  %v37 = vld [vmem:[#allocation2 + $0x20] sm:$0xff]
  %v38 = vld [vmem:[#allocation2 + $0x28] sm:$0xff]
  %v39 = vld [vmem:[#allocation2 + $0x30] sm:$0xff]
  %v40 = vld [vmem:[#allocation2 + $0x38] sm:$0xff]
  %v41 = vld [vmem:[#allocation2 + $0x40] sm:$0xff]
  %v42 = vld [vmem:[#allocation2 + $0x48] sm:$0xff]
  %v43 = vld [vmem:[#allocation2 + $0x50] sm:$0xff]
  %v44 = vld [vmem:[#allocation2 + $0x58] sm:$0xff]
  %v45 = vld [vmem:[#allocation2 + $0x60] sm:$0x3]
  %v46 = vld [vmem:[#allocation2 + $0x68] sm:$0x3]
  %v47 = vld [vmem:[#allocation2 + $0x70] sm:$0x3]
  %v48 = vld [vmem:[%s0] sm:$0xf]
  %v49 = vld [vmem:[%s0 + $0x4] sm:$0xf]
  %v50 = vld [vmem:[%s0 + $0x8] sm:$0xf]
  %v51 = vld [vmem:[%s0 + $0xc] sm:$0xf]
  %v52 = vld [vmem:[%s0 + $0x10] sm:$0x1]
  %v53 = vld [vmem:[%s1] sm:$0xff]
  %v54 = vld [vmem:[%s1 + $0x8] sm:$0xf]
  %v55 = vld [vmem:[%s1 + $0xc] sm:$0xff]
  %v56 = vld [vmem:[%s1 + $0x14] sm:$0xf]
  %v57 = vld [vmem:[%s1 + $0x18] sm:$0xff]
  %v58 = vld [vmem:[%s1 + $0x20] sm:$0xf]
  %v59 = vld [vmem:[%s1 + $0x24] sm:$0xff]
  %v60 = vld [vmem:[%s1 + $0x2c] sm:$0xf]
  %v61 = vld [vmem:[%s1 + $0x30] sm:$0xff]
  %v62 = vld [vmem:[%s1 + $0x38] sm:$0xf]
  %v63 = vld [vmem:[%s1 + $0x3c] sm:$0xff]
  %v64 = vld [vmem:[%s1 + $0x44] sm:$0xf]
  %v65 = vld [vmem:[%s1 + $0x48] sm:$0xff]
  %v66 = vld [vmem:[%s1 + $0x50] sm:$0xf]
  %v67 = vld [vmem:[%s1 + $0x54] sm:$0xff]
  %v68 = vld [vmem:[%s1 + $0x5c] sm:$0xf]
  %v69 = vld [vmem:[%s1 + $0x60] sm:$0xff]
  %v70 = vld [vmem:[%s1 + $0x68] sm:$0xf]
  %v71 = vld [vmem:[%s1 + $0x6c] sm:$0xff]
  %v72 = vld [vmem:[%s1 + $0x74] sm:$0xf]
  %v73 = vld [vmem:[%s1 + $0x78] sm:$0xff]
  %v74 = vld [vmem:[%s1 + $0x80] sm:$0xf]
  %v75 = vld [vmem:[%s1 + $0x84] sm:$0xff]
  %v76 = vld [vmem:[%s1 + $0x8c] sm:$0xf]
  %v77 = vld [vmem:[%s1 + $0x90] sm:$0xff]
  %v78 = vld [vmem:[%s1 + $0x98] sm:$0xf]
  %v79 = vld [vmem:[%s1 + $0x9c] sm:$0xff]
  %v80 = vld [vmem:[%s1 + $0xa4] sm:$0xf]
  %v81 = vld [vmem:[%s1 + $0xa8] sm:$0xff]
  %v82 = vld [vmem:[%s1 + $0xb0] sm:$0xf]
  %v83 = vld [vmem:[%s1 + $0xb4] sm:$0xff]
  %v84 = vld [vmem:[%s1 + $0xbc] sm:$0xf]
  %v90 = vunpack.c.l.b16 %v48
  %v91 = vunpack.c.l.b16 %v49
  %v92 = vunpack.c.l.b16 %v50
  %v93 = vunpack.c.l.b16 %v51
  %v94 = vunpack.c.l.b16 %v52
  %v95 = vpack.c.b16 %v91, %v90
  %v96 = vpack.c.b16 %v93, %v92
  %v97 = vpack.c.b16 %v94, %v94
  %v133 = vunpack.c.l.b16 %v53
  %v134 = vunpack.c.h.b16 %v53
  %v135 = vunpack.c.l.b16 %v54
  %v136 = vunpack.c.l.b16 %v55
  %v137 = vunpack.c.h.b16 %v55
  %v138 = vunpack.c.l.b16 %v56
  %v139 = vunpack.c.l.b16 %v57
  %v140 = vunpack.c.h.b16 %v57
  %v141 = vunpack.c.l.b16 %v58
  %v142 = vunpack.c.l.b16 %v59
  %v143 = vunpack.c.h.b16 %v59
  %v144 = vunpack.c.l.b16 %v60
  %v145 = vunpack.c.l.b16 %v61
  %v146 = vunpack.c.h.b16 %v61
  %v147 = vunpack.c.l.b16 %v62
  %v148 = vunpack.c.l.b16 %v63
  %v149 = vunpack.c.h.b16 %v63
  %v150 = vunpack.c.l.b16 %v64
  %v151 = vunpack.c.l.b16 %v65
  %v152 = vunpack.c.h.b16 %v65
  %v153 = vunpack.c.l.b16 %v66
  %v154 = vunpack.c.l.b16 %v67
  %v155 = vunpack.c.h.b16 %v67
  %v156 = vunpack.c.l.b16 %v68
  %v157 = vunpack.c.l.b16 %v69
  %v158 = vunpack.c.h.b16 %v69
  %v159 = vunpack.c.l.b16 %v70
  %v160 = vunpack.c.l.b16 %v71
  %v161 = vunpack.c.h.b16 %v71
  %v162 = vunpack.c.l.b16 %v72
  %v163 = vunpack.c.l.b16 %v73
  %v164 = vunpack.c.h.b16 %v73
  %v165 = vunpack.c.l.b16 %v74
  %v166 = vunpack.c.l.b16 %v75
  %v167 = vunpack.c.h.b16 %v75
  %v168 = vunpack.c.l.b16 %v76
  %v169 = vunpack.c.l.b16 %v77
  %v170 = vunpack.c.h.b16 %v77
  %v171 = vunpack.c.l.b16 %v78
  %v172 = vunpack.c.l.b16 %v79
  %v173 = vunpack.c.h.b16 %v79
  %v174 = vunpack.c.l.b16 %v80
  %v175 = vunpack.c.l.b16 %v81
  %v176 = vunpack.c.h.b16 %v81
  %v177 = vunpack.c.l.b16 %v82
  %v178 = vunpack.c.l.b16 %v83
  %v179 = vunpack.c.h.b16 %v83
  %v180 = vunpack.c.l.b16 %v84
  %v181 = vpack.c.b16 %v136, %v133
  %v182 = vpack.c.b16 %v137, %v134
  %v183 = vpack.c.b16 %v138, %v135
  %v184 = vpack.c.b16 %v142, %v139
  %v185 = vpack.c.b16 %v143, %v140
  %v186 = vpack.c.b16 %v144, %v141
  %v187 = vpack.c.b16 %v148, %v145
  %v188 = vpack.c.b16 %v149, %v146
  %v189 = vpack.c.b16 %v150, %v147
  %v190 = vpack.c.b16 %v154, %v151
  %v191 = vpack.c.b16 %v155, %v152
  %v192 = vpack.c.b16 %v156, %v153
  %v193 = vpack.c.b16 %v160, %v157
  %v194 = vpack.c.b16 %v161, %v158
  %v195 = vpack.c.b16 %v162, %v159
  %v196 = vpack.c.b16 %v166, %v163
  %v197 = vpack.c.b16 %v167, %v164
  %v198 = vpack.c.b16 %v168, %v165
  %v199 = vpack.c.b16 %v172, %v169
  %v200 = vpack.c.b16 %v173, %v170
  %v201 = vpack.c.b16 %v174, %v171
  %v202 = vpack.c.b16 %v178, %v175
  %v203 = vpack.c.b16 %v179, %v176
  %v204 = vpack.c.b16 %v180, %v177
  %229 = vmatpush.bf16.msra.mxu0 %v202
  %230 = vmatpush.bf16.msra.mxu0 %v199
  %231 = vmatpush.bf16.msra.mxu0 %v196
  %232 = vmatpush.bf16.msra.mxu0 %v193
  %233 = vmatpush.bf16.msra.mxu0 %v190
  %234 = vmatpush.bf16.msra.mxu0 %v187
  %235 = vmatpush.bf16.msra.mxu0 %v184
  %236 = vmatpush.bf16.msra.mxu0 %v181
  %237 = vmatmul.bf16.gmra.mxu0 %v95
  %v238 = vpop.f32.mrf.mxu0
  %v239 = vadd.f32 0.0, %v238
  %v240 = vpop.f32.mrf.mxu0
  %v241 = vadd.f32 0.0, %v240
  %242 = vmatmul.bf16.gmra.mxu0 %v96
  %v243 = vpop.f32.mrf.mxu0
  %v244 = vadd.f32 0.0, %v243
  %v245 = vpop.f32.mrf.mxu0
  %v246 = vadd.f32 0.0, %v245
  %247 = vmatmul.bf16.gmra.mxu0 %v97
  %v248 = vpop.f32.mrf.mxu0
  %v249 = vadd.f32 0.0, %v248
  %v250 = vpop.f32.mrf.mxu0
  %251 = vdwg.mxu0
  %252 = vmatpush.bf16.msra.mxu0 %v203
  %253 = vmatpush.bf16.msra.mxu0 %v200
  %254 = vmatpush.bf16.msra.mxu0 %v197
  %255 = vmatpush.bf16.msra.mxu0 %v194
  %256 = vmatpush.bf16.msra.mxu0 %v191
  %257 = vmatpush.bf16.msra.mxu0 %v188
  %258 = vmatpush.bf16.msra.mxu0 %v185
  %259 = vmatpush.bf16.msra.mxu0 %v182
  %260 = vmatmul.bf16.gmra.mxu0 %v95
  %v261 = vpop.f32.mrf.mxu0
  %v262 = vadd.f32 0.0, %v261
  %v263 = vpop.f32.mrf.mxu0
  %v264 = vadd.f32 0.0, %v263
  %265 = vmatmul.bf16.gmra.mxu0 %v96
  %v266 = vpop.f32.mrf.mxu0
  %v267 = vadd.f32 0.0, %v266
  %v268 = vpop.f32.mrf.mxu0
  %v269 = vadd.f32 0.0, %v268
  %270 = vmatmul.bf16.gmra.mxu0 %v97
  %v271 = vpop.f32.mrf.mxu0
  %v272 = vadd.f32 0.0, %v271
  %v273 = vpop.f32.mrf.mxu0
  %274 = vdwg.mxu0
  %275 = vmatpush.bf16.msra.mxu0 %v204
  %276 = vmatpush.bf16.msra.mxu0 %v201
  %277 = vmatpush.bf16.msra.mxu0 %v198
  %278 = vmatpush.bf16.msra.mxu0 %v195
  %279 = vmatpush.bf16.msra.mxu0 %v192
  %280 = vmatpush.bf16.msra.mxu0 %v189
  %281 = vmatpush.bf16.msra.mxu0 %v186
  %282 = vmatpush.bf16.msra.mxu0 %v183
  %283 = vmatmul.bf16.gmra.mxu0 %v95
  %v284 = vpop.f32.mrf.mxu0
  %v285 = vadd.f32 0.0, %v284
  %v286 = vpop.f32.mrf.mxu0
  %v287 = vadd.f32 0.0, %v286
  %288 = vmatmul.bf16.gmra.mxu0 %v96
  %v289 = vpop.f32.mrf.mxu0
  %v290 = vadd.f32 0.0, %v289
  %v291 = vpop.f32.mrf.mxu0
  %v292 = vadd.f32 0.0, %v291
  %293 = vmatmul.bf16.gmra.mxu0 %v97
  %v294 = vpop.f32.mrf.mxu0
  %v295 = vadd.f32 0.0, %v294
  %v296 = vpop.f32.mrf.mxu0
  %297 = vdwg.mxu0
  %v298 = vadd.f32 %v33, %v239
  %v299 = vadd.f32 %v34, %v262
  %v300 = vadd.f32 %v35, %v285
  %v301 = vadd.f32 %v36, %v241
  %v302 = vadd.f32 %v37, %v264
  %v303 = vadd.f32 %v38, %v287
  %v304 = vadd.f32 %v39, %v244
  %v305 = vadd.f32 %v40, %v267
  %v306 = vadd.f32 %v41, %v290
  %v307 = vadd.f32 %v42, %v246
  %v308 = vadd.f32 %v43, %v269
  %v309 = vadd.f32 %v44, %v292
  %v310 = vadd.f32 %v45, %v249
  %v311 = vadd.f32 %v46, %v272
  %v312 = vadd.f32 %v47, %v295
  %313 = vst [vmem:[#allocation2] sm:$0xff] %v298
  %314 = vst [vmem:[#allocation2 + $0x8] sm:$0xff] %v299
  %315 = vst [vmem:[#allocation2 + $0x10] sm:$0xff] %v300
  %316 = vst [vmem:[#allocation2 + $0x18] sm:$0xff] %v301
  %317 = vst [vmem:[#allocation2 + $0x20] sm:$0xff] %v302
  %318 = vst [vmem:[#allocation2 + $0x28] sm:$0xff] %v303
  %319 = vst [vmem:[#allocation2 + $0x30] sm:$0xff] %v304
  %320 = vst [vmem:[#allocation2 + $0x38] sm:$0xff] %v305
  %321 = vst [vmem:[#allocation2 + $0x40] sm:$0xff] %v306
  %322 = vst [vmem:[#allocation2 + $0x48] sm:$0xff] %v307
  %323 = vst [vmem:[#allocation2 + $0x50] sm:$0xff] %v308
  %324 = vst [vmem:[#allocation2 + $0x58] sm:$0xff] %v309
  %325 = vst [vmem:[#allocation2 + $0x60] sm:$0x3] %v310
  %326 = vst [vmem:[#allocation2 + $0x68] sm:$0x3] %v311
  %327 = vst [vmem:[#allocation2 + $0x70] sm:$0x3] %v312
  // Predicated region
  $region18: #{vit_forward.19} parent=0 // pred_check
    %p328 = pneg %p14
  $region19: #{vit_forward.19} parent=0 // pred_check_branch
    %330 = sbr.rel (%p328) target = $region21
  $region20: #{vit_forward.19} parent=0 // pred_region
    %v331 = vld [vmem:[#allocation2] sm:$0xff]
    %v332 = vld [vmem:[#allocation2 + $0x8] sm:$0xff]
    %v333 = vld [vmem:[#allocation2 + $0x10] sm:$0xff]
    %v334 = vld [vmem:[#allocation2 + $0x18] sm:$0xff]
    %v335 = vld [vmem:[#allocation2 + $0x20] sm:$0xff]
    %v336 = vld [vmem:[#allocation2 + $0x28] sm:$0xff]
    %v337 = vld [vmem:[#allocation2 + $0x30] sm:$0xff]
    %v338 = vld [vmem:[#allocation2 + $0x38] sm:$0xff]
    %v339 = vld [vmem:[#allocation2 + $0x40] sm:$0xff]
    %v340 = vld [vmem:[#allocation2 + $0x48] sm:$0xff]
    %v341 = vld [vmem:[#allocation2 + $0x50] sm:$0xff]
    %v342 = vld [vmem:[#allocation2 + $0x58] sm:$0xff]
    %v343 = vld [vmem:[#allocation2 + $0x60] sm:$0x3]
    %v344 = vld [vmem:[#allocation2 + $0x68] sm:$0x3]
    %v345 = vld [vmem:[#allocation2 + $0x70] sm:$0x3]
    %v346 = vld [vmem:[%s2] sm:$0x7]
    %v348 = vperm.slane %v346, 0
    %v349 = vperm.slane %v346, 1
    %v350 = vperm.slane %v346, 2
    %v354 = vadd.f32 %v331, %v348
    %v355 = vadd.f32 %v332, %v349
    %v356 = vadd.f32 %v333, %v350
    %v357 = vadd.f32 %v334, %v348
    %v358 = vadd.f32 %v335, %v349
    %v359 = vadd.f32 %v336, %v350
    %v360 = vadd.f32 %v337, %v348
    %v361 = vadd.f32 %v338, %v349
    %v362 = vadd.f32 %v339, %v350
    %v363 = vadd.f32 %v340, %v348
    %v364 = vadd.f32 %v341, %v349
    %v365 = vadd.f32 %v342, %v350
    %v366 = vadd.f32 %v343, %v348
    %v367 = vadd.f32 %v344, %v349
    %v368 = vadd.f32 %v345, %v350
    %369 = vst [vmem:[%s3] sm:$0xff] %v354
    %370 = vst [vmem:[%s3 + $0x8] sm:$0xff] %v355
    %371 = vst [vmem:[%s3 + $0x10] sm:$0xff] %v356
    %372 = vst [vmem:[%s3 + $0x18] sm:$0xff] %v357
    %373 = vst [vmem:[%s3 + $0x20] sm:$0xff] %v358
    %374 = vst [vmem:[%s3 + $0x28] sm:$0xff] %v359
    %375 = vst [vmem:[%s3 + $0x30] sm:$0xff] %v360
    %376 = vst [vmem:[%s3 + $0x38] sm:$0xff] %v361
    %377 = vst [vmem:[%s3 + $0x40] sm:$0xff] %v362
    %378 = vst [vmem:[%s3 + $0x48] sm:$0xff] %v363
    %379 = vst [vmem:[%s3 + $0x50] sm:$0xff] %v364
    %380 = vst [vmem:[%s3 + $0x58] sm:$0xff] %v365
    %381 = vst [vmem:[%s3 + $0x60] sm:$0x3] %v366
    %382 = vst [vmem:[%s3 + $0x68] sm:$0x3] %v367
    %383 = vst [vmem:[%s3 + $0x70] sm:$0x3] %v368
  $region21: #{vit_forward.19} parent=0 // pred_fallthru
    _
  // Predicated region
  $region22: #{vit_forward.19} parent=0 // pred_check
    _
  $region23: #{vit_forward.19} parent=0 // pred_check_branch
    %385 = sbr.rel (0) target = $region25
  $region24: #{vit_forward.19} parent=0 // pred_region
    _
  $region25: #{vit_forward.19} parent=0 // pred_fallthru
    _
  // Predicated region
  $region26: #{vit_forward.19} parent=0 // pred_check
    _
  $region27: #{vit_forward.19} parent=0 // pred_check_branch
    %387 = sbr.rel (0) target = $region29
  $region28: #{vit_forward.19} parent=0 // pred_region
    _
  $region29: #{vit_forward.19} parent=0 // pred_fallthru
    _

// kernel: vit_forward.20
$region0: #{vit_forward.20}
  #allocation0 [shape = 'u32[]', space=smem, size = 0x4, offset = 0x4, fixed_abs, tag = 'smem constant byte address 0x4 - core index']
  #allocation1 [shape = 'u32[72,128]{1,0:T(1,128)}', space=vmem, size = 0x9000, scoped, tag = 'internal scratch']
  %s0 = inlined_call_operand.vmem [shape: bf16[2,4,17,32], index: 0, kind: input, shape index: {}]
  %s1 = inlined_call_operand.vmem [shape: bf16[2,4,32,17], index: 1, kind: input, shape index: {}]
  %s2 = inlined_call_operand.vmem [shape: bf16[2,4,17,32], index: 2, kind: input, shape index: {}]
  %s3 = inlined_call_operand.vmem [shape: f32[2,4,17,32], index: 3, kind: output, shape index: {}]
  %s4 = sld [smem:[#allocation0]]
  $region45: #{vit_forward.20} parent=0
    _
  %s6 = ssub.s32 1, %s4
  %s7 = scalar_select 0, %s6, %s4
  loop: start=0, step=1, limit=10
  $region2: #{vit_forward.20} parent=0 // loop_pre_header
    _
  $region3: #{vit_forward.20} parent=0 // loop_header
    %s9 = sphi 0, %s13
    %p10 = scmp.ge.s32.totalorder %s9, 10
    %s16 = sphi 0, %s28
    %s17 = sphi 0, %s24
    %s18 = sphi 0, %s16
    %s19 = sphi 0, %s17
    %s20 = sphi 0, %s18
    %s21 = sphi 0, %s19
    %s33 = sphi 0, %s35
    %s36 = sphi 0, %s33
    %s37 = sphi 0, %s36
    %s53 = sphi 0, %s37
    %s61 = sphi 0, %s63
    %s64 = sphi 0, %s61
    %s65 = sphi 0, %s64
    %s81 = sphi 0, %s65
    %s89 = sphi 0, %s91
    %s92 = sphi 0, %s89
    %s93 = sphi 0, %s92
    %s109 = sphi 0, %s93
    %s117 = sphi 0, %s119
    %s120 = sphi 0, %s117
    %s121 = sphi 0, %s120
    %s137 = sphi 0, %s121
  $region4: #{vit_forward.20} parent=0 // loop_header_branch
    %12 = sbr.rel (%p10) target = $region8
  $region5: #{vit_forward.20} parent=0 // loop_body
    %s14 = ssub.s32 %s9, 1
    %s15 = ssub.s32 %s9, 2
    %s22 = sadd.s32 1, %s17
    %p23 = scmp.ge.s32.totalorder %s22, 4
    %s24 = scalar_select %p23, 0, %s22
    %s25 = sadd.s32 1, %s16
    %s26 = scalar_select %p23, %s25, %s16
    %p27 = scmp.ge.s32.totalorder %s26, 2
    %s28 = scalar_select %p27, 0, %s26
    %s29 = ssub.s32 %s16, %s28
    %s30 = ssub.s32 %s17, %s24
    %s31 = sor.u32 %s29, %s30
    %p32 = scmp.eq.s32.totalorder %s31, 0
    %s34 = sadd.s32 %s33, 1
    %s35 = scalar_select %p32, %s33, %s34
    %p38 = pneg %p32
    %p39 = scmp.eq.s32.totalorder %s9, 7
    %p40 = por %p38, %p39
    %p41 = scmp.ne.s32.totalorder %s33, %s36
    %p42 = scmp.eq.s32.totalorder %s9, 0
    %p43 = por %p41, %p42
    %p44 = scmp.ne.s32.totalorder %s33, %s36
    %p45 = scmp.eq.s32.totalorder %s14, 7
    %p46 = por %p44, %p45
    %p47 = scmp.ne.s32.totalorder %s36, %s37
    %p48 = scmp.eq.s32.totalorder %s14, 0
    %p49 = por %p47, %p48
    %p50 = scmp.ne.s32.totalorder %s36, %s37
    %p51 = scmp.eq.s32.totalorder %s15, 7
    %p52 = por %p50, %p51
    %p54 = scmp.ne.s32.totalorder %s37, %s53
    %p55 = scmp.eq.s32.totalorder %s15, 0
    %p56 = por %p54, %p55
    %s57 = ssub.s32 %s16, %s28
    %s58 = ssub.s32 %s17, %s24
    %s59 = sor.u32 %s57, %s58
    %p60 = scmp.eq.s32.totalorder %s59, 0
    %s62 = sadd.s32 %s61, 1
    %s63 = scalar_select %p60, %s61, %s62
    %p66 = pneg %p60
    %p67 = scmp.eq.s32.totalorder %s9, 7
    %p68 = por %p66, %p67
    %p69 = scmp.ne.s32.totalorder %s61, %s64
    %p70 = scmp.eq.s32.totalorder %s9, 0
    %p71 = por %p69, %p70
    %p72 = scmp.ne.s32.totalorder %s61, %s64
    %p73 = scmp.eq.s32.totalorder %s14, 7
    %p74 = por %p72, %p73
    %p75 = scmp.ne.s32.totalorder %s64, %s65
    %p76 = scmp.eq.s32.totalorder %s14, 0
    %p77 = por %p75, %p76
    %p78 = scmp.ne.s32.totalorder %s64, %s65
    %p79 = scmp.eq.s32.totalorder %s15, 7
    %p80 = por %p78, %p79
    %p82 = scmp.ne.s32.totalorder %s65, %s81
    %p83 = scmp.eq.s32.totalorder %s15, 0
    %p84 = por %p82, %p83
    %s85 = ssub.s32 %s16, %s28
    %s86 = ssub.s32 %s17, %s24
    %s87 = sor.u32 %s85, %s86
    %p88 = scmp.eq.s32.totalorder %s87, 0
    %s90 = sadd.s32 %s89, 1
    %s91 = scalar_select %p88, %s89, %s90
    %p94 = pneg %p88
    %p95 = scmp.eq.s32.totalorder %s9, 7
    %p96 = por %p94, %p95
    %p97 = scmp.ne.s32.totalorder %s89, %s92
    %p98 = scmp.eq.s32.totalorder %s9, 0
    %p99 = por %p97, %p98
    %p100 = scmp.ne.s32.totalorder %s89, %s92
    %p101 = scmp.eq.s32.totalorder %s14, 7
    %p102 = por %p100, %p101
    %p103 = scmp.ne.s32.totalorder %s92, %s93
    %p104 = scmp.eq.s32.totalorder %s14, 0
    %p105 = por %p103, %p104
    %p106 = scmp.ne.s32.totalorder %s92, %s93
    %p107 = scmp.eq.s32.totalorder %s15, 7
    %p108 = por %p106, %p107
    %p110 = scmp.ne.s32.totalorder %s93, %s109
    %p111 = scmp.eq.s32.totalorder %s15, 0
    %p112 = por %p110, %p111
    %s113 = ssub.s32 %s16, %s28
    %s114 = ssub.s32 %s17, %s24
    %s115 = sor.u32 %s113, %s114
    %p116 = scmp.eq.s32.totalorder %s115, 0
    %s118 = sadd.s32 %s117, 1
    %s119 = scalar_select %p116, %s117, %s118
    %p122 = pneg %p116
    %p123 = scmp.eq.s32.totalorder %s9, 7
    %p124 = por %p122, %p123
    %p125 = scmp.ne.s32.totalorder %s117, %s120
    %p126 = scmp.eq.s32.totalorder %s9, 0
    %p127 = por %p125, %p126
    %p128 = scmp.ne.s32.totalorder %s117, %s120
    %p129 = scmp.eq.s32.totalorder %s14, 7
    %p130 = por %p128, %p129
    %p131 = scmp.ne.s32.totalorder %s120, %s121
    %p132 = scmp.eq.s32.totalorder %s14, 0
    %p133 = por %p131, %p132
    %p134 = scmp.ne.s32.totalorder %s120, %s121
    %p135 = scmp.eq.s32.totalorder %s15, 7
    %p136 = por %p134, %p135
    %p138 = scmp.ne.s32.totalorder %s121, %s137
    %p139 = scmp.eq.s32.totalorder %s15, 0
    %p140 = por %p138, %p139
    %p141 = scmp.le.s32.totalorder 1, %s9
    %p142 = scmp.lt.s32.totalorder %s9, 9
    %p143 = pnand %p141, %p142
    %p144 = pneg %p143
    // Predicated region
    $region9: #{vit_forward.20} parent=5 // pred_check
      _
    $region10: #{vit_forward.20} parent=5 // pred_check_branch
      %146 = sbr.rel (%p143) target = $region12
    $region11: #{vit_forward.20} parent=5 // pred_region
      %s147 = ssub.s32 %s9, 1
    $region12: #{vit_forward.20} parent=5 // pred_fallthru
      _
    %p148 = scmp.lt.s32.totalorder %s9, 8
    // Predicated region
    $region13: #{vit_forward.20} parent=5 // pred_check
      %p149 = pneg %p148
    $region14: #{vit_forward.20} parent=5 // pred_check_branch
      %151 = sbr.rel (%p149) target = $region16
    $region15: #{vit_forward.20} parent=5 // pred_region
      // Predicated region
      $region17: #{vit_forward.20} parent=15 // pred_check
        %p152 = pneg %p43
      $region18: #{vit_forward.20} parent=15 // pred_check_branch
        %154 = sbr.rel (%p152) target = $region20
      $region19: #{vit_forward.20} parent=15 // pred_region
        %p155 = scmp.lt.s32.totalorder %s16, 1
        %s156 = scalar_select %p155, %s16, 1
        %p157 = scmp.lt.s32.totalorder %s17, 3
        %s158 = scalar_select %p157, %s17, 3
        %s159 = smul.addr %s158, 3
        %s160 = smul.addr %s156, 12
        %s161 = sadd.s32 %s159, %s160
        %s162 = smul.addr %s161, 4
        %s163 = scalar_lea.vmem %s0, %s162
      $region20: #{vit_forward.20} parent=15 // pred_fallthru
        _
      // Predicated region
      $region21: #{vit_forward.20} parent=15 // pred_check
        %p164 = pneg %p71
      $region22: #{vit_forward.20} parent=15 // pred_check_branch
        %166 = sbr.rel (%p164) target = $region24
      $region23: #{vit_forward.20} parent=15 // pred_region
        %p167 = scmp.lt.s32.totalorder %s16, 1
        %s168 = scalar_select %p167, %s16, 1
        %p169 = scmp.lt.s32.totalorder %s17, 3
        %s170 = scalar_select %p169, %s17, 3
        %s171 = smul.addr %s170, 4
        %s172 = smul.addr %s168, 16
        %s173 = sadd.s32 %s171, %s172
        %s174 = smul.addr %s173, 4
        %s175 = scalar_lea.vmem %s1, %s174
      $region24: #{vit_forward.20} parent=15 // pred_fallthru
        _
      // Predicated region
      $region25: #{vit_forward.20} parent=15 // pred_check
        %p176 = pneg %p99
      $region26: #{vit_forward.20} parent=15 // pred_check_branch
        %178 = sbr.rel (%p176) target = $region28
      $region27: #{vit_forward.20} parent=15 // pred_region
        %p179 = scmp.lt.s32.totalorder %s16, 1
        %s180 = scalar_select %p179, %s16, 1
        %p181 = scmp.lt.s32.totalorder %s17, 3
        %s182 = scalar_select %p181, %s17, 3
        %s183 = smul.addr %s182, 3
        %s184 = smul.addr %s180, 12
        %s185 = sadd.s32 %s183, %s184
        %s186 = smul.addr %s185, 4
        %s187 = scalar_lea.vmem %s2, %s186
      $region28: #{vit_forward.20} parent=15 // pred_fallthru
        _
    $region16: #{vit_forward.20} parent=5 // pred_fallthru
      _
    %p188 = scmp.le.s32.totalorder 1, %s9
    %p189 = scmp.lt.s32.totalorder %s9, 9
    %p190 = pnand %p188, %p189
    %p191 = pneg %p190
    // Predicated region
    $region29: #{vit_forward.20} parent=5 // pred_check
      _
    $region30: #{vit_forward.20} parent=5 // pred_check_branch
      %193 = sbr.rel (%p190) target = $region32
    $region31: #{vit_forward.20} parent=5 // pred_region
      %s194 = ssub.s32 %s9, 1
      %p195 = scmp.lt.s32.totalorder %s18, 1
      %s196 = scalar_select %p195, %s18, 1
      %p197 = scmp.lt.s32.totalorder %s19, 3
      %s198 = scalar_select %p197, %s19, 3
      %s199 = smul.addr %s198, 3
      %s200 = smul.addr %s196, 12
      %s201 = sadd.s32 %s199, %s200
      %s202 = smul.addr %s201, 4
      %s203 = scalar_lea.vmem %s0, %s202
      %p204 = pneg %p49
      %p205 = pneg %p46
      %p206 = scmp.lt.s32.totalorder %s18, 1
      %s207 = scalar_select %p206, %s18, 1
      %p208 = scmp.lt.s32.totalorder %s19, 3
      %s209 = scalar_select %p208, %s19, 3
      %s210 = smul.addr %s209, 4
      %s211 = smul.addr %s207, 16
      %s212 = sadd.s32 %s210, %s211
      %s213 = smul.addr %s212, 4
      %s214 = scalar_lea.vmem %s1, %s213
      %p215 = pneg %p77
      %p216 = pneg %p74
      %p217 = scmp.lt.s32.totalorder %s18, 1
      %s218 = scalar_select %p217, %s18, 1
      %p219 = scmp.lt.s32.totalorder %s19, 3
      %s220 = scalar_select %p219, %s19, 3
      %s221 = smul.addr %s220, 3
      %s222 = smul.addr %s218, 12
      %s223 = sadd.s32 %s221, %s222
      %s224 = smul.addr %s223, 4
      %s225 = scalar_lea.vmem %s2, %s224
      %p226 = pneg %p105
      %p227 = pneg %p102
      %p228 = pneg %p133
      %p229 = pneg %p130
      %p230 = scmp.lt.s32.totalorder %s18, 1
      %s231 = scalar_select %p230, %s18, 1
      %p232 = scmp.lt.s32.totalorder %s19, 3
      %s233 = scalar_select %p232, %s19, 3
      %s234 = smul.addr %s233, 3
      %s235 = smul.addr %s231, 12
      %s236 = sadd.s32 %s234, %s235
      %s237 = smul.addr %s236, 8
      %s238 = scalar_lea.vmem %s3, %s237
      %p239 = scmp.lt.s32.totalorder %s18, 1
      %s240 = scalar_select %p239, %s18, 1
      %p241 = scmp.lt.s32.totalorder %s19, 3
      %s242 = scalar_select %p241, %s19, 3
      %s243 = smul.addr %s242, 3
      %s244 = smul.addr %s240, 12
      %s245 = sadd.s32 %s243, %s244
      %s246 = smul.addr %s245, 4
      %s247 = scalar_lea.vmem %s0, %s246
      %p248 = scmp.lt.s32.totalorder %s18, 1
      %s249 = scalar_select %p248, %s18, 1
      %p250 = scmp.lt.s32.totalorder %s19, 3
      %s251 = scalar_select %p250, %s19, 3
      %s252 = smul.addr %s251, 4
      %s253 = smul.addr %s249, 16
      %s254 = sadd.s32 %s252, %s253
      %s255 = smul.addr %s254, 4
      %s256 = scalar_lea.vmem %s1, %s255
      %p257 = scmp.lt.s32.totalorder %s18, 1
      %s258 = scalar_select %p257, %s18, 1
      %p259 = scmp.lt.s32.totalorder %s19, 3
      %s260 = scalar_select %p259, %s19, 3
      %s261 = smul.addr %s260, 3
      %s262 = smul.addr %s258, 12
      %s263 = sadd.s32 %s261, %s262
      %s264 = smul.addr %s263, 4
      %s265 = scalar_lea.vmem %s2, %s264
      %p266 = scmp.lt.s32.totalorder %s18, 1
      %s267 = scalar_select %p266, %s18, 1
      %p268 = scmp.lt.s32.totalorder %s19, 3
      %s269 = scalar_select %p268, %s19, 3
      %s270 = smul.addr %s269, 3
      %s271 = smul.addr %s267, 12
      %s272 = sadd.s32 %s270, %s271
      %s273 = smul.addr %s272, 8
      %s274 = scalar_lea.vmem %s3, %s273
      %v276 = vld [vmem:[%s247] sm:$0xf]
      %v277 = vld [vmem:[%s247 + $0x4] sm:$0xf]
      %v278 = vld [vmem:[%s247 + $0x8] sm:$0x1]
      %v279 = vld [vmem:[%s256] sm:$0xf]
      %v280 = vld [vmem:[%s256 + $0x4] sm:$0xf]
      %v281 = vld [vmem:[%s256 + $0x8] sm:$0xf]
      %v282 = vld [vmem:[%s256 + $0xc] sm:$0xf]
      %v286 = vunpack.c.l.b16 %v276
      %v287 = vunpack.c.l.b16 %v277
      %v288 = vunpack.c.l.b16 %v278
      %v289 = vpack.c.b16 %v287, %v286
      %v290 = vpack.c.b16 %v288, %v288
      %v295 = vunpack.c.l.b16 %v279
      %v296 = vunpack.c.l.b16 %v280
      %v297 = vunpack.c.l.b16 %v281
      %v298 = vunpack.c.l.b16 %v282
      %v299 = vpack.c.b16 %v296, %v295
      %v300 = vpack.c.b16 %v298, %v297
      %vm303 = vcmask 261120
      %v305 = vsel %vm303, %v289, 0
      %v308 = vsel %vm303, %v290, 0
      %310 = vmatpush.bf16.msra.mxu0 0
      %311 = vmatpush.bf16.msra.mxu0 0
      %312 = vmatpush.bf16.msra.mxu0 0
      %313 = vmatpush.bf16.msra.mxu0 0
      %314 = vmatpush.bf16.msra.mxu0 0
      %315 = vmatpush.bf16.msra.mxu0 0
      %316 = vmatpush.bf16.msra.mxu0 %v300
      %317 = vmatpush.bf16.msra.mxu0 %v299
      %318 = vmatmul.bf16.gmra.mxu0 %v305
      %v319 = vpop.f32.mrf.mxu0
      %v320 = vadd.f32 0.0, %v319
      %v321 = vpop.f32.mrf.mxu0
      %v322 = vadd.f32 0.0, %v321
      %323 = vmatmul.bf16.gmra.mxu0 %v308
      %v324 = vpop.f32.mrf.mxu0
      %v325 = vadd.f32 0.0, %v324
      %v326 = vpop.f32.mrf.mxu0
      %327 = vdwg.mxu0
      %v328 = vmul.f32 %v320, 0.17677669
      %v329 = vmul.f32 %v322, 0.17677669
      %v330 = vmul.f32 %v325, 0.17677669
      %vm331 = vcmask 138240
      %v332 = vsel %vm331, %v328, -inf
      %333 = vmax.xlane.f32.xlu0 %v332
      %v334 = vpop.xlane.xlu0 %333
      %v335 = vsel %vm331, %v329, -inf
      %336 = vmax.xlane.f32.xlu0 %v335
      %v337 = vpop.xlane.xlu0 %336
      %vm338 = vcmask 131072
      %v339 = vsel %vm338, %v330, -inf
      %340 = vmax.xlane.f32.xlu0 %v339
      %v341 = vpop.xlane.xlu0 %340
      %v342 = vsub.f32 %v328, %v334
      %v343 = vsub.f32 %v329, %v337
      %v344 = vsub.f32 %v330, %v341
      %v345 = vmul.f32 %v342, 1.442695
      %v346 = vpow.pop %v345
      %v347 = vmul.f32 %v343, 1.442695
      %v348 = vpow.pop %v347
      %v349 = vmul.f32 %v344, 1.442695
      %v350 = vpow.pop %v349
      %v351 = vsel %vm331, %v346, 0.0
      %352 = vadd.xlane.f32.xlu0 %v351
      %v353 = vpop.xlane.xlu0 %352
      %v354 = vsel %vm331, %v348, 0.0
      %355 = vadd.xlane.f32.xlu0 %v354
      %v356 = vpop.xlane.xlu0 %355
      %v357 = vsel %vm338, %v350, 0.0
      %358 = vadd.xlane.f32.xlu0 %v357
      %v359 = vpop.xlane.xlu0 %358
      %v360 = vrcp.pop %v353
      %v361 = vmul.f32 %v353, %v360
      %v362 = vsub.f32 1.0, %v361
      %v363 = vmul.f32 %v360, %v362
      %v364 = vadd.f32 %v360, %v363
      %vm365 = vweird.f32 %v353
      %vm366 = vweird.f32 %v360
      %vm367 = vmor %vm365, %vm366
      %v368 = vsel %vm367, %v360, %v364
      %v369 = vand.u32 2147483647, %v353
      %vm370 = vcmp.eq.f32.partialorder %v369, 8.507059e+37
      %v371 = vand.u32 %v353, 2147483648
      %v372 = vor.u32 1.1754944e-38, %v371
      %v373 = vsel %vm370, %v372, %v368
      %v374 = vmul.f32 %v346, %v373
      %v375 = vrcp.pop %v356
      %v376 = vmul.f32 %v356, %v375
      %v377 = vsub.f32 1.0, %v376
      %v378 = vmul.f32 %v375, %v377
      %v379 = vadd.f32 %v375, %v378
      %vm380 = vweird.f32 %v356
      %vm381 = vweird.f32 %v375
      %vm382 = vmor %vm380, %vm381
      %v383 = vsel %vm382, %v375, %v379
      %v384 = vand.u32 2147483647, %v356
      %vm385 = vcmp.eq.f32.partialorder %v384, 8.507059e+37
      %v386 = vand.u32 %v356, 2147483648
      %v387 = vor.u32 1.1754944e-38, %v386
      %v388 = vsel %vm385, %v387, %v383
      %v389 = vmul.f32 %v348, %v388
      %v390 = vrcp.pop %v359
      %v391 = vmul.f32 %v359, %v390
      %v392 = vsub.f32 1.0, %v391
      %v393 = vmul.f32 %v390, %v392
      %v394 = vadd.f32 %v390, %v393
      %vm395 = vweird.f32 %v359
      %vm396 = vweird.f32 %v390
      %vm397 = vmor %vm395, %vm396
      %v398 = vsel %vm397, %v390, %v394
      %v399 = vand.u32 2147483647, %v359
      %vm400 = vcmp.eq.f32.partialorder %v399, 8.507059e+37
      %v401 = vand.u32 %v359, 2147483648
      %v402 = vor.u32 1.1754944e-38, %v401
      %v403 = vsel %vm400, %v402, %v398
      %v404 = vmul.f32 %v350, %v403
      %v405 = vpack.c.bf16 %v389, %v374
      %v406 = vpack.c.bf16 %v404, %v404
      %v407 = vld [vmem:[%s265] sm:$0xf]
      %v408 = vld [vmem:[%s265 + $0x4] sm:$0xf]
      %v409 = vld [vmem:[%s265 + $0x8] sm:$0x1]
      %v413 = vunpack.c.l.b16 %v407
      %v414 = vunpack.c.l.b16 %v408
      %v415 = vunpack.c.l.b16 %v409
      %v416 = vpack.c.b16 %v414, %v413
      %v417 = vpack.c.b16 %v415, %v415
      %v420 = vsel %vm331, %v405, 0
      %v423 = vsel %vm331, %v406, 0
      %vm425 = vcmask 1040384
      %v426 = vsel 0, 4294967295, 65535
      %v427 = vsel %vm425, %v426, 0
      %v429 = vand.u32 %v417, %v427
      %431 = vmatpush.bf16.msra.mxu0 0
      %432 = vmatpush.bf16.msra.mxu0 0
      %433 = vmatpush.bf16.msra.mxu0 0
      %434 = vmatpush.bf16.msra.mxu0 0
      %435 = vmatpush.bf16.msra.mxu0 0
      %436 = vmatpush.bf16.msra.mxu0 0
      %437 = vmatpush.bf16.msra.mxu0 %v429
      %438 = vmatpush.bf16.msra.mxu0 %v416
      %439 = vmatmul.bf16.gmra.mxu0 %v420
      %v440 = vpop.f32.mrf.mxu0
      %v441 = vadd.f32 0.0, %v440
      %v442 = vpop.f32.mrf.mxu0
      %v443 = vadd.f32 0.0, %v442
      %444 = vmatmul.bf16.gmra.mxu0 %v423
      %v445 = vpop.f32.mrf.mxu0
      %v446 = vadd.f32 0.0, %v445
      %v447 = vpop.f32.mrf.mxu0
      %448 = vdwg.mxu0
      %449 = vst.msk [vmem:[%s274] sm:$0xff] %vm303, %v441
      %450 = vst.msk [vmem:[%s274 + $0x8] sm:$0xff] %vm303, %v443
      %vm451 = vcmask 253952
      %452 = vst.msk [vmem:[%s274 + $0x10] sm:$0x1] %vm451, %v446
      %p453 = scmp.lt.s32.totalorder %s18, 1
      %s454 = scalar_select %p453, %s18, 1
      %p455 = scmp.lt.s32.totalorder %s19, 3
      %s456 = scalar_select %p455, %s19, 3
      %s457 = smul.addr %s456, 3
      %s458 = smul.addr %s454, 12
      %s459 = sadd.s32 %s457, %s458
      %s460 = smul.addr %s459, 8
      %s461 = scalar_lea.vmem %s3, %s460
      // Predicated region
      $region33: #{vit_forward.20} parent=31 // pred_check
        %p462 = pneg %p130
      $region34: #{vit_forward.20} parent=31 // pred_check_branch
        %464 = sbr.rel (%p462) target = $region36
      $region35: #{vit_forward.20} parent=31 // pred_region
        _
      $region36: #{vit_forward.20} parent=31 // pred_fallthru
        _
    $region32: #{vit_forward.20} parent=5 // pred_fallthru
      _
    %p465 = scmp.le.s32.totalorder 2, %s9
    // Predicated region
    $region37: #{vit_forward.20} parent=5 // pred_check
      %p466 = pneg %p465
    $region38: #{vit_forward.20} parent=5 // pred_check_branch
      %468 = sbr.rel (%p466) target = $region40
    $region39: #{vit_forward.20} parent=5 // pred_region
      %s469 = ssub.s32 %s9, 2
      // Predicated region
      $region41: #{vit_forward.20} parent=39 // pred_check
        %p470 = pneg %p136
      $region42: #{vit_forward.20} parent=39 // pred_check_branch
        %472 = sbr.rel (%p470) target = $region44
      $region43: #{vit_forward.20} parent=39 // pred_region
        %p473 = scmp.lt.s32.totalorder %s20, 1
        %s474 = scalar_select %p473, %s20, 1
        %p475 = scmp.lt.s32.totalorder %s21, 3
        %s476 = scalar_select %p475, %s21, 3
        %s477 = smul.addr %s476, 3
        %s478 = smul.addr %s474, 12
        %s479 = sadd.s32 %s477, %s478
        %s480 = smul.addr %s479, 8
        %s481 = scalar_lea.vmem %s3, %s480
      $region44: #{vit_forward.20} parent=39 // pred_fallthru
        _
    $region40: #{vit_forward.20} parent=5 // pred_fallthru
      _
  $region6: #{vit_forward.20} parent=0 // loop_footer
    %s13 = sadd.s32 1, %s9
  $region7: #{vit_forward.20} parent=0 // loop_footer_branch
    %8 = sbr.rel target = $region3
  $region8: #{vit_forward.20} parent=0 // loop_exit
    _

// kernel: vit_forward.21
$region0: #{vit_forward.21}
  #allocation0 [shape = 'u32[]', space=smem, size = 0x4, offset = 0x4, fixed_abs, tag = 'smem constant byte address 0x4 - core index']
  #allocation1 [shape = 'u32[72,128]{1,0:T(1,128)}', space=vmem, size = 0x9000, scoped, tag = 'internal scratch']
  #allocation2 [shape = 'f32[34,128]{1,0:T(8,128)}', space=vmem, size = 0x5000, scoped, tag = 'scratch operand']
  %s0 = inlined_call_operand.vmem [shape: bf16[34,128], index: 0, kind: input, shape index: {}]
  %s1 = inlined_call_operand.vmem [shape: bf16[128,128], index: 1, kind: input, shape index: {}]
  %s2 = inlined_call_operand.vmem [shape: f32[1,128], index: 2, kind: input, shape index: {}]
  %s3 = inlined_call_operand.vmem [shape: f32[34,128], index: 3, kind: input, shape index: {}]
  %s4 = inlined_call_operand.vmem [shape: f32[34,128], index: 4, kind: output, shape index: {}]
  %s5 = sld [smem:[#allocation0]]
  $region34: #{vit_forward.21} parent=0
    _
  %s7 = ssub.s32 1, %s5
  %s8 = scalar_select 0, %s7, %s5
  // Predicated region
  $region2: #{vit_forward.21} parent=0 // pred_check
    _
  $region3: #{vit_forward.21} parent=0 // pred_check_branch
    %10 = sbr.rel (0) target = $region5
  $region4: #{vit_forward.21} parent=0 // pred_region
    _
  $region5: #{vit_forward.21} parent=0 // pred_fallthru
    _
  // Predicated region
  $region6: #{vit_forward.21} parent=0 // pred_check
    _
  $region7: #{vit_forward.21} parent=0 // pred_check_branch
    %12 = sbr.rel (0) target = $region9
  $region8: #{vit_forward.21} parent=0 // pred_region
    _
  $region9: #{vit_forward.21} parent=0 // pred_fallthru
    _
  // Predicated region
  $region10: #{vit_forward.21} parent=0 // pred_check
    _
  $region11: #{vit_forward.21} parent=0 // pred_check_branch
    %14 = sbr.rel (0) target = $region13
  $region12: #{vit_forward.21} parent=0 // pred_region
    _
  $region13: #{vit_forward.21} parent=0 // pred_fallthru
    _
  // Predicated region
  $region14: #{vit_forward.21} parent=0 // pred_check
    _
  $region15: #{vit_forward.21} parent=0 // pred_check_branch
    %16 = sbr.rel (0) target = $region17
  $region16: #{vit_forward.21} parent=0 // pred_region
    _
  $region17: #{vit_forward.21} parent=0 // pred_fallthru
    _
  %p17 = scmp.eq.s32.totalorder 0, 0
  // Predicated region
  $region18: #{vit_forward.21} parent=0 // pred_check
    %p18 = pneg %p17
  $region19: #{vit_forward.21} parent=0 // pred_check_branch
    %20 = sbr.rel (%p18) target = $region21
  $region20: #{vit_forward.21} parent=0 // pred_region
    %21 = vst [vmem:[#allocation2] sm:$0xff] 0.0
    %22 = vst [vmem:[#allocation2 + $0x8] sm:$0xff] 0.0
    %23 = vst [vmem:[#allocation2 + $0x10] sm:$0xff] 0.0
    %24 = vst [vmem:[#allocation2 + $0x18] sm:$0xff] 0.0
    %25 = vst [vmem:[#allocation2 + $0x20] sm:$0x3] 0.0
  $region21: #{vit_forward.21} parent=0 // pred_fallthru
    _
  %v26 = vld [vmem:[#allocation2] sm:$0xff]
  %v27 = vld [vmem:[#allocation2 + $0x8] sm:$0xff]
  %v28 = vld [vmem:[#allocation2 + $0x10] sm:$0xff]
  %v29 = vld [vmem:[#allocation2 + $0x18] sm:$0xff]
  %v30 = vld [vmem:[#allocation2 + $0x20] sm:$0x3]
  %v31 = vld [vmem:[%s0] sm:$0xf]
  %v32 = vld [vmem:[%s0 + $0x4] sm:$0xf]
  %v33 = vld [vmem:[%s0 + $0x8] sm:$0xf]
  %v34 = vld [vmem:[%s0 + $0xc] sm:$0xf]
  %v35 = vld [vmem:[%s0 + $0x10] sm:$0x1]
  %v36 = vld [vmem:[%s1] sm:$0xf]
  %v37 = vld [vmem:[%s1 + $0x4] sm:$0xf]
  %v38 = vld [vmem:[%s1 + $0x8] sm:$0xf]
  %v39 = vld [vmem:[%s1 + $0xc] sm:$0xf]
  %v40 = vld [vmem:[%s1 + $0x10] sm:$0xf]
  %v41 = vld [vmem:[%s1 + $0x14] sm:$0xf]
  %v42 = vld [vmem:[%s1 + $0x18] sm:$0xf]
  %v43 = vld [vmem:[%s1 + $0x1c] sm:$0xf]
  %v44 = vld [vmem:[%s1 + $0x20] sm:$0xf]
  %v45 = vld [vmem:[%s1 + $0x24] sm:$0xf]
  %v46 = vld [vmem:[%s1 + $0x28] sm:$0xf]
  %v47 = vld [vmem:[%s1 + $0x2c] sm:$0xf]
  %v48 = vld [vmem:[%s1 + $0x30] sm:$0xf]
  %v49 = vld [vmem:[%s1 + $0x34] sm:$0xf]
  %v50 = vld [vmem:[%s1 + $0x38] sm:$0xf]
  %v51 = vld [vmem:[%s1 + $0x3c] sm:$0xf]
  %v57 = vunpack.c.l.b16 %v31
  %v58 = vunpack.c.l.b16 %v32
  %v59 = vunpack.c.l.b16 %v33
  %v60 = vunpack.c.l.b16 %v34
  %v61 = vunpack.c.l.b16 %v35
  %v62 = vpack.c.b16 %v58, %v57
  %v63 = vpack.c.b16 %v60, %v59
  %v64 = vpack.c.b16 %v61, %v61
  %v84 = vunpack.c.l.b16 %v36
  %v85 = vunpack.c.l.b16 %v37
  %v86 = vunpack.c.l.b16 %v38
  %v87 = vunpack.c.l.b16 %v39
  %v88 = vunpack.c.l.b16 %v40
  %v89 = vunpack.c.l.b16 %v41
  %v90 = vunpack.c.l.b16 %v42
  %v91 = vunpack.c.l.b16 %v43
  %v92 = vunpack.c.l.b16 %v44
  %v93 = vunpack.c.l.b16 %v45
  %v94 = vunpack.c.l.b16 %v46
  %v95 = vunpack.c.l.b16 %v47
  %v96 = vunpack.c.l.b16 %v48
  %v97 = vunpack.c.l.b16 %v49
  %v98 = vunpack.c.l.b16 %v50
  %v99 = vunpack.c.l.b16 %v51
  %v100 = vpack.c.b16 %v85, %v84
  %v101 = vpack.c.b16 %v87, %v86
  %v102 = vpack.c.b16 %v89, %v88
  %v103 = vpack.c.b16 %v91, %v90
  %v104 = vpack.c.b16 %v93, %v92
  %v105 = vpack.c.b16 %v95, %v94
  %v106 = vpack.c.b16 %v97, %v96
  %v107 = vpack.c.b16 %v99, %v98
  %116 = vmatpush.bf16.msra.mxu0 %v107
  %117 = vmatpush.bf16.msra.mxu0 %v106
  %118 = vmatpush.bf16.msra.mxu0 %v105
  %119 = vmatpush.bf16.msra.mxu0 %v104
  %120 = vmatpush.bf16.msra.mxu0 %v103
  %121 = vmatpush.bf16.msra.mxu0 %v102
  %122 = vmatpush.bf16.msra.mxu0 %v101
  %123 = vmatpush.bf16.msra.mxu0 %v100
  %124 = vmatmul.bf16.gmra.mxu0 %v62
  %v125 = vpop.f32.mrf.mxu0
  %v126 = vadd.f32 0.0, %v125
  %v127 = vpop.f32.mrf.mxu0
  %v128 = vadd.f32 0.0, %v127
  %129 = vmatmul.bf16.gmra.mxu0 %v63
  %v130 = vpop.f32.mrf.mxu0
  %v131 = vadd.f32 0.0, %v130
  %v132 = vpop.f32.mrf.mxu0
  %v133 = vadd.f32 0.0, %v132
  %134 = vmatmul.bf16.gmra.mxu0 %v64
  %v135 = vpop.f32.mrf.mxu0
  %v136 = vadd.f32 0.0, %v135
  %v137 = vpop.f32.mrf.mxu0
  %138 = vdwg.mxu0
  %v139 = vadd.f32 %v26, %v126
  %v140 = vadd.f32 %v27, %v128
  %v141 = vadd.f32 %v28, %v131
  %v142 = vadd.f32 %v29, %v133
  %v143 = vadd.f32 %v30, %v136
  %144 = vst [vmem:[#allocation2] sm:$0xff] %v139
  %145 = vst [vmem:[#allocation2 + $0x8] sm:$0xff] %v140
  %146 = vst [vmem:[#allocation2 + $0x10] sm:$0xff] %v141
  %147 = vst [vmem:[#allocation2 + $0x18] sm:$0xff] %v142
  %148 = vst [vmem:[#allocation2 + $0x20] sm:$0x3] %v143
  // Predicated region
  $region22: #{vit_forward.21} parent=0 // pred_check
    %p149 = pneg %p17
  $region23: #{vit_forward.21} parent=0 // pred_check_branch
    %151 = sbr.rel (%p149) target = $region25
  $region24: #{vit_forward.21} parent=0 // pred_region
    %v152 = vld [vmem:[#allocation2] sm:$0xff]
    %v153 = vld [vmem:[#allocation2 + $0x8] sm:$0xff]
    %v154 = vld [vmem:[#allocation2 + $0x10] sm:$0xff]
    %v155 = vld [vmem:[#allocation2 + $0x18] sm:$0xff]
    %v156 = vld [vmem:[#allocation2 + $0x20] sm:$0x3]
    %v157 = vld [vmem:[%s2] sm:$0x1]
    %v159 = vperm.slane %v157, 0
    %v161 = vadd.f32 %v152, %v159
    %v162 = vadd.f32 %v153, %v159
    %v163 = vadd.f32 %v154, %v159
    %v164 = vadd.f32 %v155, %v159
    %v165 = vadd.f32 %v156, %v159
    %v166 = vld [vmem:[%s3] sm:$0xff]
    %v167 = vld [vmem:[%s3 + $0x8] sm:$0xff]
    %v168 = vld [vmem:[%s3 + $0x10] sm:$0xff]
    %v169 = vld [vmem:[%s3 + $0x18] sm:$0xff]
    %v170 = vld [vmem:[%s3 + $0x20] sm:$0x3]
    %v171 = vadd.f32 %v161, %v166
    %v172 = vadd.f32 %v162, %v167
    %v173 = vadd.f32 %v163, %v168
    %v174 = vadd.f32 %v164, %v169
    %v175 = vadd.f32 %v165, %v170
    %176 = vst [vmem:[%s4] sm:$0xff] %v171
    %177 = vst [vmem:[%s4 + $0x8] sm:$0xff] %v172
    %178 = vst [vmem:[%s4 + $0x10] sm:$0xff] %v173
    %179 = vst [vmem:[%s4 + $0x18] sm:$0xff] %v174
    %180 = vst [vmem:[%s4 + $0x20] sm:$0x3] %v175
  $region25: #{vit_forward.21} parent=0 // pred_fallthru
    _
  // Predicated region
  $region26: #{vit_forward.21} parent=0 // pred_check
    _
  $region27: #{vit_forward.21} parent=0 // pred_check_branch
    %182 = sbr.rel (0) target = $region29
  $region28: #{vit_forward.21} parent=0 // pred_region
    _
  $region29: #{vit_forward.21} parent=0 // pred_fallthru
    _
  // Predicated region
  $region30: #{vit_forward.21} parent=0 // pred_check
    _
  $region31: #{vit_forward.21} parent=0 // pred_check_branch
    %184 = sbr.rel (0) target = $region33
  $region32: #{vit_forward.21} parent=0 // pred_region
    _
  $region33: #{vit_forward.21} parent=0 // pred_fallthru
    _

// kernel: vit_forward.32
$region0: #{vit_forward.32}
  #allocation0 [shape = 'u32[]', space=smem, size = 0x4, offset = 0x4, fixed_abs, tag = 'smem constant byte address 0x4 - core index']
  #allocation1 [shape = 'u32[72,128]{1,0:T(1,128)}', space=vmem, size = 0x9000, scoped, tag = 'internal scratch']
  %s0 = inlined_call_operand.vmem [shape: f32[2,128], index: 0, kind: input, shape index: {}]
  %s1 = inlined_call_operand.vmem [shape: f32[1,128], index: 1, kind: input, shape index: {}]
  %s2 = inlined_call_operand.vmem [shape: f32[1,128], index: 2, kind: input, shape index: {}]
  %s3 = inlined_call_operand.vmem [shape: f32[2,128], index: 3, kind: output, shape index: {}]
  %s4 = sld [smem:[#allocation0]]
  $region22: #{vit_forward.32} parent=0
    _
  %s6 = ssub.s32 1, %s4
  %s7 = scalar_select 0, %s6, %s4
  // Predicated region
  $region2: #{vit_forward.32} parent=0 // pred_check
    _
  $region3: #{vit_forward.32} parent=0 // pred_check_branch
    %9 = sbr.rel (0) target = $region5
  $region4: #{vit_forward.32} parent=0 // pred_region
    _
  $region5: #{vit_forward.32} parent=0 // pred_fallthru
    _
  // Predicated region
  $region6: #{vit_forward.32} parent=0 // pred_check
    _
  $region7: #{vit_forward.32} parent=0 // pred_check_branch
    %11 = sbr.rel (0) target = $region9
  $region8: #{vit_forward.32} parent=0 // pred_region
    _
  $region9: #{vit_forward.32} parent=0 // pred_fallthru
    _
  // Predicated region
  $region10: #{vit_forward.32} parent=0 // pred_check
    _
  $region11: #{vit_forward.32} parent=0 // pred_check_branch
    %13 = sbr.rel (0) target = $region13
  $region12: #{vit_forward.32} parent=0 // pred_region
    _
  $region13: #{vit_forward.32} parent=0 // pred_fallthru
    _
  %v14 = vld [vmem:[%s0] sm:$0x3]
  %vm15 = vcmask 1041408
  %v16 = vsel %vm15, %v14, 0.0
  %17 = vadd.xlane.f32.xlu0 %v16
  %v18 = vpop.xlane.xlu0 %17
  %v19 = vrcp.pop 128.0
  %v20 = vmul.f32 128.0, %v19
  %v21 = vsub.f32 1.0, %v20
  %v22 = vmul.f32 %v19, %v21
  %v23 = vadd.f32 %v19, %v22
  %vm24 = vweird.f32 %v19
  %v25 = vsel %vm24, %v19, %v23
  %v26 = vmul.f32 %v18, %v25
  %v27 = vsub.f32 %v14, %v26
  %v28 = vmul.f32 %v27, %v27
  %v29 = vsel %vm15, %v28, 0.0
  %30 = vadd.xlane.f32.xlu0 %v29
  %v31 = vpop.xlane.xlu0 %30
  %v32 = vmul.f32 %v31, %v25
  %v33 = vadd.f32 %v32, 1e-05
  %v34 = vrsqrt.pop %v33
  %v35 = vmul.f32 %v34, %v33
  %v36 = vmul.f32 %v35, %v34
  %v37 = vmul.f32 0.5, %v36
  %v38 = vsub.f32 1.5, %v37
  %v39 = vmul.f32 %v34, %v38
  %vm40 = vweird.f32 %v33
  %vm41 = vweird.f32 %v34
  %vm42 = vmor %vm40, %vm41
  %v43 = vsel %vm42, %v34, %v39
  %v44 = vmul.f32 %v27, %v43
  %v45 = vld [vmem:[%s1] sm:$0x1]
  %v47 = vperm.slane %v45, 0
  %v49 = vmul.f32 %v44, %v47
  %v50 = vld [vmem:[%s2] sm:$0x1]
  %v52 = vperm.slane %v50, 0
  %v54 = vadd.f32 %v49, %v52
  %55 = vst [vmem:[%s3] sm:$0x3] %v54
  // Predicated region
  $region14: #{vit_forward.32} parent=0 // pred_check
    _
  $region15: #{vit_forward.32} parent=0 // pred_check_branch
    %57 = sbr.rel (0) target = $region17
  $region16: #{vit_forward.32} parent=0 // pred_region
    _
  $region17: #{vit_forward.32} parent=0 // pred_fallthru
    _
  // Predicated region
  $region18: #{vit_forward.32} parent=0 // pred_check
    _
  $region19: #{vit_forward.32} parent=0 // pred_check_branch
    %59 = sbr.rel (0) target = $region21
  $region20: #{vit_forward.32} parent=0 // pred_region
    _
  $region21: #{vit_forward.32} parent=0 // pred_fallthru
    _

// kernel: vit_forward.23
$region0: #{vit_forward.23}
  #allocation0 [shape = 'u32[]', space=smem, size = 0x4, offset = 0x4, fixed_abs, tag = 'smem constant byte address 0x4 - core index']
  #allocation1 [shape = 'u32[72,128]{1,0:T(1,128)}', space=vmem, size = 0x9000, scoped, tag = 'internal scratch']
  #allocation2 [shape = 'f32[34,256]{1,0:T(8,128)}', space=vmem, size = 0xa000, scoped, tag = 'scratch operand']
  %s0 = inlined_call_operand.vmem [shape: bf16[34,128], index: 0, kind: input, shape index: {}]
  %s1 = inlined_call_operand.vmem [shape: bf16[128,256], index: 1, kind: input, shape index: {}]
  %s2 = inlined_call_operand.vmem [shape: f32[1,256], index: 2, kind: input, shape index: {}]
  %s3 = inlined_call_operand.vmem [shape: f32[34,256], index: 3, kind: output, shape index: {}]
  %s4 = sld [smem:[#allocation0]]
  $region30: #{vit_forward.23} parent=0
    _
  %s6 = ssub.s32 1, %s4
  %s7 = scalar_select 0, %s6, %s4
  // Predicated region
  $region2: #{vit_forward.23} parent=0 // pred_check
    _
  $region3: #{vit_forward.23} parent=0 // pred_check_branch
    %9 = sbr.rel (0) target = $region5
  $region4: #{vit_forward.23} parent=0 // pred_region
    _
  $region5: #{vit_forward.23} parent=0 // pred_fallthru
    _
  // Predicated region
  $region6: #{vit_forward.23} parent=0 // pred_check
    _
  $region7: #{vit_forward.23} parent=0 // pred_check_branch
    %11 = sbr.rel (0) target = $region9
  $region8: #{vit_forward.23} parent=0 // pred_region
    _
  $region9: #{vit_forward.23} parent=0 // pred_fallthru
    _
  // Predicated region
  $region10: #{vit_forward.23} parent=0 // pred_check
    _
  $region11: #{vit_forward.23} parent=0 // pred_check_branch
    %13 = sbr.rel (0) target = $region13
  $region12: #{vit_forward.23} parent=0 // pred_region
    _
  $region13: #{vit_forward.23} parent=0 // pred_fallthru
    _
  %p14 = scmp.eq.s32.totalorder 0, 0
  // Predicated region
  $region14: #{vit_forward.23} parent=0 // pred_check
    %p15 = pneg %p14
  $region15: #{vit_forward.23} parent=0 // pred_check_branch
    %17 = sbr.rel (%p15) target = $region17
  $region16: #{vit_forward.23} parent=0 // pred_region
    %18 = vst [vmem:[#allocation2] sm:$0xff] 0.0
    %19 = vst [vmem:[#allocation2 + $0x8] sm:$0xff] 0.0
    %20 = vst [vmem:[#allocation2 + $0x10] sm:$0xff] 0.0
    %21 = vst [vmem:[#allocation2 + $0x18] sm:$0xff] 0.0
    %22 = vst [vmem:[#allocation2 + $0x20] sm:$0xff] 0.0
    %23 = vst [vmem:[#allocation2 + $0x28] sm:$0xff] 0.0
    %24 = vst [vmem:[#allocation2 + $0x30] sm:$0xff] 0.0
    %25 = vst [vmem:[#allocation2 + $0x38] sm:$0xff] 0.0
    %26 = vst [vmem:[#allocation2 + $0x40] sm:$0x3] 0.0
    %27 = vst [vmem:[#allocation2 + $0x48] sm:$0x3] 0.0
  $region17: #{vit_forward.23} parent=0 // pred_fallthru
    _
  %v28 = vld [vmem:[#allocation2] sm:$0xff]
  %v29 = vld [vmem:[#allocation2 + $0x8] sm:$0xff]
  %v30 = vld [vmem:[#allocation2 + $0x10] sm:$0xff]
  %v31 = vld [vmem:[#allocation2 + $0x18] sm:$0xff]
  %v32 = vld [vmem:[#allocation2 + $0x20] sm:$0xff]
  %v33 = vld [vmem:[#allocation2 + $0x28] sm:$0xff]
  %v34 = vld [vmem:[#allocation2 + $0x30] sm:$0xff]
  %v35 = vld [vmem:[#allocation2 + $0x38] sm:$0xff]
  %v36 = vld [vmem:[#allocation2 + $0x40] sm:$0x3]
  %v37 = vld [vmem:[#allocation2 + $0x48] sm:$0x3]
  %v38 = vld [vmem:[%s0] sm:$0xf]
  %v39 = vld [vmem:[%s0 + $0x4] sm:$0xf]
  %v40 = vld [vmem:[%s0 + $0x8] sm:$0xf]
  %v41 = vld [vmem:[%s0 + $0xc] sm:$0xf]
  %v42 = vld [vmem:[%s0 + $0x10] sm:$0x1]
  %v43 = vld [vmem:[%s1] sm:$0xff]
  %v44 = vld [vmem:[%s1 + $0x8] sm:$0xff]
  %v45 = vld [vmem:[%s1 + $0x10] sm:$0xff]
  %v46 = vld [vmem:[%s1 + $0x18] sm:$0xff]
  %v47 = vld [vmem:[%s1 + $0x20] sm:$0xff]
  %v48 = vld [vmem:[%s1 + $0x28] sm:$0xff]
  %v49 = vld [vmem:[%s1 + $0x30] sm:$0xff]
  %v50 = vld [vmem:[%s1 + $0x38] sm:$0xff]
  %v51 = vld [vmem:[%s1 + $0x40] sm:$0xff]
  %v52 = vld [vmem:[%s1 + $0x48] sm:$0xff]
  %v53 = vld [vmem:[%s1 + $0x50] sm:$0xff]
  %v54 = vld [vmem:[%s1 + $0x58] sm:$0xff]
  %v55 = vld [vmem:[%s1 + $0x60] sm:$0xff]
  %v56 = vld [vmem:[%s1 + $0x68] sm:$0xff]
  %v57 = vld [vmem:[%s1 + $0x70] sm:$0xff]
  %v58 = vld [vmem:[%s1 + $0x78] sm:$0xff]
  %v64 = vunpack.c.l.b16 %v38
  %v65 = vunpack.c.l.b16 %v39
  %v66 = vunpack.c.l.b16 %v40
  %v67 = vunpack.c.l.b16 %v41
  %v68 = vunpack.c.l.b16 %v42
  %v69 = vpack.c.b16 %v65, %v64
  %v70 = vpack.c.b16 %v67, %v66
  %v71 = vpack.c.b16 %v68, %v68
  %v91 = vunpack.c.l.b16 %v43
  %v92 = vunpack.c.h.b16 %v43
  %v93 = vunpack.c.l.b16 %v44
  %v94 = vunpack.c.h.b16 %v44
  %v95 = vunpack.c.l.b16 %v45
  %v96 = vunpack.c.h.b16 %v45
  %v97 = vunpack.c.l.b16 %v46
  %v98 = vunpack.c.h.b16 %v46
  %v99 = vunpack.c.l.b16 %v47
  %v100 = vunpack.c.h.b16 %v47
  %v101 = vunpack.c.l.b16 %v48
  %v102 = vunpack.c.h.b16 %v48
  %v103 = vunpack.c.l.b16 %v49
  %v104 = vunpack.c.h.b16 %v49
  %v105 = vunpack.c.l.b16 %v50
  %v106 = vunpack.c.h.b16 %v50
  %v107 = vunpack.c.l.b16 %v51
  %v108 = vunpack.c.h.b16 %v51
  %v109 = vunpack.c.l.b16 %v52
  %v110 = vunpack.c.h.b16 %v52
  %v111 = vunpack.c.l.b16 %v53
  %v112 = vunpack.c.h.b16 %v53
  %v113 = vunpack.c.l.b16 %v54
  %v114 = vunpack.c.h.b16 %v54
  %v115 = vunpack.c.l.b16 %v55
  %v116 = vunpack.c.h.b16 %v55
  %v117 = vunpack.c.l.b16 %v56
  %v118 = vunpack.c.h.b16 %v56
  %v119 = vunpack.c.l.b16 %v57
  %v120 = vunpack.c.h.b16 %v57
  %v121 = vunpack.c.l.b16 %v58
  %v122 = vunpack.c.h.b16 %v58
  %v123 = vpack.c.b16 %v93, %v91
  %v124 = vpack.c.b16 %v94, %v92
  %v125 = vpack.c.b16 %v97, %v95
  %v126 = vpack.c.b16 %v98, %v96
  %v127 = vpack.c.b16 %v101, %v99
  %v128 = vpack.c.b16 %v102, %v100
  %v129 = vpack.c.b16 %v105, %v103
  %v130 = vpack.c.b16 %v106, %v104
  %v131 = vpack.c.b16 %v109, %v107
  %v132 = vpack.c.b16 %v110, %v108
  %v133 = vpack.c.b16 %v113, %v111
  %v134 = vpack.c.b16 %v114, %v112
  %v135 = vpack.c.b16 %v117, %v115
  %v136 = vpack.c.b16 %v118, %v116
  %v137 = vpack.c.b16 %v121, %v119
  %v138 = vpack.c.b16 %v122, %v120
  %155 = vmatpush.bf16.msra.mxu0 %v137
  %156 = vmatpush.bf16.msra.mxu0 %v135
  %157 = vmatpush.bf16.msra.mxu0 %v133
  %158 = vmatpush.bf16.msra.mxu0 %v131
  %159 = vmatpush.bf16.msra.mxu0 %v129
  %160 = vmatpush.bf16.msra.mxu0 %v127
  %161 = vmatpush.bf16.msra.mxu0 %v125
  %162 = vmatpush.bf16.msra.mxu0 %v123
  %163 = vmatmul.bf16.gmra.mxu0 %v69
  %v164 = vpop.f32.mrf.mxu0
  %v165 = vadd.f32 0.0, %v164
  %v166 = vpop.f32.mrf.mxu0
  %v167 = vadd.f32 0.0, %v166
  %168 = vmatmul.bf16.gmra.mxu0 %v70
  %v169 = vpop.f32.mrf.mxu0
  %v170 = vadd.f32 0.0, %v169
  %v171 = vpop.f32.mrf.mxu0
  %v172 = vadd.f32 0.0, %v171
  %173 = vmatmul.bf16.gmra.mxu0 %v71
  %v174 = vpop.f32.mrf.mxu0
  %v175 = vadd.f32 0.0, %v174
  %v176 = vpop.f32.mrf.mxu0
  %177 = vdwg.mxu0
  %178 = vmatpush.bf16.msra.mxu0 %v138
  %179 = vmatpush.bf16.msra.mxu0 %v136
  %180 = vmatpush.bf16.msra.mxu0 %v134
  %181 = vmatpush.bf16.msra.mxu0 %v132
  %182 = vmatpush.bf16.msra.mxu0 %v130
  %183 = vmatpush.bf16.msra.mxu0 %v128
  %184 = vmatpush.bf16.msra.mxu0 %v126
  %185 = vmatpush.bf16.msra.mxu0 %v124
  %186 = vmatmul.bf16.gmra.mxu0 %v69
  %v187 = vpop.f32.mrf.mxu0
  %v188 = vadd.f32 0.0, %v187
  %v189 = vpop.f32.mrf.mxu0
  %v190 = vadd.f32 0.0, %v189
  %191 = vmatmul.bf16.gmra.mxu0 %v70
  %v192 = vpop.f32.mrf.mxu0
  %v193 = vadd.f32 0.0, %v192
  %v194 = vpop.f32.mrf.mxu0
  %v195 = vadd.f32 0.0, %v194
  %196 = vmatmul.bf16.gmra.mxu0 %v71
  %v197 = vpop.f32.mrf.mxu0
  %v198 = vadd.f32 0.0, %v197
  %v199 = vpop.f32.mrf.mxu0
  %200 = vdwg.mxu0
  %v201 = vadd.f32 %v28, %v165
  %v202 = vadd.f32 %v29, %v188
  %v203 = vadd.f32 %v30, %v167
  %v204 = vadd.f32 %v31, %v190
  %v205 = vadd.f32 %v32, %v170
  %v206 = vadd.f32 %v33, %v193
  %v207 = vadd.f32 %v34, %v172
  %v208 = vadd.f32 %v35, %v195
  %v209 = vadd.f32 %v36, %v175
  %v210 = vadd.f32 %v37, %v198
  %211 = vst [vmem:[#allocation2] sm:$0xff] %v201
  %212 = vst [vmem:[#allocation2 + $0x8] sm:$0xff] %v202
  %213 = vst [vmem:[#allocation2 + $0x10] sm:$0xff] %v203
  %214 = vst [vmem:[#allocation2 + $0x18] sm:$0xff] %v204
  %215 = vst [vmem:[#allocation2 + $0x20] sm:$0xff] %v205
  %216 = vst [vmem:[#allocation2 + $0x28] sm:$0xff] %v206
  %217 = vst [vmem:[#allocation2 + $0x30] sm:$0xff] %v207
  %218 = vst [vmem:[#allocation2 + $0x38] sm:$0xff] %v208
  %219 = vst [vmem:[#allocation2 + $0x40] sm:$0x3] %v209
  %220 = vst [vmem:[#allocation2 + $0x48] sm:$0x3] %v210
  // Predicated region
  $region18: #{vit_forward.23} parent=0 // pred_check
    %p221 = pneg %p14
  $region19: #{vit_forward.23} parent=0 // pred_check_branch
    %223 = sbr.rel (%p221) target = $region21
  $region20: #{vit_forward.23} parent=0 // pred_region
    %v224 = vld [vmem:[#allocation2] sm:$0xff]
    %v225 = vld [vmem:[#allocation2 + $0x8] sm:$0xff]
    %v226 = vld [vmem:[#allocation2 + $0x10] sm:$0xff]
    %v227 = vld [vmem:[#allocation2 + $0x18] sm:$0xff]
    %v228 = vld [vmem:[#allocation2 + $0x20] sm:$0xff]
    %v229 = vld [vmem:[#allocation2 + $0x28] sm:$0xff]
    %v230 = vld [vmem:[#allocation2 + $0x30] sm:$0xff]
    %v231 = vld [vmem:[#allocation2 + $0x38] sm:$0xff]
    %v232 = vld [vmem:[#allocation2 + $0x40] sm:$0x3]
    %v233 = vld [vmem:[#allocation2 + $0x48] sm:$0x3]
    %v234 = vld [vmem:[%s2] sm:$0x3]
    %v236 = vperm.slane %v234, 0
    %v237 = vperm.slane %v234, 1
    %v240 = vadd.f32 %v224, %v236
    %v241 = vadd.f32 %v225, %v237
    %v242 = vadd.f32 %v226, %v236
    %v243 = vadd.f32 %v227, %v237
    %v244 = vadd.f32 %v228, %v236
    %v245 = vadd.f32 %v229, %v237
    %v246 = vadd.f32 %v230, %v236
    %v247 = vadd.f32 %v231, %v237
    %v248 = vadd.f32 %v232, %v236
    %v249 = vadd.f32 %v233, %v237
    %v250 = vmul.f32 %v240, 0.5
    %v251 = vmul.f32 %v241, 0.5
    %v252 = vmul.f32 %v242, 0.5
    %v253 = vmul.f32 %v243, 0.5
    %v254 = vmul.f32 %v244, 0.5
    %v255 = vmul.f32 %v245, 0.5
    %v256 = vmul.f32 %v246, 0.5
    %v257 = vmul.f32 %v247, 0.5
    %v258 = vmul.f32 %v248, 0.5
    %v259 = vmul.f32 %v249, 0.5
    %v260 = vmul.f32 %v240, 0.044715
    %v261 = vmul.f32 %v241, 0.044715
    %v262 = vmul.f32 %v242, 0.044715
    %v263 = vmul.f32 %v243, 0.044715
    %v264 = vmul.f32 %v244, 0.044715
    %v265 = vmul.f32 %v245, 0.044715
    %v266 = vmul.f32 %v246, 0.044715
    %v267 = vmul.f32 %v247, 0.044715
    %v268 = vmul.f32 %v248, 0.044715
    %v269 = vmul.f32 %v249, 0.044715
    %v270 = vmul.f32 %v260, %v240
    %v271 = vmul.f32 %v261, %v241
    %v272 = vmul.f32 %v262, %v242
    %v273 = vmul.f32 %v263, %v243
    %v274 = vmul.f32 %v264, %v244
    %v275 = vmul.f32 %v265, %v245
    %v276 = vmul.f32 %v266, %v246
    %v277 = vmul.f32 %v267, %v247
    %v278 = vmul.f32 %v268, %v248
    %v279 = vmul.f32 %v269, %v249
    %v280 = vmul.f32 %v270, %v240
    %v281 = vmul.f32 %v271, %v241
    %v282 = vmul.f32 %v272, %v242
    %v283 = vmul.f32 %v273, %v243
    %v284 = vmul.f32 %v274, %v244
    %v285 = vmul.f32 %v275, %v245
    %v286 = vmul.f32 %v276, %v246
    %v287 = vmul.f32 %v277, %v247
    %v288 = vmul.f32 %v278, %v248
    %v289 = vmul.f32 %v279, %v249
    %v290 = vadd.f32 %v240, %v280
    %v291 = vadd.f32 %v241, %v281
    %v292 = vadd.f32 %v242, %v282
    %v293 = vadd.f32 %v243, %v283
    %v294 = vadd.f32 %v244, %v284
    %v295 = vadd.f32 %v245, %v285
    %v296 = vadd.f32 %v246, %v286
    %v297 = vadd.f32 %v247, %v287
    %v298 = vadd.f32 %v248, %v288
    %v299 = vadd.f32 %v249, %v289
    %v300 = vmul.f32 %v290, 0.7978846
    %v301 = vmul.f32 %v291, 0.7978846
    %v302 = vmul.f32 %v292, 0.7978846
    %v303 = vmul.f32 %v293, 0.7978846
    %v304 = vmul.f32 %v294, 0.7978846
    %v305 = vmul.f32 %v295, 0.7978846
    %v306 = vmul.f32 %v296, 0.7978846
    %v307 = vmul.f32 %v297, 0.7978846
    %v308 = vmul.f32 %v298, 0.7978846
    %v309 = vmul.f32 %v299, 0.7978846
    %v310 = vtanh.pop %v300
    %v311 = vtanh.pop %v301
    %v312 = vtanh.pop %v302
    %v313 = vtanh.pop %v303
    %v314 = vtanh.pop %v304
    %v315 = vtanh.pop %v305
    %v316 = vtanh.pop %v306
    %v317 = vtanh.pop %v307
    %v318 = vtanh.pop %v308
    %v319 = vtanh.pop %v309
    %v320 = vadd.f32 %v310, 1.0
    %v321 = vadd.f32 %v311, 1.0
    %v322 = vadd.f32 %v312, 1.0
    %v323 = vadd.f32 %v313, 1.0
    %v324 = vadd.f32 %v314, 1.0
    %v325 = vadd.f32 %v315, 1.0
    %v326 = vadd.f32 %v316, 1.0
    %v327 = vadd.f32 %v317, 1.0
    %v328 = vadd.f32 %v318, 1.0
    %v329 = vadd.f32 %v319, 1.0
    %v330 = vmul.f32 %v250, %v320
    %v331 = vmul.f32 %v251, %v321
    %v332 = vmul.f32 %v252, %v322
    %v333 = vmul.f32 %v253, %v323
    %v334 = vmul.f32 %v254, %v324
    %v335 = vmul.f32 %v255, %v325
    %v336 = vmul.f32 %v256, %v326
    %v337 = vmul.f32 %v257, %v327
    %v338 = vmul.f32 %v258, %v328
    %v339 = vmul.f32 %v259, %v329
    %340 = vst [vmem:[%s3] sm:$0xff] %v330
    %341 = vst [vmem:[%s3 + $0x8] sm:$0xff] %v331
    %342 = vst [vmem:[%s3 + $0x10] sm:$0xff] %v332
    %343 = vst [vmem:[%s3 + $0x18] sm:$0xff] %v333
    %344 = vst [vmem:[%s3 + $0x20] sm:$0xff] %v334
    %345 = vst [vmem:[%s3 + $0x28] sm:$0xff] %v335
    %346 = vst [vmem:[%s3 + $0x30] sm:$0xff] %v336
    %347 = vst [vmem:[%s3 + $0x38] sm:$0xff] %v337
    %348 = vst [vmem:[%s3 + $0x40] sm:$0x3] %v338
    %349 = vst [vmem:[%s3 + $0x48] sm:$0x3] %v339
  $region21: #{vit_forward.23} parent=0 // pred_fallthru
    _
  // Predicated region
  $region22: #{vit_forward.23} parent=0 // pred_check
    _
  $region23: #{vit_forward.23} parent=0 // pred_check_branch
    %351 = sbr.rel (0) target = $region25
  $region24: #{vit_forward.23} parent=0 // pred_region
    _
  $region25: #{vit_forward.23} parent=0 // pred_fallthru
    _
  // Predicated region
  $region26: #{vit_forward.23} parent=0 // pred_check
    _
  $region27: #{vit_forward.23} parent=0 // pred_check_branch
    %353 = sbr.rel (0) target = $region29
  $region28: #{vit_forward.23} parent=0 // pred_region
    _
  $region29: #{vit_forward.23} parent=0 // pred_fallthru
    _

// kernel: vit_forward.24
$region0: #{vit_forward.24}
  #allocation0 [shape = 'u32[]', space=smem, size = 0x4, offset = 0x4, fixed_abs, tag = 'smem constant byte address 0x4 - core index']
  #allocation1 [shape = 'u32[72,128]{1,0:T(1,128)}', space=vmem, size = 0x9000, scoped, tag = 'internal scratch']
  #allocation2 [shape = 'f32[34,128]{1,0:T(8,128)}', space=vmem, size = 0x5000, scoped, tag = 'scratch operand']
  %s0 = inlined_call_operand.vmem [shape: bf16[34,256], index: 0, kind: input, shape index: {}]
  %s1 = inlined_call_operand.vmem [shape: bf16[256,128], index: 1, kind: input, shape index: {}]
  %s2 = inlined_call_operand.vmem [shape: f32[1,128], index: 2, kind: input, shape index: {}]
  %s3 = inlined_call_operand.vmem [shape: f32[34,128], index: 3, kind: input, shape index: {}]
  %s4 = inlined_call_operand.vmem [shape: f32[34,128], index: 4, kind: output, shape index: {}]
  %s5 = sld [smem:[#allocation0]]
  $region34: #{vit_forward.24} parent=0
    _
  %s7 = ssub.s32 1, %s5
  %s8 = scalar_select 0, %s7, %s5
  // Predicated region
  $region2: #{vit_forward.24} parent=0 // pred_check
    _
  $region3: #{vit_forward.24} parent=0 // pred_check_branch
    %10 = sbr.rel (0) target = $region5
  $region4: #{vit_forward.24} parent=0 // pred_region
    _
  $region5: #{vit_forward.24} parent=0 // pred_fallthru
    _
  // Predicated region
  $region6: #{vit_forward.24} parent=0 // pred_check
    _
  $region7: #{vit_forward.24} parent=0 // pred_check_branch
    %12 = sbr.rel (0) target = $region9
  $region8: #{vit_forward.24} parent=0 // pred_region
    _
  $region9: #{vit_forward.24} parent=0 // pred_fallthru
    _
  // Predicated region
  $region10: #{vit_forward.24} parent=0 // pred_check
    _
  $region11: #{vit_forward.24} parent=0 // pred_check_branch
    %14 = sbr.rel (0) target = $region13
  $region12: #{vit_forward.24} parent=0 // pred_region
    _
  $region13: #{vit_forward.24} parent=0 // pred_fallthru
    _
  // Predicated region
  $region14: #{vit_forward.24} parent=0 // pred_check
    _
  $region15: #{vit_forward.24} parent=0 // pred_check_branch
    %16 = sbr.rel (0) target = $region17
  $region16: #{vit_forward.24} parent=0 // pred_region
    _
  $region17: #{vit_forward.24} parent=0 // pred_fallthru
    _
  %p17 = scmp.eq.s32.totalorder 0, 0
  // Predicated region
  $region18: #{vit_forward.24} parent=0 // pred_check
    %p18 = pneg %p17
  $region19: #{vit_forward.24} parent=0 // pred_check_branch
    %20 = sbr.rel (%p18) target = $region21
  $region20: #{vit_forward.24} parent=0 // pred_region
    %21 = vst [vmem:[#allocation2] sm:$0xff] 0.0
    %22 = vst [vmem:[#allocation2 + $0x8] sm:$0xff] 0.0
    %23 = vst [vmem:[#allocation2 + $0x10] sm:$0xff] 0.0
    %24 = vst [vmem:[#allocation2 + $0x18] sm:$0xff] 0.0
    %25 = vst [vmem:[#allocation2 + $0x20] sm:$0x3] 0.0
  $region21: #{vit_forward.24} parent=0 // pred_fallthru
    _
  %v26 = vld [vmem:[#allocation2] sm:$0xff]
  %v27 = vld [vmem:[#allocation2 + $0x8] sm:$0xff]
  %v28 = vld [vmem:[#allocation2 + $0x10] sm:$0xff]
  %v29 = vld [vmem:[#allocation2 + $0x18] sm:$0xff]
  %v30 = vld [vmem:[#allocation2 + $0x20] sm:$0x3]
  %v31 = vld [vmem:[%s0] sm:$0xff]
  %v32 = vld [vmem:[%s0 + $0x8] sm:$0xff]
  %v33 = vld [vmem:[%s0 + $0x10] sm:$0xff]
  %v34 = vld [vmem:[%s0 + $0x18] sm:$0xff]
  %v35 = vld [vmem:[%s0 + $0x20] sm:$0x11]
  %v36 = vld [vmem:[%s1] sm:$0xf]
  %v37 = vld [vmem:[%s1 + $0x4] sm:$0xf]
  %v38 = vld [vmem:[%s1 + $0x8] sm:$0xf]
  %v39 = vld [vmem:[%s1 + $0xc] sm:$0xf]
  %v40 = vld [vmem:[%s1 + $0x10] sm:$0xf]
  %v41 = vld [vmem:[%s1 + $0x14] sm:$0xf]
  %v42 = vld [vmem:[%s1 + $0x18] sm:$0xf]
  %v43 = vld [vmem:[%s1 + $0x1c] sm:$0xf]
  %v44 = vld [vmem:[%s1 + $0x20] sm:$0xf]
  %v45 = vld [vmem:[%s1 + $0x24] sm:$0xf]
  %v46 = vld [vmem:[%s1 + $0x28] sm:$0xf]
  %v47 = vld [vmem:[%s1 + $0x2c] sm:$0xf]
  %v48 = vld [vmem:[%s1 + $0x30] sm:$0xf]
  %v49 = vld [vmem:[%s1 + $0x34] sm:$0xf]
  %v50 = vld [vmem:[%s1 + $0x38] sm:$0xf]
  %v51 = vld [vmem:[%s1 + $0x3c] sm:$0xf]
  %v52 = vld [vmem:[%s1 + $0x40] sm:$0xf]
  %v53 = vld [vmem:[%s1 + $0x44] sm:$0xf]
  %v54 = vld [vmem:[%s1 + $0x48] sm:$0xf]
  %v55 = vld [vmem:[%s1 + $0x4c] sm:$0xf]
  %v56 = vld [vmem:[%s1 + $0x50] sm:$0xf]
  %v57 = vld [vmem:[%s1 + $0x54] sm:$0xf]
  %v58 = vld [vmem:[%s1 + $0x58] sm:$0xf]
  %v59 = vld [vmem:[%s1 + $0x5c] sm:$0xf]
  %v60 = vld [vmem:[%s1 + $0x60] sm:$0xf]
  %v61 = vld [vmem:[%s1 + $0x64] sm:$0xf]
  %v62 = vld [vmem:[%s1 + $0x68] sm:$0xf]
  %v63 = vld [vmem:[%s1 + $0x6c] sm:$0xf]
  %v64 = vld [vmem:[%s1 + $0x70] sm:$0xf]
  %v65 = vld [vmem:[%s1 + $0x74] sm:$0xf]
  %v66 = vld [vmem:[%s1 + $0x78] sm:$0xf]
  %v67 = vld [vmem:[%s1 + $0x7c] sm:$0xf]
  %v73 = vunpack.c.l.b16 %v31
  %v74 = vunpack.c.h.b16 %v31
  %v75 = vunpack.c.l.b16 %v32
  %v76 = vunpack.c.h.b16 %v32
  %v77 = vunpack.c.l.b16 %v33
  %v78 = vunpack.c.h.b16 %v33
  %v79 = vunpack.c.l.b16 %v34
  %v80 = vunpack.c.h.b16 %v34
  %v81 = vunpack.c.l.b16 %v35
  %v82 = vunpack.c.h.b16 %v35
  %v83 = vpack.c.b16 %v75, %v73
  %v84 = vpack.c.b16 %v76, %v74
  %v85 = vpack.c.b16 %v79, %v77
  %v86 = vpack.c.b16 %v80, %v78
  %v87 = vpack.c.b16 %v81, %v81
  %v88 = vpack.c.b16 %v82, %v82
  %v127 = vunpack.c.l.b16 %v36
  %v128 = vunpack.c.l.b16 %v37
  %v129 = vunpack.c.l.b16 %v38
  %v130 = vunpack.c.l.b16 %v39
  %v131 = vunpack.c.l.b16 %v40
  %v132 = vunpack.c.l.b16 %v41
  %v133 = vunpack.c.l.b16 %v42
  %v134 = vunpack.c.l.b16 %v43
  %v135 = vunpack.c.l.b16 %v44
  %v136 = vunpack.c.l.b16 %v45
  %v137 = vunpack.c.l.b16 %v46
  %v138 = vunpack.c.l.b16 %v47
  %v139 = vunpack.c.l.b16 %v48
  %v140 = vunpack.c.l.b16 %v49
  %v141 = vunpack.c.l.b16 %v50
  %v142 = vunpack.c.l.b16 %v51
  %v143 = vunpack.c.l.b16 %v52
  %v144 = vunpack.c.l.b16 %v53
  %v145 = vunpack.c.l.b16 %v54
  %v146 = vunpack.c.l.b16 %v55
  %v147 = vunpack.c.l.b16 %v56
  %v148 = vunpack.c.l.b16 %v57
  %v149 = vunpack.c.l.b16 %v58
  %v150 = vunpack.c.l.b16 %v59
  %v151 = vunpack.c.l.b16 %v60
  %v152 = vunpack.c.l.b16 %v61
  %v153 = vunpack.c.l.b16 %v62
  %v154 = vunpack.c.l.b16 %v63
  %v155 = vunpack.c.l.b16 %v64
  %v156 = vunpack.c.l.b16 %v65
  %v157 = vunpack.c.l.b16 %v66
  %v158 = vunpack.c.l.b16 %v67
  %v159 = vpack.c.b16 %v128, %v127
  %v160 = vpack.c.b16 %v130, %v129
  %v161 = vpack.c.b16 %v132, %v131
  %v162 = vpack.c.b16 %v134, %v133
  %v163 = vpack.c.b16 %v136, %v135
  %v164 = vpack.c.b16 %v138, %v137
  %v165 = vpack.c.b16 %v140, %v139
  %v166 = vpack.c.b16 %v142, %v141
  %v167 = vpack.c.b16 %v144, %v143
  %v168 = vpack.c.b16 %v146, %v145
  %v169 = vpack.c.b16 %v148, %v147
  %v170 = vpack.c.b16 %v150, %v149
  %v171 = vpack.c.b16 %v152, %v151
  %v172 = vpack.c.b16 %v154, %v153
  %v173 = vpack.c.b16 %v156, %v155
  %v174 = vpack.c.b16 %v158, %v157
  %191 = vmatpush.bf16.msra.mxu0 %v166
  %192 = vmatpush.bf16.msra.mxu0 %v165
  %193 = vmatpush.bf16.msra.mxu0 %v164
  %194 = vmatpush.bf16.msra.mxu0 %v163
  %195 = vmatpush.bf16.msra.mxu0 %v162
  %196 = vmatpush.bf16.msra.mxu0 %v161
  %197 = vmatpush.bf16.msra.mxu0 %v160
  %198 = vmatpush.bf16.msra.mxu0 %v159
  %199 = vmatmul.bf16.gmra.mxu0 %v83
  %v200 = vpop.f32.mrf.mxu0
  %v201 = vadd.f32 0.0, %v200
  %v202 = vpop.f32.mrf.mxu0
  %v203 = vadd.f32 0.0, %v202
  %204 = vmatmul.bf16.gmra.mxu0 %v85
  %v205 = vpop.f32.mrf.mxu0
  %v206 = vadd.f32 0.0, %v205
  %v207 = vpop.f32.mrf.mxu0
  %v208 = vadd.f32 0.0, %v207
  %209 = vmatmul.bf16.gmra.mxu0 %v87
  %v210 = vpop.f32.mrf.mxu0
  %v211 = vadd.f32 0.0, %v210
  %v212 = vpop.f32.mrf.mxu0
  %213 = vdwg.mxu0
  %214 = vmatpush.bf16.msra.mxu0 %v174
  %215 = vmatpush.bf16.msra.mxu0 %v173
  %216 = vmatpush.bf16.msra.mxu0 %v172
  %217 = vmatpush.bf16.msra.mxu0 %v171
  %218 = vmatpush.bf16.msra.mxu0 %v170
  %219 = vmatpush.bf16.msra.mxu0 %v169
  %220 = vmatpush.bf16.msra.mxu0 %v168
  %221 = vmatpush.bf16.msra.mxu0 %v167
  %222 = vmatmul.bf16.gmra.mxu0 %v84
  %v223 = vpop.f32.mrf.mxu0
  %v224 = vadd.f32 %v201, %v223
  %v225 = vpop.f32.mrf.mxu0
  %v226 = vadd.f32 %v203, %v225
  %227 = vmatmul.bf16.gmra.mxu0 %v86
  %v228 = vpop.f32.mrf.mxu0
  %v229 = vadd.f32 %v206, %v228
  %v230 = vpop.f32.mrf.mxu0
  %v231 = vadd.f32 %v208, %v230
  %232 = vmatmul.bf16.gmra.mxu0 %v88
  %v233 = vpop.f32.mrf.mxu0
  %v234 = vadd.f32 %v211, %v233
  %v235 = vpop.f32.mrf.mxu0
  %236 = vdwg.mxu0
  %v237 = vadd.f32 %v26, %v224
  %v238 = vadd.f32 %v27, %v226
  %v239 = vadd.f32 %v28, %v229
  %v240 = vadd.f32 %v29, %v231
  %v241 = vadd.f32 %v30, %v234
  %242 = vst [vmem:[#allocation2] sm:$0xff] %v237
  %243 = vst [vmem:[#allocation2 + $0x8] sm:$0xff] %v238
  %244 = vst [vmem:[#allocation2 + $0x10] sm:$0xff] %v239
  %245 = vst [vmem:[#allocation2 + $0x18] sm:$0xff] %v240
  %246 = vst [vmem:[#allocation2 + $0x20] sm:$0x3] %v241
  // Predicated region
  $region22: #{vit_forward.24} parent=0 // pred_check
    %p247 = pneg %p17
  $region23: #{vit_forward.24} parent=0 // pred_check_branch
    %249 = sbr.rel (%p247) target = $region25
  $region24: #{vit_forward.24} parent=0 // pred_region
    %v250 = vld [vmem:[#allocation2] sm:$0xff]
    %v251 = vld [vmem:[#allocation2 + $0x8] sm:$0xff]
    %v252 = vld [vmem:[#allocation2 + $0x10] sm:$0xff]
    %v253 = vld [vmem:[#allocation2 + $0x18] sm:$0xff]
    %v254 = vld [vmem:[#allocation2 + $0x20] sm:$0x3]
    %v255 = vld [vmem:[%s2] sm:$0x1]
    %v257 = vperm.slane %v255, 0
    %v259 = vadd.f32 %v250, %v257
    %v260 = vadd.f32 %v251, %v257
    %v261 = vadd.f32 %v252, %v257
    %v262 = vadd.f32 %v253, %v257
    %v263 = vadd.f32 %v254, %v257
    %v264 = vld [vmem:[%s3] sm:$0xff]
    %v265 = vld [vmem:[%s3 + $0x8] sm:$0xff]
    %v266 = vld [vmem:[%s3 + $0x10] sm:$0xff]
    %v267 = vld [vmem:[%s3 + $0x18] sm:$0xff]
    %v268 = vld [vmem:[%s3 + $0x20] sm:$0x3]
    %v269 = vadd.f32 %v259, %v264
    %v270 = vadd.f32 %v260, %v265
    %v271 = vadd.f32 %v261, %v266
    %v272 = vadd.f32 %v262, %v267
    %v273 = vadd.f32 %v263, %v268
    %274 = vst [vmem:[%s4] sm:$0xff] %v269
    %275 = vst [vmem:[%s4 + $0x8] sm:$0xff] %v270
    %276 = vst [vmem:[%s4 + $0x10] sm:$0xff] %v271
    %277 = vst [vmem:[%s4 + $0x18] sm:$0xff] %v272
    %278 = vst [vmem:[%s4 + $0x20] sm:$0x3] %v273
  $region25: #{vit_forward.24} parent=0 // pred_fallthru
    _
  // Predicated region
  $region26: #{vit_forward.24} parent=0 // pred_check
    _
  $region27: #{vit_forward.24} parent=0 // pred_check_branch
    %280 = sbr.rel (0) target = $region29
  $region28: #{vit_forward.24} parent=0 // pred_region
    _
  $region29: #{vit_forward.24} parent=0 // pred_fallthru
    _
  // Predicated region
  $region30: #{vit_forward.24} parent=0 // pred_check
    _
  $region31: #{vit_forward.24} parent=0 // pred_check_branch
    %282 = sbr.rel (0) target = $region33
  $region32: #{vit_forward.24} parent=0 // pred_region
    _
  $region33: #{vit_forward.24} parent=0 // pred_fallthru
    _

// kernel: vit_forward.33
$region0: #{vit_forward.33}
  #allocation0 [shape = 'u32[]', space=smem, size = 0x4, offset = 0x4, fixed_abs, tag = 'smem constant byte address 0x4 - core index']
  #allocation1 [shape = 'u32[72,128]{1,0:T(1,128)}', space=vmem, size = 0x9000, scoped, tag = 'internal scratch']
  #allocation2 [shape = 'f32[2,8]{1,0:T(2,128)}', space=vmem, size = 0x400, scoped, tag = 'scratch operand']
  %s0 = inlined_call_operand.vmem [shape: bf16[2,128], index: 0, kind: input, shape index: {}]
  %s1 = inlined_call_operand.vmem [shape: bf16[128,8], index: 1, kind: input, shape index: {}]
  %s2 = inlined_call_operand.vmem [shape: f32[1,8], index: 2, kind: input, shape index: {}]
  %s3 = inlined_call_operand.hbm [shape: f32[2,8], index: 3, kind: output, shape index: {}]
  %s4 = sld [smem:[#allocation0]]
  $region30: #{vit_forward.33} parent=0
    _
  %s6 = ssub.s32 1, %s4
  %s7 = scalar_select 0, %s6, %s4
  $region1: #{vit_forward.33} parent=0
    #allocation3 [shape = 'u8[1024]{0}', space=vmem, size = 0x400, scoped, tag = 'output window, operand 0, single buffered']
    #allocation4 [shape = 's32[1]{0}', space=sflag, size = 0x4, scoped, tag = 'scoped memory for vit_forward.33']
    %8 = vsyncpa [#allocation4], 0
    // Predicated region
    $region2: #{vit_forward.33} parent=1 // pred_check
      _
    $region3: #{vit_forward.33} parent=1 // pred_check_branch
      %10 = sbr.rel (0) target = $region5
    $region4: #{vit_forward.33} parent=1 // pred_region
      _
    $region5: #{vit_forward.33} parent=1 // pred_fallthru
      _
    // Predicated region
    $region6: #{vit_forward.33} parent=1 // pred_check
      _
    $region7: #{vit_forward.33} parent=1 // pred_check_branch
      %12 = sbr.rel (0) target = $region9
    $region8: #{vit_forward.33} parent=1 // pred_region
      _
    $region9: #{vit_forward.33} parent=1 // pred_fallthru
      _
    // Predicated region
    $region10: #{vit_forward.33} parent=1 // pred_check
      _
    $region11: #{vit_forward.33} parent=1 // pred_check_branch
      %14 = sbr.rel (0) target = $region13
    $region12: #{vit_forward.33} parent=1 // pred_region
      _
    $region13: #{vit_forward.33} parent=1 // pred_fallthru
      _
    %p15 = scmp.eq.s32.totalorder 0, 0
    // Predicated region
    $region14: #{vit_forward.33} parent=1 // pred_check
      %p16 = pneg %p15
    $region15: #{vit_forward.33} parent=1 // pred_check_branch
      %18 = sbr.rel (%p16) target = $region17
    $region16: #{vit_forward.33} parent=1 // pred_region
      %vm19 = vcmask 58368
      %20 = vst.msk [vmem:[#allocation2] sm:$0x3] %vm19, 0.0
    $region17: #{vit_forward.33} parent=1 // pred_fallthru
      _
    %v21 = vld [vmem:[#allocation2] sm:$0x3]
    %v22 = vld [vmem:[%s0] sm:$0x1]
    %v23 = vld [vmem:[%s1] sm:$0xf]
    %v24 = vld [vmem:[%s1 + $0x4] sm:$0xf]
    %v25 = vld [vmem:[%s1 + $0x8] sm:$0xf]
    %v26 = vld [vmem:[%s1 + $0xc] sm:$0xf]
    %v27 = vld [vmem:[%s1 + $0x10] sm:$0xf]
    %v28 = vld [vmem:[%s1 + $0x14] sm:$0xf]
    %v29 = vld [vmem:[%s1 + $0x18] sm:$0xf]
    %v30 = vld [vmem:[%s1 + $0x1c] sm:$0xf]
    %v31 = vld [vmem:[%s1 + $0x20] sm:$0xf]
    %v32 = vld [vmem:[%s1 + $0x24] sm:$0xf]
    %v33 = vld [vmem:[%s1 + $0x28] sm:$0xf]
    %v34 = vld [vmem:[%s1 + $0x2c] sm:$0xf]
    %v35 = vld [vmem:[%s1 + $0x30] sm:$0xf]
    %v36 = vld [vmem:[%s1 + $0x34] sm:$0xf]
    %v37 = vld [vmem:[%s1 + $0x38] sm:$0xf]
    %v38 = vld [vmem:[%s1 + $0x3c] sm:$0xf]
    %v55 = vunpack.c.l.b16 %v23
    %v56 = vunpack.c.l.b16 %v24
    %v57 = vunpack.c.l.b16 %v25
    %v58 = vunpack.c.l.b16 %v26
    %v59 = vunpack.c.l.b16 %v27
    %v60 = vunpack.c.l.b16 %v28
    %v61 = vunpack.c.l.b16 %v29
    %v62 = vunpack.c.l.b16 %v30
    %v63 = vunpack.c.l.b16 %v31
    %v64 = vunpack.c.l.b16 %v32
    %v65 = vunpack.c.l.b16 %v33
    %v66 = vunpack.c.l.b16 %v34
    %v67 = vunpack.c.l.b16 %v35
    %v68 = vunpack.c.l.b16 %v36
    %v69 = vunpack.c.l.b16 %v37
    %v70 = vunpack.c.l.b16 %v38
    %v71 = vpack.c.b16 %v56, %v55
    %v72 = vpack.c.b16 %v58, %v57
    %v73 = vpack.c.b16 %v60, %v59
    %v74 = vpack.c.b16 %v62, %v61
    %v75 = vpack.c.b16 %v64, %v63
    %v76 = vpack.c.b16 %v66, %v65
    %v77 = vpack.c.b16 %v68, %v67
    %v78 = vpack.c.b16 %v70, %v69
    %87 = vmatpush.bf16.msra.mxu0 %v78
    %88 = vmatpush.bf16.msra.mxu0 %v77
    %89 = vmatpush.bf16.msra.mxu0 %v76
    %90 = vmatpush.bf16.msra.mxu0 %v75
    %91 = vmatpush.bf16.msra.mxu0 %v74
    %92 = vmatpush.bf16.msra.mxu0 %v73
    %93 = vmatpush.bf16.msra.mxu0 %v72
    %94 = vmatpush.bf16.msra.mxu0 %v71
    %95 = vmatmul.bf16.gmra.mxu0 %v22
    %v96 = vpop.f32.mrf.mxu0
    %v97 = vadd.f32 0.0, %v96
    %v98 = vpop.f32.mrf.mxu0
    %99 = vdwg.mxu0
    %v100 = vadd.f32 %v21, %v97
    %vm101 = vcmask 58368
    %102 = vst.msk [vmem:[#allocation2] sm:$0x3] %vm101, %v100
    // Predicated region
    $region18: #{vit_forward.33} parent=1 // pred_check
      %p103 = pneg %p15
    $region19: #{vit_forward.33} parent=1 // pred_check_branch
      %105 = sbr.rel (%p103) target = $region21
    $region20: #{vit_forward.33} parent=1 // pred_region
      %v106 = vld [vmem:[#allocation2] sm:$0x3]
      %v107 = vld [vmem:[%s2] sm:$0x1]
      %v109 = vperm.slane %v107, 0
      %v111 = vadd.f32 %v106, %v109
      %112 = vst.msk [vmem:[#allocation3] sm:$0x3] %vm101, %v111
    $region21: #{vit_forward.33} parent=1 // pred_fallthru
      _
    // Predicated region
    $region22: #{vit_forward.33} parent=1 // pred_check
      _
    $region23: #{vit_forward.33} parent=1 // pred_check_branch
      %114 = sbr.rel (0) target = $region25
    $region24: #{vit_forward.33} parent=1 // pred_region
      %116 = vsyncadd [#allocation4], 0
      %s118 = sshll.u32 [#allocation3], 4
      %s119 = int_to_ptr.vmem [resolvable:$true] %s118
      %s120 = sshll.u32 %s3, 4
      %s121 = int_to_ptr.hbm [resolvable:$true] %s120
      %123 = dma.vmem_to_hbm [thread:$0]  %s119, 32, %s121, [#allocation4]
    $region25: #{vit_forward.33} parent=1 // pred_fallthru
      _
    // Predicated region
    $region26: #{vit_forward.33} parent=1 // pred_check
      _
    $region27: #{vit_forward.33} parent=1 // pred_check_branch
      %125 = sbr.rel (0) target = $region29
    $region28: #{vit_forward.33} parent=1 // pred_region
      %127 = dma.done [#allocation4], 32
    $region29: #{vit_forward.33} parent=1 // pred_fallthru
      _
    %128 = vsyncpa [#allocation4], 1

</llo_original>
